<compile_context>
chip_gen: v6e
topology: v6e:2x2x1
jax: 0.10.0
libtpu: 0.0.40
codegen_flags: <defaults>
</compile_context>

<pallas_src>
import functools
import math

import jax
import jax.numpy as jnp
from jax import lax
from jax.experimental import pallas as pl
from jax.experimental.pallas import tpu as pltpu

_LOG2_E = 1.4426950408889634
_MASK_VALUE = -1e30  # finite "-inf" so masked rows keep finite maxima


def _row_reciprocal(l):
    """1/l via the EUP (approx) plus one Newton step for ~f32 accuracy.

    The heavy lifting stays on the EUP slot; the refinement costs only a few
    VPU ops on O(rows) elements (l >= 1 always, so this is well conditioned).
    """
    inv = pl.reciprocal(l, approx=True)
    return inv * (2.0 - l * inv)


def _attn_resident_kernel(q_ref, k_ref, v_ref, out_ref, *, scale, kv_len):
    """One grid step = Hb heads x one query tile; K/V full-length resident.

    q_ref:   (Hb, C, TQ) tile in VMEM (input dtype)
    k_ref:   (Hb, C, Tp) tile in VMEM (resident across query tiles)
    v_ref:   (Hb, C, Tp) tile in VMEM (resident across query tiles)
    out_ref: (Hb, C, TQ) tile in VMEM
    """
    dtype = q_ref.dtype
    # Both ch**-0.25 scalings and log2(e) (for the exp2 softmax) are folded
    # into one scalar applied only to q, kept in the input dtype.
    q = q_ref[...] * jnp.asarray(scale, dtype)                  # [Hb, C, TQ]
    k = k_ref[...]                                              # [Hb, C, Tp]
    v = v_ref[...]                                              # [Hb, C, Tp]

    # s[h, t, s] = sum_c q[h, c, t] * k[h, c, s]  (f32 MXU accumulation).
    s = lax.dot_general(q, k, (((1,), (1,)), ((0,), (0,))),
                        preferred_element_type=jnp.float32)     # [Hb, TQ, Tp]

    t_pad = k.shape[-1]
    if kv_len < t_pad:  # static: only when the wrapper padded T
        key_idx = lax.broadcasted_iota(jnp.int32, s.shape, 2)
        s = jnp.where(key_idx < kv_len, s, _MASK_VALUE)

    # exp2 softmax in f32 (matches torch's `.float()`); normalization is
    # deferred until after the PV matmul.
    m = jnp.max(s, axis=-1, keepdims=True)                      # [Hb, TQ, 1]
    p = jnp.exp2(s - m)                                         # [Hb, TQ, Tp]
    l = jnp.sum(p, axis=-1)                                     # [Hb, TQ]

    # a[h, c, t] = sum_s v[h, c, s] * p[h, t, s]; probabilities are cast back
    # to the input dtype first (same as `.type(weight.dtype)` in PyTorch).
    a = lax.dot_general(v, p.astype(dtype), (((2,), (2,)), ((0,), (0,))),
                        preferred_element_type=jnp.float32)     # [Hb, C, TQ]

    inv = _row_reciprocal(l)                                    # [Hb, TQ]
    out_ref[...] = (a * inv[:, None, :]).astype(out_ref.dtype)


def _attn_flash_kernel(q_ref, k_ref, v_ref, out_ref, m_sc, l_sc, acc_sc,
                       *, scale, kv_len, t_pad, block_k):
    """Online-softmax variant: grid (head_block, q_tile, k_tile), k innermost.

    q_ref: (Hb, C, TQ)   k_ref/v_ref: (Hb, C, TK)   out_ref: (Hb, C, TQ)
    m_sc/l_sc: (Hb, TQ, 1) f32 scratch    acc_sc: (Hb, C, TQ) f32 scratch
    """
    kv = pl.program_id(2)

    @pl.when(kv == 0)
    def _():
        m_sc[...] = jnp.full_like(m_sc, -jnp.inf)
        l_sc[...] = jnp.zeros_like(l_sc)
        acc_sc[...] = jnp.zeros_like(acc_sc)

    dtype = q_ref.dtype
    q = q_ref[...] * jnp.asarray(scale, dtype)                  # [Hb, C, TQ]
    k = k_ref[...]                                              # [Hb, C, TK]
    v = v_ref[...]                                              # [Hb, C, TK]

    s = lax.dot_general(q, k, (((1,), (1,)), ((0,), (0,))),
                        preferred_element_type=jnp.float32)     # [Hb, TQ, TK]

    if kv_len < t_pad:  # static: mask padded keys of this tile
        key_idx = kv * block_k + lax.broadcasted_iota(jnp.int32, s.shape, 2)
        s = jnp.where(key_idx < kv_len, s, _MASK_VALUE)

    m_prev = m_sc[...]                                          # [Hb, TQ, 1]
    m_new = jnp.maximum(m_prev, jnp.max(s, axis=-1, keepdims=True))
    alpha = jnp.exp2(m_prev - m_new)                            # [Hb, TQ, 1]
    p = jnp.exp2(s - m_new)                                     # [Hb, TQ, TK]

    l_sc[...] = alpha * l_sc[...] + jnp.sum(p, axis=-1, keepdims=True)
    pv = lax.dot_general(v, p.astype(dtype), (((2,), (2,)), ((0,), (0,))),
                         preferred_element_type=jnp.float32)    # [Hb, C, TQ]
    acc_sc[...] = acc_sc[...] * alpha[:, :, 0][:, None, :] + pv
    m_sc[...] = m_new

    @pl.when(kv == pl.num_programs(2) - 1)
    def _():
        inv = _row_reciprocal(l_sc[...])                        # [Hb, TQ, 1]
        out_ref[...] = (acc_sc[...] * inv[:, :, 0][:, None, :]
                        ).astype(out_ref.dtype)


def _largest_divisor_at_most(n, cap):
    cap = max(1, min(cap, n))
    for d in range(cap, 0, -1):
        if n % d == 0:
            return d
    return 1


def _pick_block(t_pad, target):
    """Largest multiple of 128 that divides t_pad and is <= target."""
    tq = max(128, min(target, t_pad))
    tq -= tq % 128
    tq = max(tq, 128)
    while t_pad % tq != 0:
        tq -= 128
    return tq


def _vmem_capacity_bytes():
    try:
        info = pltpu.get_tpu_info()
        cap = getattr(info, "vmem_capacity_bytes", None)
        if cap:
            return int(cap)
    except Exception:
        pass
    return 64 * 1024 * 1024  # conservative: v7x per-TensorCore VMEM


def _vmem_bytes_resident(hb, ch, t_pad, tq, itemsize):
    """Footprint of the resident-K/V kernel (conservative)."""
    # Double-buffered q/out tiles and full-length k/v tiles.
    io = 2 * itemsize * hb * ch * (2 * tq + 2 * t_pad)
    # f32 scores + f32 exp tile + input-dtype copy of p + potential layout
    # copy Mosaic materializes for the PV dot_general.
    scores = hb * tq * t_pad * (4 + 4 + 2 * itemsize)
    # scaled-q copy + f32 PV result.
    misc = hb * ch * tq * (itemsize + 4)
    return io + scores + misc + (2 << 20)  # internal-scratch headroom


def _vmem_bytes_flash(hb, ch, tq, tk, itemsize):
    """Footprint of the key-tiled (flash) kernel (conservative)."""
    io = 2 * itemsize * hb * ch * (2 * tq + 2 * tk)
    scores = hb * tq * tk * (4 + 4 + 2 * itemsize)
    scratch = 4 * hb * (2 * tq * 128 + ch * tq)  # m/l (lane-padded) + acc
    misc = hb * ch * tq * (itemsize + 4)
    return io + scores + scratch + misc + (2 << 20)


def qkv_attention_legacy(qkv, n_heads, *, block_heads=None, block_q=None,
                         block_k=None):
    """Pallas equivalent of QKVAttentionLegacy.forward.

    :param qkv: [N, H*3*C, T] array of Qs, Ks and Vs.
    :return:    [N, H*C, T] array after attention.
    """
    bs, width, length = qkv.shape
    assert width % (3 * n_heads) == 0
    ch = width // (3 * n_heads)
    b = bs * n_heads

    # [N, H*3*C, T] -> [B, 3, C, T]   (axis 1 selects q / k / v)
    qkv_r = qkv.reshape(b, 3, ch, length)

    # Pad the sequence axis to a lane-aligned multiple of 128; padded keys are
    # masked in-kernel, padded query columns are sliced off below.
    t_pad = ((length + 127) // 128) * 128
    if t_pad != length:
        qkv_r = jnp.pad(qkv_r, ((0, 0), (0, 0), (0, 0), (0, t_pad - length)))

    itemsize = jnp.dtype(qkv.dtype).itemsize
    capacity = _vmem_capacity_bytes()
    vmem_budget = capacity // 2
    vmem_limit = max(32 << 20, min((capacity * 3) // 4, capacity - (8 << 20)))
    tq_target = 512 if capacity >= (96 << 20) else 256

    tq = block_q if block_q is not None else _pick_block(t_pad, tq_target)
    assert t_pad % tq == 0 and tq % 128 == 0

    # Fold both ch**-0.25 scalings and log2(e) into a single q scale so the
    # softmax can use exp2 directly (one fewer VPU multiply per score).
    scale = _LOG2_E / math.sqrt(ch)

    use_flash = block_k is not None
    if block_heads is not None:
        hb = block_heads
        assert b % hb == 0
    else:
        hb = _largest_divisor_at_most(b, 16)
        if not use_flash:
            while hb > 1 and _vmem_bytes_resident(hb, ch, t_pad, tq, itemsize) > vmem_budget:
                hb = _largest_divisor_at_most(b, hb - 1)
            if _vmem_bytes_resident(hb, ch, t_pad, tq, itemsize) > vmem_budget:
                # Even hb=1 with resident K/V does not fit (long T on v7x):
                # fall back to the key-tiled online-softmax kernel.
                use_flash = True
                hb = _largest_divisor_at_most(b, 16)
        if use_flash:
            while hb > 1 and _vmem_bytes_flash(hb, ch, tq, 128, itemsize) > vmem_budget:
                hb = _largest_divisor_at_most(b, hb - 1)
        # Keep >= 2 blocks on the parallel head axis so it can shard across
        # TensorCores (v7x has 2 TCs per chip).
        if b // hb < 2 and b > 1:
            hb = _largest_divisor_at_most(b, max(1, hb // 2))

    if use_flash:
        if block_k is not None:
            tk = block_k
        else:
            tk = _pick_block(t_pad, min(tq, 512))
            while tk > 128 and _vmem_bytes_flash(hb, ch, tq, tk, itemsize) > vmem_budget:
                tk = _pick_block(t_pad, tk - 128)
        assert t_pad % tk == 0 and tk % 128 == 0

        grid = (b // hb, t_pad // tq, t_pad // tk)
        kernel = functools.partial(_attn_flash_kernel, scale=scale,
                                   kv_len=length, t_pad=t_pad, block_k=tk)
        out = pl.pallas_call(
            kernel,
            out_shape=jax.ShapeDtypeStruct((b, ch, t_pad), qkv.dtype),
            grid_spec=pltpu.PrefetchScalarGridSpec(
                num_scalar_prefetch=0,
                grid=grid,
                # qkv_r is passed three times; each spec DMAs only its slab.
                in_specs=[
                    pl.BlockSpec((hb, None, ch, tq), lambda h, qi, ki: (h, 0, 0, qi)),
                    pl.BlockSpec((hb, None, ch, tk), lambda h, qi, ki: (h, 1, 0, ki)),
                    pl.BlockSpec((hb, None, ch, tk), lambda h, qi, ki: (h, 2, 0, ki)),
                ],
                out_specs=pl.BlockSpec((hb, ch, tq), lambda h, qi, ki: (h, 0, qi)),
                scratch_shapes=[
                    pltpu.VMEM((hb, tq, 1), jnp.float32),   # running max (log2 domain)
                    pltpu.VMEM((hb, tq, 1), jnp.float32),   # running denominator
                    pltpu.VMEM((hb, ch, tq), jnp.float32),  # running PV accumulator
                ],
            ),
            compiler_params=pltpu.CompilerParams(
                dimension_semantics=("parallel", "parallel", "arbitrary"),
                vmem_limit_bytes=vmem_limit,
            ),
        )(qkv_r, qkv_r, qkv_r)
    else:
        grid = (b // hb, t_pad // tq)
        kernel = functools.partial(_attn_resident_kernel, scale=scale,
                                   kv_len=length)
        out = pl.pallas_call(
            kernel,
            out_shape=jax.ShapeDtypeStruct((b, ch, t_pad), qkv.dtype),
            grid_spec=pltpu.PrefetchScalarGridSpec(
                num_scalar_prefetch=0,
                grid=grid,
                # q per (head-block, query-tile); k/v full length with the
                # same block index across the inner query axis so they stay
                # VMEM-resident.
                in_specs=[
                    pl.BlockSpec((hb, None, ch, tq), lambda h, qi: (h, 0, 0, qi)),
                    pl.BlockSpec((hb, None, ch, t_pad), lambda h, qi: (h, 1, 0, 0)),
                    pl.BlockSpec((hb, None, ch, t_pad), lambda h, qi: (h, 2, 0, 0)),
                ],
                out_specs=pl.BlockSpec((hb, ch, tq), lambda h, qi: (h, 0, qi)),
            ),
            compiler_params=pltpu.CompilerParams(
                dimension_semantics=("parallel", "parallel"),
                vmem_limit_bytes=vmem_limit,
            ),
        )(qkv_r, qkv_r, qkv_r)

    if t_pad != length:
        out = out[:, :, :length]
    return out.reshape(bs, n_heads * ch, length)


def _reference(qkv, n_heads):
    """Pure-JAX reference mirroring the PyTorch forward exactly."""
    bs, width, length = qkv.shape
    ch = width // (3 * n_heads)
    qkv_r = qkv.reshape(bs * n_heads, 3 * ch, length)
    q, k, v = qkv_r[:, :ch], qkv_r[:, ch:2 * ch], qkv_r[:, 2 * ch:]
    scale = 1.0 / math.sqrt(math.sqrt(ch))
    weight = jnp.einsum('bct,bcs->bts', q * scale, k * scale)
    weight = jax.nn.softmax(weight.astype(jnp.float32), axis=-1).astype(weight.dtype)
    a = jnp.einsum('bts,bcs->bct', weight, v)
    return a.reshape(bs, -1, length)


if __name__ == "__main__":
    # N=2 batch, H=4 heads, C=64 channels/head, T=256 sequence.
    N, H, C, T = 2, 4, 64, 256
    key = jax.random.PRNGKey(0)
    k0, k1 = jax.random.split(key)
    qkv = jax.random.normal(k0, (N, H * 3 * C, T), dtype=jnp.float32)
    ref = _reference(qkv, H)

    # Forced (2, 2) head-block x query-tile grid (resident-K/V kernel).
    out = jax.block_until_ready(qkv_attention_legacy(qkv, H, block_heads=4, block_q=128))
    assert out.shape == (N, H * C, T), out.shape
    assert jnp.allclose(out, ref, atol=1e-4, rtol=1e-4), float(jnp.max(jnp.abs(out - ref)))

    # Auto-tiled path (per-generation VMEM budgeting picks hb / TQ).
    out2 = jax.block_until_ready(qkv_attention_legacy(qkv, H))
    assert jnp.allclose(out2, ref, atol=1e-4, rtol=1e-4), float(jnp.max(jnp.abs(out2 - ref)))

    # Key-tiled online-softmax (flash) fallback path, forced via block_k.
    out3 = jax.block_until_ready(
        qkv_attention_legacy(qkv, H, block_heads=2, block_q=128, block_k=128))
    assert jnp.allclose(out3, ref, atol=1e-4, rtol=1e-4), float(jnp.max(jnp.abs(out3 - ref)))

    # Non-128-multiple sequence length exercises padding + in-kernel masking.
    T2 = 200
    qkv2 = jax.random.normal(k1, (N, H * 3 * C, T2), dtype=jnp.float32)
    ref2 = _reference(qkv2, H)
    out4 = jax.block_until_ready(qkv_attention_legacy(qkv2, H))
    assert out4.shape == (N, H * C, T2), out4.shape
    assert jnp.allclose(out4, ref2, atol=1e-4, rtol=1e-4), float(jnp.max(jnp.abs(out4 - ref2)))

    # bf16 path (bf16 MXU operands, f32 softmax) against the bf16 reference.
    qkv_bf16 = qkv.astype(jnp.bfloat16)
    ref_bf16 = _reference(qkv_bf16, H).astype(jnp.float32)
    out5 = jax.block_until_ready(qkv_attention_legacy(qkv_bf16, H)).astype(jnp.float32)
    assert jnp.allclose(out5, ref_bf16, atol=5e-2, rtol=5e-2), \
        float(jnp.max(jnp.abs(out5 - ref_bf16)))

    print("KERNEL_OK")
</pallas_src>

<mosaic_0001>
module attributes {stable_mosaic.version = 11 : i64} {
  func.func @_attn_resident_kernel(%arg0: i32, %arg1: i32, %arg2: memref<4x1x64x128xf32, #tpu.memory_space<vmem>>, %arg3: memref<4x1x64x256xf32, #tpu.memory_space<vmem>>, %arg4: memref<4x1x64x256xf32, #tpu.memory_space<vmem>>, %arg5: memref<4x64x128xf32, #tpu.memory_space<vmem>>) attributes {dimension_semantics = [#tpu.dimension_semantics<parallel>, #tpu.dimension_semantics<parallel>], iteration_bounds = array<i64: 2, 2>, scalar_prefetch = 0 : i64, scratch_operands = 0 : i64, tpu.core_type = #tpu.core_type<tc>, window_params = [{transform_indices = @transform_0, window_bounds = array<i64: 4, 1, 64, 128>}, {transform_indices = @transform_1, window_bounds = array<i64: 4, 1, 64, 256>}, {transform_indices = @transform_2, window_bounds = array<i64: 4, 1, 64, 256>}, {transform_indices = @transform_3, window_bounds = array<i64: 4, 64, 128>}]} {
    %c0 = arith.constant 0 : index
    %c0_0 = arith.constant 0 : index
    %c0_1 = arith.constant 0 : index
    %c0_2 = arith.constant 0 : index
    %0 = vector.load %arg2[%c0, %c0_0, %c0_1, %c0_2] : memref<4x1x64x128xf32, #tpu.memory_space<vmem>>, vector<4x1x64x128xf32>
    %1 = vector.shape_cast %0 : vector<4x1x64x128xf32> to vector<4x64x128xf32>
    %cst = arith.constant 0.180336878 : f32
    %2 = vector.broadcast %cst : f32 to vector<4x64x128xf32>
    %3 = arith.mulf %1, %2 : vector<4x64x128xf32>
    %c0_3 = arith.constant 0 : index
    %c0_4 = arith.constant 0 : index
    %c0_5 = arith.constant 0 : index
    %c0_6 = arith.constant 0 : index
    %4 = vector.load %arg3[%c0_3, %c0_4, %c0_5, %c0_6] : memref<4x1x64x256xf32, #tpu.memory_space<vmem>>, vector<4x1x64x256xf32>
    %5 = vector.shape_cast %4 : vector<4x1x64x256xf32> to vector<4x64x256xf32>
    %c0_7 = arith.constant 0 : index
    %c0_8 = arith.constant 0 : index
    %c0_9 = arith.constant 0 : index
    %c0_10 = arith.constant 0 : index
    %6 = vector.load %arg4[%c0_7, %c0_8, %c0_9, %c0_10] : memref<4x1x64x256xf32, #tpu.memory_space<vmem>>, vector<4x1x64x256xf32>
    %7 = vector.shape_cast %6 : vector<4x1x64x256xf32> to vector<4x64x256xf32>
    %cst_11 = arith.constant dense<0.000000e+00> : vector<4x128x256xf32>
    %8 = tpu.matmul %3, %5, %cst_11 {dimension_numbers = #tpu.dot_dimension_numbers<[1], [1], [2], [2], [0, 0, 0, 2, 1, 2], [0], [0]>} : vector<4x64x128xf32>, vector<4x64x256xf32>, vector<4x128x256xf32> -> vector<4x128x256xf32>
    %cst_12 = arith.constant dense<0xFF800000> : vector<4x128xf32>
    %9 = vector.multi_reduction <maximumf>, %8, %cst_12 [2] : vector<4x128x256xf32> to vector<4x128xf32>
    %10 = vector.shape_cast %9 : vector<4x128xf32> to vector<4x128x1xf32>
    %11 = vector.broadcast %10 : vector<4x128x1xf32> to vector<4x128x256xf32>
    %12 = arith.subf %8, %11 : vector<4x128x256xf32>
    %13 = math.exp2 %12 : vector<4x128x256xf32>
    %cst_13 = arith.constant dense<0.000000e+00> : vector<4x128xf32>
    %14 = vector.multi_reduction <add>, %13, %cst_13 [2] : vector<4x128x256xf32> to vector<4x128xf32>
    %cst_14 = arith.constant dense<0.000000e+00> : vector<4x64x128xf32>
    %15 = tpu.matmul %7, %13, %cst_14 {dimension_numbers = #tpu.dot_dimension_numbers<[2], [2], [1], [1], [0, 0, 0, 1, 1, 1], [0], [0]>} : vector<4x64x256xf32>, vector<4x128x256xf32>, vector<4x64x128xf32> -> vector<4x64x128xf32>
    %16 = tpu.reciprocal %14 {approx = true} : vector<4x128xf32> -> vector<4x128xf32>
    %17 = arith.mulf %14, %16 : vector<4x128xf32>
    %cst_15 = arith.constant 2.000000e+00 : f32
    %18 = vector.broadcast %cst_15 : f32 to vector<4x128xf32>
    %19 = arith.subf %18, %17 : vector<4x128xf32>
    %20 = arith.mulf %16, %19 : vector<4x128xf32>
    %21 = vector.shape_cast %20 : vector<4x128xf32> to vector<4x1x128xf32>
    %22 = vector.broadcast %21 : vector<4x1x128xf32> to vector<4x64x128xf32>
    %23 = arith.mulf %15, %22 : vector<4x64x128xf32>
    %c0_16 = arith.constant 0 : index
    %c0_17 = arith.constant 0 : index
    %c0_18 = arith.constant 0 : index
    %24 = vector.load %arg5[%c0_16, %c0_17, %c0_18] : memref<4x64x128xf32, #tpu.memory_space<vmem>>, vector<4x64x128xf32>
    tpu.vector_store %arg5[%c0_16, %c0_17, %c0_18], %23 {strides = array<i32>} : memref<4x64x128xf32, #tpu.memory_space<vmem>>, vector<4x64x128xf32>,
    return
  }
  func.func @transform_0(%arg0: i32, %arg1: i32) -> (i32, i32, i32, i32) {
    %c0_i32 = arith.constant 0 : i32
    %c0_i32_0 = arith.constant 0 : i32
    %c0_i32_1 = arith.constant 0 : i32
    return %arg0, %c0_i32, %c0_i32_0, %arg1 : i32, i32, i32, i32
  }
  func.func @transform_1(%arg0: i32, %arg1: i32) -> (i32, i32, i32, i32) {
    %c1_i32 = arith.constant 1 : i32
    %c0_i32 = arith.constant 0 : i32
    %c0_i32_0 = arith.constant 0 : i32
    %c0_i32_1 = arith.constant 0 : i32
    return %arg0, %c1_i32, %c0_i32, %c0_i32_0 : i32, i32, i32, i32
  }
  func.func @transform_2(%arg0: i32, %arg1: i32) -> (i32, i32, i32, i32) {
    %c2_i32 = arith.constant 2 : i32
    %c0_i32 = arith.constant 0 : i32
    %c0_i32_0 = arith.constant 0 : i32
    %c0_i32_1 = arith.constant 0 : i32
    return %arg0, %c2_i32, %c0_i32, %c0_i32_0 : i32, i32, i32, i32
  }
  func.func @transform_3(%arg0: i32, %arg1: i32) -> (i32, i32, i32) {
    %c0_i32 = arith.constant 0 : i32
    %c0_i32_0 = arith.constant 0 : i32
    return %arg0, %c0_i32, %arg1 : i32, i32, i32
  }
}

</mosaic_0001>

<llo_original>
// kernel: tpu_custom_call.1
$region0: #{tpu_custom_call.1}
  #allocation0 [shape = 'u32[]', space=smem, size = 0x4, offset = 0x4, fixed_abs, tag = 'smem constant byte address 0x4 - core index']
  #allocation1 [shape = 'u32[144,128]{1,0:T(1,128)}', space=vmem, size = 0x12000, scoped, tag = 'internal scratch']
  #allocation9 [shape = 's32[]', space=sflag, size = 0x4, offset = 0, fixed_abs, tag = 'sflag constant byte address 0x0 - dummy sync flag']
  #allocation11 [shape = 's32[]', space=sflag, size = 0x4, offset = 0, fixed_abs, tag = 'sflag constant byte address 0x0 - dummy sync flag']
  #allocation13 [shape = 's32[]', space=sflag, size = 0x4, offset = 0, fixed_abs, tag = 'sflag constant byte address 0x0 - dummy sync flag']
  %s0 = inlined_call_operand.hbm [shape: f32[8,3,64,256], index: 0, kind: input, shape index: {}]
  %s1 = inlined_call_operand.hbm [shape: f32[8,3,64,256], index: 1, kind: input, shape index: {}]
  %s2 = inlined_call_operand.hbm [shape: f32[8,3,64,256], index: 2, kind: input, shape index: {}]
  %s3 = inlined_call_operand.hbm [shape: f32[8,64,256], index: 3, kind: output, shape index: {}]
  %s4 = sld [smem:[#allocation0]]
  $region57: #{tpu_custom_call.1} parent=0
    _
  %s6 = ssub.s32 1, %s4
  %s7 = scalar_select 0, %s6, %s4
  $region1: #{tpu_custom_call.1} parent=0
    #allocation2 [shape = 'u8[262144]{0}', space=vmem, size = 0x40000, scoped, tag = 'input window, operand 0']
    #allocation3 [shape = 's32[2]{0}', space=sflag, size = 0x8, scoped, tag = 'scoped memory for tpu_custom_call.1']
    #allocation4 [shape = 's32[2]{0}', space=sflag, size = 0x8, scoped, tag = 'scoped memory for tpu_custom_call.1']
    #allocation5 [shape = 'u8[524288]{0}', space=vmem, size = 0x80000, scoped, tag = 'input window, operand 1']
    #allocation6 [shape = 's32[2]{0}', space=sflag, size = 0x8, scoped, tag = 'scoped memory for tpu_custom_call.1']
    #allocation7 [shape = 'u8[524288]{0}', space=vmem, size = 0x80000, scoped, tag = 'input window, operand 2']
    #allocation8 [shape = 'u8[262144]{0}', space=vmem, size = 0x40000, scoped, tag = 'output window, operand 0']
    %8 = vsyncpa [#allocation3], 0
    %s9 = scalar_lea.sflag [#allocation3], 1
    %10 = vsyncpa %s9, 0
    %11 = vsyncpa [#allocation6], 0
    %s12 = scalar_lea.sflag [#allocation6], 1
    %13 = vsyncpa %s12, 0
    %14 = vsyncpa [#allocation4], 0
    %s15 = scalar_lea.sflag [#allocation4], 1
    %16 = vsyncpa %s15, 0
    loop: start=0, step=1, limit=6
    $region2: #{tpu_custom_call.1} parent=1 // loop_pre_header
      _
    $region3: #{tpu_custom_call.1} parent=1 // loop_header
      %s18 = sphi 0, %s22
      %p19 = scmp.ge.s32.totalorder %s18, 6
      %s25 = sphi 0, %s37
      %s26 = sphi 0, %s33
      %s27 = sphi 0, %s25
      %s28 = sphi 0, %s26
      %s29 = sphi 0, %s27
      %s30 = sphi 0, %s28
      %s42 = sphi 0, %s44
      %s45 = sphi 0, %s42
      %s46 = sphi 0, %s45
      %s62 = sphi 0, %s46
      %s68 = sphi 0, %s70
      %s71 = sphi 0, %s68
      %s72 = sphi 0, %s71
      %s88 = sphi 0, %s72
      %s94 = sphi 0, %s96
      %s97 = sphi 0, %s94
      %s98 = sphi 0, %s97
      %s114 = sphi 0, %s98
      %s122 = sphi 0, %s124
      %s125 = sphi 0, %s122
      %s126 = sphi 0, %s125
      %s142 = sphi 0, %s126
    $region4: #{tpu_custom_call.1} parent=1 // loop_header_branch
      %21 = sbr.rel (%p19) target = $region8
    $region5: #{tpu_custom_call.1} parent=1 // loop_body
      %s23 = ssub.s32 %s18, 1
      %s24 = ssub.s32 %s18, 2
      %s31 = sadd.s32 1, %s26
      %p32 = scmp.ge.s32.totalorder %s31, 2
      %s33 = scalar_select %p32, 0, %s31
      %s34 = sadd.s32 1, %s25
      %s35 = scalar_select %p32, %s34, %s25
      %p36 = scmp.ge.s32.totalorder %s35, 2
      %s37 = scalar_select %p36, 0, %s35
      %s38 = ssub.s32 %s25, %s37
      %s39 = ssub.s32 %s26, %s33
      %s40 = sor.u32 %s38, %s39
      %p41 = scmp.eq.s32.totalorder %s40, 0
      %s43 = sadd.s32 %s42, 1
      %s44 = scalar_select %p41, %s42, %s43
      %p47 = pneg %p41
      %p48 = scmp.eq.s32.totalorder %s18, 3
      %p49 = por %p47, %p48
      %p50 = scmp.ne.s32.totalorder %s42, %s45
      %p51 = scmp.eq.s32.totalorder %s18, 0
      %p52 = por %p50, %p51
      %p53 = scmp.ne.s32.totalorder %s42, %s45
      %p54 = scmp.eq.s32.totalorder %s23, 3
      %p55 = por %p53, %p54
      %p56 = scmp.ne.s32.totalorder %s45, %s46
      %p57 = scmp.eq.s32.totalorder %s23, 0
      %p58 = por %p56, %p57
      %p59 = scmp.ne.s32.totalorder %s45, %s46
      %p60 = scmp.eq.s32.totalorder %s24, 3
      %p61 = por %p59, %p60
      %p63 = scmp.ne.s32.totalorder %s46, %s62
      %p64 = scmp.eq.s32.totalorder %s24, 0
      %p65 = por %p63, %p64
      %s66 = ssub.s32 %s25, %s37
      %p67 = scmp.eq.s32.totalorder %s66, 0
      %s69 = sadd.s32 %s68, 1
      %s70 = scalar_select %p67, %s68, %s69
      %p73 = pneg %p67
      %p74 = scmp.eq.s32.totalorder %s18, 3
      %p75 = por %p73, %p74
      %p76 = scmp.ne.s32.totalorder %s68, %s71
      %p77 = scmp.eq.s32.totalorder %s18, 0
      %p78 = por %p76, %p77
      %p79 = scmp.ne.s32.totalorder %s68, %s71
      %p80 = scmp.eq.s32.totalorder %s23, 3
      %p81 = por %p79, %p80
      %p82 = scmp.ne.s32.totalorder %s71, %s72
      %p83 = scmp.eq.s32.totalorder %s23, 0
      %p84 = por %p82, %p83
      %p85 = scmp.ne.s32.totalorder %s71, %s72
      %p86 = scmp.eq.s32.totalorder %s24, 3
      %p87 = por %p85, %p86
      %p89 = scmp.ne.s32.totalorder %s72, %s88
      %p90 = scmp.eq.s32.totalorder %s24, 0
      %p91 = por %p89, %p90
      %s92 = ssub.s32 %s25, %s37
      %p93 = scmp.eq.s32.totalorder %s92, 0
      %s95 = sadd.s32 %s94, 1
      %s96 = scalar_select %p93, %s94, %s95
      %p99 = pneg %p93
      %p100 = scmp.eq.s32.totalorder %s18, 3
      %p101 = por %p99, %p100
      %p102 = scmp.ne.s32.totalorder %s94, %s97
      %p103 = scmp.eq.s32.totalorder %s18, 0
      %p104 = por %p102, %p103
      %p105 = scmp.ne.s32.totalorder %s94, %s97
      %p106 = scmp.eq.s32.totalorder %s23, 3
      %p107 = por %p105, %p106
      %p108 = scmp.ne.s32.totalorder %s97, %s98
      %p109 = scmp.eq.s32.totalorder %s23, 0
      %p110 = por %p108, %p109
      %p111 = scmp.ne.s32.totalorder %s97, %s98
      %p112 = scmp.eq.s32.totalorder %s24, 3
      %p113 = por %p111, %p112
      %p115 = scmp.ne.s32.totalorder %s98, %s114
      %p116 = scmp.eq.s32.totalorder %s24, 0
      %p117 = por %p115, %p116
      %s118 = ssub.s32 %s25, %s37
      %s119 = ssub.s32 %s26, %s33
      %s120 = sor.u32 %s118, %s119
      %p121 = scmp.eq.s32.totalorder %s120, 0
      %s123 = sadd.s32 %s122, 1
      %s124 = scalar_select %p121, %s122, %s123
      %p127 = pneg %p121
      %p128 = scmp.eq.s32.totalorder %s18, 3
      %p129 = por %p127, %p128
      %p130 = scmp.ne.s32.totalorder %s122, %s125
      %p131 = scmp.eq.s32.totalorder %s18, 0
      %p132 = por %p130, %p131
      %p133 = scmp.ne.s32.totalorder %s122, %s125
      %p134 = scmp.eq.s32.totalorder %s23, 3
      %p135 = por %p133, %p134
      %p136 = scmp.ne.s32.totalorder %s125, %s126
      %p137 = scmp.eq.s32.totalorder %s23, 0
      %p138 = por %p136, %p137
      %p139 = scmp.ne.s32.totalorder %s125, %s126
      %p140 = scmp.eq.s32.totalorder %s24, 3
      %p141 = por %p139, %p140
      %p143 = scmp.ne.s32.totalorder %s126, %s142
      %p144 = scmp.eq.s32.totalorder %s24, 0
      %p145 = por %p143, %p144
      %p146 = scmp.le.s32.totalorder 1, %s18
      %p147 = scmp.lt.s32.totalorder %s18, 5
      %p148 = pnand %p146, %p147
      %p149 = pneg %p148
      // Predicated region
      $region9: #{tpu_custom_call.1} parent=5 // pred_check
        _
      $region10: #{tpu_custom_call.1} parent=5 // pred_check_branch
        %151 = sbr.rel (%p148) target = $region12
      $region11: #{tpu_custom_call.1} parent=5 // pred_region
        %s152 = ssub.s32 %s18, 1
      $region12: #{tpu_custom_call.1} parent=5 // pred_fallthru
        _
      %p153 = scmp.lt.s32.totalorder %s18, 4
      // Predicated region
      $region13: #{tpu_custom_call.1} parent=5 // pred_check
        %p154 = pneg %p153
      $region14: #{tpu_custom_call.1} parent=5 // pred_check_branch
        %156 = sbr.rel (%p154) target = $region16
      $region15: #{tpu_custom_call.1} parent=5 // pred_region
        // Predicated region
        $region17: #{tpu_custom_call.1} parent=15 // pred_check
          %p157 = pneg %p52
        $region18: #{tpu_custom_call.1} parent=15 // pred_check_branch
          %159 = sbr.rel (%p157) target = $region20
        $region19: #{tpu_custom_call.1} parent=15 // pred_region
          #allocation10 [shape = 'u32[6]{0}', space=smem, size = 0x18, scoped, tag = 'DMA stride descriptor']
          %s160 = sand.u32 %s42, 1
          %s161 = scalar_lea.sflag [#allocation3], %s160
          %s162 = sand.u32 %s42, 1
          %s163 = smul.addr %s162, 256
          %s164 = scalar_lea.vmem [#allocation2], %s163
          %s165 = smul.u32 4, %s25
          %s167 = ssub.s32 4096, 4096
          %168 = vsyncadd %s161, %s167
          %s169 = smul.addr %s165, 48
          %s170 = sadd.s32 %s26, %s169
          %s171 = smul.addr %s170, 128
          %s172 = scalar_lea.hbm %s0, %s171
          %s174 = sshll.u32 1, 14
          %s175 = sxor.u32 4294967295, %s174
          %s177 = sld [smem:[#allocation0]]
          %s178 = sadd.s32 2, %s177
          %s180 = sshll.u32 7, 26
          %s181 = sxor.u32 4294967295, %s180
          %s182 = sand.u32 0, %s181
          %s183 = sshll.u32 %s178, 26
          %s184 = sor.u32 %s182, %s183
          %s185 = sshll.u32 %s164, 4
          %s186 = int_to_ptr.vmem [resolvable:$true] %s185
          %192 = sst [smem:[#allocation10]] 6144
          %s193 = scalar_lea.smem [#allocation10], 1
          %194 = sst [smem:[%s193]] 1024
          %s195 = scalar_lea.smem [#allocation10], 2
          %196 = sst [smem:[%s195]] 8
          %s197 = scalar_lea.smem [#allocation10], 3
          %198 = sst [smem:[%s197]] 256
          %s199 = scalar_lea.smem [#allocation10], 4
          %200 = sst [smem:[%s199]] 128
          %s201 = scalar_lea.smem [#allocation10], 5
          %202 = sst [smem:[%s201]] 8
          %204 = dma.general %s172, 4096, %s186, %s161, 131072, [#allocation10], %s184, 0
        $region20: #{tpu_custom_call.1} parent=15 // pred_fallthru
          _
        // Predicated region
        $region21: #{tpu_custom_call.1} parent=15 // pred_check
          %p205 = pneg %p78
        $region22: #{tpu_custom_call.1} parent=15 // pred_check_branch
          %207 = sbr.rel (%p205) target = $region24
        $region23: #{tpu_custom_call.1} parent=15 // pred_region
          #allocation12 [shape = 'u32[6]{0}', space=smem, size = 0x18, scoped, tag = 'DMA stride descriptor']
          %s208 = sand.u32 %s18, 1
          %s209 = scalar_lea.sflag [#allocation6], %s208
          %s210 = sand.u32 %s68, 1
          %s211 = smul.addr %s210, 512
          %s212 = scalar_lea.vmem [#allocation5], %s211
          %s213 = smul.u32 4, %s25
          %s215 = ssub.s32 8192, 8192
          %216 = vsyncadd %s209, %s215
          %s217 = smul.addr %s213, 48
          %s218 = sadd.s32 16, %s217
          %s219 = smul.addr %s218, 128
          %s220 = scalar_lea.hbm %s1, %s219
          %s222 = sshll.u32 1, 14
          %s223 = sxor.u32 4294967295, %s222
          %s225 = sld [smem:[#allocation0]]
          %s226 = sadd.s32 2, %s225
          %s228 = sshll.u32 7, 26
          %s229 = sxor.u32 4294967295, %s228
          %s230 = sand.u32 0, %s229
          %s231 = sshll.u32 %s226, 26
          %s232 = sor.u32 %s230, %s231
          %s233 = sshll.u32 %s212, 4
          %s234 = int_to_ptr.vmem [resolvable:$true] %s233
          %240 = sst [smem:[#allocation12]] 6144
          %s241 = scalar_lea.smem [#allocation12], 1
          %242 = sst [smem:[%s241]] 2048
          %s243 = scalar_lea.smem [#allocation12], 2
          %244 = sst [smem:[%s243]] 8
          %s245 = scalar_lea.smem [#allocation12], 3
          %246 = sst [smem:[%s245]] 256
          %s247 = scalar_lea.smem [#allocation12], 4
          %248 = sst [smem:[%s247]] 256
          %s249 = scalar_lea.smem [#allocation12], 5
          %250 = sst [smem:[%s249]] 16
          %252 = dma.general %s220, 8192, %s234, %s209, 131072, [#allocation12], %s232, 0
        $region24: #{tpu_custom_call.1} parent=15 // pred_fallthru
          _
        // Predicated region
        $region25: #{tpu_custom_call.1} parent=15 // pred_check
          %p253 = pneg %p104
        $region26: #{tpu_custom_call.1} parent=15 // pred_check_branch
          %255 = sbr.rel (%p253) target = $region28
        $region27: #{tpu_custom_call.1} parent=15 // pred_region
          #allocation14 [shape = 'u32[6]{0}', space=smem, size = 0x18, scoped, tag = 'DMA stride descriptor']
          %s256 = sand.u32 %s18, 1
          %s257 = scalar_lea.sflag [#allocation6], %s256
          %s258 = sand.u32 %s94, 1
          %s259 = smul.addr %s258, 512
          %s260 = scalar_lea.vmem [#allocation7], %s259
          %s261 = smul.u32 4, %s25
          %s263 = ssub.s32 8192, 8192
          %264 = vsyncadd %s257, %s263
          %s265 = smul.addr %s261, 48
          %s266 = sadd.s32 32, %s265
          %s267 = smul.addr %s266, 128
          %s268 = scalar_lea.hbm %s2, %s267
          %s270 = sshll.u32 1, 14
          %s271 = sxor.u32 4294967295, %s270
          %s273 = sld [smem:[#allocation0]]
          %s274 = sadd.s32 2, %s273
          %s276 = sshll.u32 7, 26
          %s277 = sxor.u32 4294967295, %s276
          %s278 = sand.u32 0, %s277
          %s279 = sshll.u32 %s274, 26
          %s280 = sor.u32 %s278, %s279
          %s281 = sshll.u32 %s260, 4
          %s282 = int_to_ptr.vmem [resolvable:$true] %s281
          %288 = sst [smem:[#allocation14]] 6144
          %s289 = scalar_lea.smem [#allocation14], 1
          %290 = sst [smem:[%s289]] 2048
          %s291 = scalar_lea.smem [#allocation14], 2
          %292 = sst [smem:[%s291]] 8
          %s293 = scalar_lea.smem [#allocation14], 3
          %294 = sst [smem:[%s293]] 256
          %s295 = scalar_lea.smem [#allocation14], 4
          %296 = sst [smem:[%s295]] 256
          %s297 = scalar_lea.smem [#allocation14], 5
          %298 = sst [smem:[%s297]] 16
          %300 = dma.general %s268, 8192, %s282, %s257, 131072, [#allocation14], %s280, 0
        $region28: #{tpu_custom_call.1} parent=15 // pred_fallthru
          _
      $region16: #{tpu_custom_call.1} parent=5 // pred_fallthru
        _
      %p301 = scmp.le.s32.totalorder 1, %s18
      %p302 = scmp.lt.s32.totalorder %s18, 5
      %p303 = pnand %p301, %p302
      %p304 = pneg %p303
      // Predicated region
      $region29: #{tpu_custom_call.1} parent=5 // pred_check
        _
      $region30: #{tpu_custom_call.1} parent=5 // pred_check_branch
        %306 = sbr.rel (%p303) target = $region32
      $region31: #{tpu_custom_call.1} parent=5 // pred_region
        %s307 = ssub.s32 %s18, 1
        %s308 = sand.u32 %s45, 1
        %s309 = scalar_lea.sflag [#allocation3], %s308
        %s310 = sand.u32 %s45, 1
        %s311 = smul.addr %s310, 256
        %s312 = scalar_lea.vmem [#allocation2], %s311
        // Predicated region
        $region33: #{tpu_custom_call.1} parent=31 // pred_check
          %p313 = pneg %p58
        $region34: #{tpu_custom_call.1} parent=31 // pred_check_branch
          %315 = sbr.rel (%p313) target = $region36
        $region35: #{tpu_custom_call.1} parent=31 // pred_region
          %316 = dma.done %s309, 4096
        $region36: #{tpu_custom_call.1} parent=31 // pred_fallthru
          _
        %s317 = sand.u32 %s23, 1
        %s318 = scalar_lea.sflag [#allocation6], %s317
        %s319 = sand.u32 %s71, 1
        %s320 = smul.addr %s319, 512
        %s321 = scalar_lea.vmem [#allocation5], %s320
        // Predicated region
        $region37: #{tpu_custom_call.1} parent=31 // pred_check
          %p322 = pneg %p84
        $region38: #{tpu_custom_call.1} parent=31 // pred_check_branch
          %324 = sbr.rel (%p322) target = $region40
        $region39: #{tpu_custom_call.1} parent=31 // pred_region
          %325 = dma.done %s318, 8192
        $region40: #{tpu_custom_call.1} parent=31 // pred_fallthru
          _
        %s326 = sand.u32 %s23, 1
        %s327 = scalar_lea.sflag [#allocation6], %s326
        %s328 = sand.u32 %s97, 1
        %s329 = smul.addr %s328, 512
        %s330 = scalar_lea.vmem [#allocation7], %s329
        // Predicated region
        $region41: #{tpu_custom_call.1} parent=31 // pred_check
          %p331 = pneg %p110
        $region42: #{tpu_custom_call.1} parent=31 // pred_check_branch
          %333 = sbr.rel (%p331) target = $region44
        $region43: #{tpu_custom_call.1} parent=31 // pred_region
          %334 = dma.done %s327, 8192
        $region44: #{tpu_custom_call.1} parent=31 // pred_fallthru
          _
        %s335 = sand.u32 %s45, 1
        %s336 = scalar_lea.sflag [#allocation3], %s335
        %s337 = sand.u32 %s45, 1
        %s338 = smul.addr %s337, 256
        %s339 = scalar_lea.vmem [#allocation2], %s338
        %p340 = pneg %p58
        %p341 = pneg %p55
        %s342 = sand.u32 %s23, 1
        %s343 = scalar_lea.sflag [#allocation6], %s342
        %s344 = sand.u32 %s71, 1
        %s345 = smul.addr %s344, 512
        %s346 = scalar_lea.vmem [#allocation5], %s345
        %p347 = pneg %p84
        %p348 = pneg %p81
        %s349 = sand.u32 %s23, 1
        %s350 = scalar_lea.sflag [#allocation6], %s349
        %s351 = sand.u32 %s97, 1
        %s352 = smul.addr %s351, 512
        %s353 = scalar_lea.vmem [#allocation7], %s352
        %p354 = pneg %p110
        %p355 = pneg %p107
        %p356 = pneg %p138
        %p357 = pneg %p135
        %s358 = sand.u32 %s125, 1
        %s359 = scalar_lea.sflag [#allocation4], %s358
        %s360 = sand.u32 %s125, 1
        %s361 = smul.addr %s360, 256
        %s362 = scalar_lea.vmem [#allocation8], %s361
        %s363 = smul.u32 4, %s27
        %s364 = smul.u32 4, %s27
        %s365 = smul.u32 4, %s27
        %s366 = smul.u32 4, %s27
        %v367 = vld [vmem:[%s312] sm:$0xff]
        %v368 = vld [vmem:[%s312 + $0x8] sm:$0xff]
        %v369 = vld [vmem:[%s312 + $0x10] sm:$0xff]
        %v370 = vld [vmem:[%s312 + $0x18] sm:$0xff]
        %v371 = vld [vmem:[%s312 + $0x20] sm:$0xff]
        %v372 = vld [vmem:[%s312 + $0x28] sm:$0xff]
        %v373 = vld [vmem:[%s312 + $0x30] sm:$0xff]
        %v374 = vld [vmem:[%s312 + $0x38] sm:$0xff]
        %v375 = vld [vmem:[%s312 + $0x40] sm:$0xff]
        %v376 = vld [vmem:[%s312 + $0x48] sm:$0xff]
        %v377 = vld [vmem:[%s312 + $0x50] sm:$0xff]
        %v378 = vld [vmem:[%s312 + $0x58] sm:$0xff]
        %v379 = vld [vmem:[%s312 + $0x60] sm:$0xff]
        %v380 = vld [vmem:[%s312 + $0x68] sm:$0xff]
        %v381 = vld [vmem:[%s312 + $0x70] sm:$0xff]
        %v382 = vld [vmem:[%s312 + $0x78] sm:$0xff]
        %v383 = vld [vmem:[%s312 + $0x80] sm:$0xff]
        %v384 = vld [vmem:[%s312 + $0x88] sm:$0xff]
        %v385 = vld [vmem:[%s312 + $0x90] sm:$0xff]
        %v386 = vld [vmem:[%s312 + $0x98] sm:$0xff]
        %v387 = vld [vmem:[%s312 + $0xa0] sm:$0xff]
        %v388 = vld [vmem:[%s312 + $0xa8] sm:$0xff]
        %v389 = vld [vmem:[%s312 + $0xb0] sm:$0xff]
        %v390 = vld [vmem:[%s312 + $0xb8] sm:$0xff]
        %v391 = vld [vmem:[%s312 + $0xc0] sm:$0xff]
        %v392 = vld [vmem:[%s312 + $0xc8] sm:$0xff]
        %v393 = vld [vmem:[%s312 + $0xd0] sm:$0xff]
        %v394 = vld [vmem:[%s312 + $0xd8] sm:$0xff]
        %v395 = vld [vmem:[%s312 + $0xe0] sm:$0xff]
        %v396 = vld [vmem:[%s312 + $0xe8] sm:$0xff]
        %v397 = vld [vmem:[%s312 + $0xf0] sm:$0xff]
        %v398 = vld [vmem:[%s312 + $0xf8] sm:$0xff]
        %v399 = vmul.f32 %v367, 0.18033688
        %v400 = vmul.f32 %v368, 0.18033688
        %v401 = vmul.f32 %v369, 0.18033688
        %v402 = vmul.f32 %v370, 0.18033688
        %v403 = vmul.f32 %v371, 0.18033688
        %v404 = vmul.f32 %v372, 0.18033688
        %v405 = vmul.f32 %v373, 0.18033688
        %v406 = vmul.f32 %v374, 0.18033688
        %v407 = vmul.f32 %v375, 0.18033688
        %v408 = vmul.f32 %v376, 0.18033688
        %v409 = vmul.f32 %v377, 0.18033688
        %v410 = vmul.f32 %v378, 0.18033688
        %v411 = vmul.f32 %v379, 0.18033688
        %v412 = vmul.f32 %v380, 0.18033688
        %v413 = vmul.f32 %v381, 0.18033688
        %v414 = vmul.f32 %v382, 0.18033688
        %v415 = vmul.f32 %v383, 0.18033688
        %v416 = vmul.f32 %v384, 0.18033688
        %v417 = vmul.f32 %v385, 0.18033688
        %v418 = vmul.f32 %v386, 0.18033688
        %v419 = vmul.f32 %v387, 0.18033688
        %v420 = vmul.f32 %v388, 0.18033688
        %v421 = vmul.f32 %v389, 0.18033688
        %v422 = vmul.f32 %v390, 0.18033688
        %v423 = vmul.f32 %v391, 0.18033688
        %v424 = vmul.f32 %v392, 0.18033688
        %v425 = vmul.f32 %v393, 0.18033688
        %v426 = vmul.f32 %v394, 0.18033688
        %v427 = vmul.f32 %v395, 0.18033688
        %v428 = vmul.f32 %v396, 0.18033688
        %v429 = vmul.f32 %v397, 0.18033688
        %v430 = vmul.f32 %v398, 0.18033688
        %v431 = vld [vmem:[%s321] sm:$0xff]
        %v432 = vld [vmem:[%s321 + $0x8] sm:$0xff]
        %v433 = vld [vmem:[%s321 + $0x10] sm:$0xff]
        %v434 = vld [vmem:[%s321 + $0x18] sm:$0xff]
        %v435 = vld [vmem:[%s321 + $0x20] sm:$0xff]
        %v436 = vld [vmem:[%s321 + $0x28] sm:$0xff]
        %v437 = vld [vmem:[%s321 + $0x30] sm:$0xff]
        %v438 = vld [vmem:[%s321 + $0x38] sm:$0xff]
        %v439 = vld [vmem:[%s321 + $0x40] sm:$0xff]
        %v440 = vld [vmem:[%s321 + $0x48] sm:$0xff]
        %v441 = vld [vmem:[%s321 + $0x50] sm:$0xff]
        %v442 = vld [vmem:[%s321 + $0x58] sm:$0xff]
        %v443 = vld [vmem:[%s321 + $0x60] sm:$0xff]
        %v444 = vld [vmem:[%s321 + $0x68] sm:$0xff]
        %v445 = vld [vmem:[%s321 + $0x70] sm:$0xff]
        %v446 = vld [vmem:[%s321 + $0x78] sm:$0xff]
        %v447 = vld [vmem:[%s321 + $0x80] sm:$0xff]
        %v448 = vld [vmem:[%s321 + $0x88] sm:$0xff]
        %v449 = vld [vmem:[%s321 + $0x90] sm:$0xff]
        %v450 = vld [vmem:[%s321 + $0x98] sm:$0xff]
        %v451 = vld [vmem:[%s321 + $0xa0] sm:$0xff]
        %v452 = vld [vmem:[%s321 + $0xa8] sm:$0xff]
        %v453 = vld [vmem:[%s321 + $0xb0] sm:$0xff]
        %v454 = vld [vmem:[%s321 + $0xb8] sm:$0xff]
        %v455 = vld [vmem:[%s321 + $0xc0] sm:$0xff]
        %v456 = vld [vmem:[%s321 + $0xc8] sm:$0xff]
        %v457 = vld [vmem:[%s321 + $0xd0] sm:$0xff]
        %v458 = vld [vmem:[%s321 + $0xd8] sm:$0xff]
        %v459 = vld [vmem:[%s321 + $0xe0] sm:$0xff]
        %v460 = vld [vmem:[%s321 + $0xe8] sm:$0xff]
        %v461 = vld [vmem:[%s321 + $0xf0] sm:$0xff]
        %v462 = vld [vmem:[%s321 + $0xf8] sm:$0xff]
        %v463 = vld [vmem:[%s321 + $0x100] sm:$0xff]
        %v464 = vld [vmem:[%s321 + $0x108] sm:$0xff]
        %v465 = vld [vmem:[%s321 + $0x110] sm:$0xff]
        %v466 = vld [vmem:[%s321 + $0x118] sm:$0xff]
        %v467 = vld [vmem:[%s321 + $0x120] sm:$0xff]
        %v468 = vld [vmem:[%s321 + $0x128] sm:$0xff]
        %v469 = vld [vmem:[%s321 + $0x130] sm:$0xff]
        %v470 = vld [vmem:[%s321 + $0x138] sm:$0xff]
        %v471 = vld [vmem:[%s321 + $0x140] sm:$0xff]
        %v472 = vld [vmem:[%s321 + $0x148] sm:$0xff]
        %v473 = vld [vmem:[%s321 + $0x150] sm:$0xff]
        %v474 = vld [vmem:[%s321 + $0x158] sm:$0xff]
        %v475 = vld [vmem:[%s321 + $0x160] sm:$0xff]
        %v476 = vld [vmem:[%s321 + $0x168] sm:$0xff]
        %v477 = vld [vmem:[%s321 + $0x170] sm:$0xff]
        %v478 = vld [vmem:[%s321 + $0x178] sm:$0xff]
        %v479 = vld [vmem:[%s321 + $0x180] sm:$0xff]
        %v480 = vld [vmem:[%s321 + $0x188] sm:$0xff]
        %v481 = vld [vmem:[%s321 + $0x190] sm:$0xff]
        %v482 = vld [vmem:[%s321 + $0x198] sm:$0xff]
        %v483 = vld [vmem:[%s321 + $0x1a0] sm:$0xff]
        %v484 = vld [vmem:[%s321 + $0x1a8] sm:$0xff]
        %v485 = vld [vmem:[%s321 + $0x1b0] sm:$0xff]
        %v486 = vld [vmem:[%s321 + $0x1b8] sm:$0xff]
        %v487 = vld [vmem:[%s321 + $0x1c0] sm:$0xff]
        %v488 = vld [vmem:[%s321 + $0x1c8] sm:$0xff]
        %v489 = vld [vmem:[%s321 + $0x1d0] sm:$0xff]
        %v490 = vld [vmem:[%s321 + $0x1d8] sm:$0xff]
        %v491 = vld [vmem:[%s321 + $0x1e0] sm:$0xff]
        %v492 = vld [vmem:[%s321 + $0x1e8] sm:$0xff]
        %v493 = vld [vmem:[%s321 + $0x1f0] sm:$0xff]
        %v494 = vld [vmem:[%s321 + $0x1f8] sm:$0xff]
        %v495 = vld [vmem:[%s330] sm:$0xff]
        %v496 = vld [vmem:[%s330 + $0x8] sm:$0xff]
        %v497 = vld [vmem:[%s330 + $0x10] sm:$0xff]
        %v498 = vld [vmem:[%s330 + $0x18] sm:$0xff]
        %v499 = vld [vmem:[%s330 + $0x20] sm:$0xff]
        %v500 = vld [vmem:[%s330 + $0x28] sm:$0xff]
        %v501 = vld [vmem:[%s330 + $0x30] sm:$0xff]
        %v502 = vld [vmem:[%s330 + $0x38] sm:$0xff]
        %v503 = vld [vmem:[%s330 + $0x40] sm:$0xff]
        %v504 = vld [vmem:[%s330 + $0x48] sm:$0xff]
        %v505 = vld [vmem:[%s330 + $0x50] sm:$0xff]
        %v506 = vld [vmem:[%s330 + $0x58] sm:$0xff]
        %v507 = vld [vmem:[%s330 + $0x60] sm:$0xff]
        %v508 = vld [vmem:[%s330 + $0x68] sm:$0xff]
        %v509 = vld [vmem:[%s330 + $0x70] sm:$0xff]
        %v510 = vld [vmem:[%s330 + $0x78] sm:$0xff]
        %v511 = vld [vmem:[%s330 + $0x80] sm:$0xff]
        %v512 = vld [vmem:[%s330 + $0x88] sm:$0xff]
        %v513 = vld [vmem:[%s330 + $0x90] sm:$0xff]
        %v514 = vld [vmem:[%s330 + $0x98] sm:$0xff]
        %v515 = vld [vmem:[%s330 + $0xa0] sm:$0xff]
        %v516 = vld [vmem:[%s330 + $0xa8] sm:$0xff]
        %v517 = vld [vmem:[%s330 + $0xb0] sm:$0xff]
        %v518 = vld [vmem:[%s330 + $0xb8] sm:$0xff]
        %v519 = vld [vmem:[%s330 + $0xc0] sm:$0xff]
        %v520 = vld [vmem:[%s330 + $0xc8] sm:$0xff]
        %v521 = vld [vmem:[%s330 + $0xd0] sm:$0xff]
        %v522 = vld [vmem:[%s330 + $0xd8] sm:$0xff]
        %v523 = vld [vmem:[%s330 + $0xe0] sm:$0xff]
        %v524 = vld [vmem:[%s330 + $0xe8] sm:$0xff]
        %v525 = vld [vmem:[%s330 + $0xf0] sm:$0xff]
        %v526 = vld [vmem:[%s330 + $0xf8] sm:$0xff]
        %v527 = vld [vmem:[%s330 + $0x100] sm:$0xff]
        %v528 = vld [vmem:[%s330 + $0x108] sm:$0xff]
        %v529 = vld [vmem:[%s330 + $0x110] sm:$0xff]
        %v530 = vld [vmem:[%s330 + $0x118] sm:$0xff]
        %v531 = vld [vmem:[%s330 + $0x120] sm:$0xff]
        %v532 = vld [vmem:[%s330 + $0x128] sm:$0xff]
        %v533 = vld [vmem:[%s330 + $0x130] sm:$0xff]
        %v534 = vld [vmem:[%s330 + $0x138] sm:$0xff]
        %v535 = vld [vmem:[%s330 + $0x140] sm:$0xff]
        %v536 = vld [vmem:[%s330 + $0x148] sm:$0xff]
        %v537 = vld [vmem:[%s330 + $0x150] sm:$0xff]
        %v538 = vld [vmem:[%s330 + $0x158] sm:$0xff]
        %v539 = vld [vmem:[%s330 + $0x160] sm:$0xff]
        %v540 = vld [vmem:[%s330 + $0x168] sm:$0xff]
        %v541 = vld [vmem:[%s330 + $0x170] sm:$0xff]
        %v542 = vld [vmem:[%s330 + $0x178] sm:$0xff]
        %v543 = vld [vmem:[%s330 + $0x180] sm:$0xff]
        %v544 = vld [vmem:[%s330 + $0x188] sm:$0xff]
        %v545 = vld [vmem:[%s330 + $0x190] sm:$0xff]
        %v546 = vld [vmem:[%s330 + $0x198] sm:$0xff]
        %v547 = vld [vmem:[%s330 + $0x1a0] sm:$0xff]
        %v548 = vld [vmem:[%s330 + $0x1a8] sm:$0xff]
        %v549 = vld [vmem:[%s330 + $0x1b0] sm:$0xff]
        %v550 = vld [vmem:[%s330 + $0x1b8] sm:$0xff]
        %v551 = vld [vmem:[%s330 + $0x1c0] sm:$0xff]
        %v552 = vld [vmem:[%s330 + $0x1c8] sm:$0xff]
        %v553 = vld [vmem:[%s330 + $0x1d0] sm:$0xff]
        %v554 = vld [vmem:[%s330 + $0x1d8] sm:$0xff]
        %v555 = vld [vmem:[%s330 + $0x1e0] sm:$0xff]
        %v556 = vld [vmem:[%s330 + $0x1e8] sm:$0xff]
        %v557 = vld [vmem:[%s330 + $0x1f0] sm:$0xff]
        %v558 = vld [vmem:[%s330 + $0x1f8] sm:$0xff]
        %559 = vxpose.xlu0.b32.start [1/16] %v399, 128
        %560 = vxpose.xlu0.b32.cont [2/16] %v400, 128
        %561 = vxpose.xlu0.b32.cont [3/16] %v401, 128
        %562 = vxpose.xlu0.b32.cont [4/16] %v402, 128
        %563 = vxpose.xlu0.b32.cont [5/16] %v403, 128
        %564 = vxpose.xlu0.b32.cont [6/16] %v404, 128
        %565 = vxpose.xlu0.b32.cont [7/16] %v405, 128
        %566 = vxpose.xlu0.b32.cont [8/16] %v406, 128
        %567 = vxpose.xlu0.b32.cont [9/16] 0.0, 128
        %568 = vxpose.xlu0.b32.cont [10/16] 0.0, 128
        %569 = vxpose.xlu0.b32.cont [11/16] 0.0, 128
        %570 = vxpose.xlu0.b32.cont [12/16] 0.0, 128
        %571 = vxpose.xlu0.b32.cont [13/16] 0.0, 128
        %572 = vxpose.xlu0.b32.cont [14/16] 0.0, 128
        %573 = vxpose.xlu0.b32.cont [15/16] 0.0, 128
        %574 = vxpose.xlu0.b32.end [16/16] 0.0, 128
        %v575 = vpop.trf.xlu0
        %v576 = vpop.trf.xlu0
        %v577 = vpop.trf.xlu0
        %v578 = vpop.trf.xlu0
        %v579 = vpop.trf.xlu0
        %v580 = vpop.trf.xlu0
        %v581 = vpop.trf.xlu0
        %v582 = vpop.trf.xlu0
        %v583 = vpop.trf.xlu0
        %v584 = vpop.trf.xlu0
        %v585 = vpop.trf.xlu0
        %v586 = vpop.trf.xlu0
        %v587 = vpop.trf.xlu0
        %v588 = vpop.trf.xlu0
        %v589 = vpop.trf.xlu0
        %v590 = vpop.trf.xlu0
        %vm591 = vcmask 523264
        %v593 = vsel %vm591, %v575, 0
        %v596 = vsel %vm591, %v576, 0
        %v599 = vsel %vm591, %v577, 0
        %v602 = vsel %vm591, %v578, 0
        %v605 = vsel %vm591, %v579, 0
        %v608 = vsel %vm591, %v580, 0
        %v611 = vsel %vm591, %v581, 0
        %v614 = vsel %vm591, %v582, 0
        %v617 = vsel %vm591, %v583, 0
        %v620 = vsel %vm591, %v584, 0
        %v623 = vsel %vm591, %v585, 0
        %v626 = vsel %vm591, %v586, 0
        %v629 = vsel %vm591, %v587, 0
        %v632 = vsel %vm591, %v588, 0
        %v635 = vsel %vm591, %v589, 0
        %v638 = vsel %vm591, %v590, 0
        %640 = vmatprep.subr.mxu0 0.0
        %641 = vmatpush1.msra.mxu0 0.0
        %642 = vmatprep.subr.mxu0 0.0
        %643 = vmatpush1.msra.mxu0 0.0
        %644 = vmatprep.subr.mxu0 0.0
        %645 = vmatpush1.msra.mxu0 0.0
        %646 = vmatprep.subr.mxu0 0.0
        %647 = vmatpush1.msra.mxu0 0.0
        %648 = vmatprep.subr.mxu0 0.0
        %649 = vmatpush1.msra.mxu0 0.0
        %650 = vmatprep.subr.mxu0 0.0
        %651 = vmatpush1.msra.mxu0 0.0
        %652 = vmatprep.subr.mxu0 0.0
        %653 = vmatpush1.msra.mxu0 0.0
        %654 = vmatprep.subr.mxu0 0.0
        %655 = vmatpush1.msra.mxu0 0.0
        %656 = vmatprep.subr.mxu0 %v446
        %657 = vmatpush1.msra.mxu0 %v445
        %658 = vmatprep.subr.mxu0 %v444
        %659 = vmatpush1.msra.mxu0 %v443
        %660 = vmatprep.subr.mxu0 %v442
        %661 = vmatpush1.msra.mxu0 %v441
        %662 = vmatprep.subr.mxu0 %v440
        %663 = vmatpush1.msra.mxu0 %v439
        %664 = vmatprep.subr.mxu0 %v438
        %665 = vmatpush1.msra.mxu0 %v437
        %666 = vmatprep.subr.mxu0 %v436
        %667 = vmatpush1.msra.mxu0 %v435
        %668 = vmatprep.subr.mxu0 %v434
        %669 = vmatpush1.msra.mxu0 %v433
        %670 = vmatprep.subr.mxu0 %v432
        %671 = vmatpush1.msra.mxu0 %v431
        %672 = vmatprep.subr.mxu0 0.0
        %673 = vmatpush2.msra.mxu0 0.0
        %674 = vmatprep.subr.mxu0 0.0
        %675 = vmatpush2.msra.mxu0 0.0
        %676 = vmatprep.subr.mxu0 0.0
        %677 = vmatpush2.msra.mxu0 0.0
        %678 = vmatprep.subr.mxu0 0.0
        %679 = vmatpush2.msra.mxu0 0.0
        %680 = vmatprep.subr.mxu0 0.0
        %681 = vmatpush2.msra.mxu0 0.0
        %682 = vmatprep.subr.mxu0 0.0
        %683 = vmatpush2.msra.mxu0 0.0
        %684 = vmatprep.subr.mxu0 0.0
        %685 = vmatpush2.msra.mxu0 0.0
        %686 = vmatprep.subr.mxu0 0.0
        %687 = vmatpush2.msra.mxu0 0.0
        %688 = vmatprep.subr.mxu0 0.0
        %689 = vmatpush2.msra.mxu0 0.0
        %690 = vmatprep.subr.mxu0 0.0
        %691 = vmatpush2.msra.mxu0 0.0
        %692 = vmatprep.subr.mxu0 0.0
        %693 = vmatpush2.msra.mxu0 0.0
        %694 = vmatprep.subr.mxu0 0.0
        %695 = vmatpush2.msra.mxu0 0.0
        %696 = vmatprep.subr.mxu0 0.0
        %697 = vmatpush2.msra.mxu0 0.0
        %698 = vmatprep.subr.mxu0 0.0
        %699 = vmatpush2.msra.mxu0 0.0
        %700 = vmatprep.subr.mxu0 0.0
        %701 = vmatpush2.msra.mxu0 0.0
        %702 = vmatprep.subr.mxu0 0.0
        %703 = vmatpush2.msra.mxu0 0.0
        %704 = vmatprep.mubr.f32.mxu0 0.0
        %705 = vmatmul.mubr.f32.gmra.mxu0 %v593
        %v706 = vpop.f32.mrf.mxu0
        %v707 = vadd.f32 0.0, %v706
        %v708 = vpop.f32.mrf.mxu0
        %v709 = vadd.f32 0.0, %v708
        %710 = vmatprep.mubr.f32.mxu0 0.0
        %711 = vmatmul.mubr.f32.gmra.mxu0 %v596
        %v712 = vpop.f32.mrf.mxu0
        %v713 = vadd.f32 0.0, %v712
        %v714 = vpop.f32.mrf.mxu0
        %v715 = vadd.f32 0.0, %v714
        %716 = vmatprep.mubr.f32.mxu0 0.0
        %717 = vmatmul.mubr.f32.gmra.mxu0 %v599
        %v718 = vpop.f32.mrf.mxu0
        %v719 = vadd.f32 0.0, %v718
        %v720 = vpop.f32.mrf.mxu0
        %v721 = vadd.f32 0.0, %v720
        %722 = vmatprep.mubr.f32.mxu0 0.0
        %723 = vmatmul.mubr.f32.gmra.mxu0 %v602
        %v724 = vpop.f32.mrf.mxu0
        %v725 = vadd.f32 0.0, %v724
        %v726 = vpop.f32.mrf.mxu0
        %v727 = vadd.f32 0.0, %v726
        %728 = vmatprep.mubr.f32.mxu0 0.0
        %729 = vmatmul.mubr.f32.gmra.mxu0 %v605
        %v730 = vpop.f32.mrf.mxu0
        %v731 = vadd.f32 0.0, %v730
        %v732 = vpop.f32.mrf.mxu0
        %v733 = vadd.f32 0.0, %v732
        %734 = vmatprep.mubr.f32.mxu0 0.0
        %735 = vmatmul.mubr.f32.gmra.mxu0 %v608
        %v736 = vpop.f32.mrf.mxu0
        %v737 = vadd.f32 0.0, %v736
        %v738 = vpop.f32.mrf.mxu0
        %v739 = vadd.f32 0.0, %v738
        %740 = vmatprep.mubr.f32.mxu0 0.0
        %741 = vmatmul.mubr.f32.gmra.mxu0 %v611
        %v742 = vpop.f32.mrf.mxu0
        %v743 = vadd.f32 0.0, %v742
        %v744 = vpop.f32.mrf.mxu0
        %v745 = vadd.f32 0.0, %v744
        %746 = vmatprep.mubr.f32.mxu0 0.0
        %747 = vmatmul.mubr.f32.gmra.mxu0 %v614
        %v748 = vpop.f32.mrf.mxu0
        %v749 = vadd.f32 0.0, %v748
        %v750 = vpop.f32.mrf.mxu0
        %v751 = vadd.f32 0.0, %v750
        %752 = vmatprep.mubr.f32.mxu0 0.0
        %753 = vmatmul.mubr.f32.gmra.mxu0 %v617
        %v754 = vpop.f32.mrf.mxu0
        %v755 = vadd.f32 0.0, %v754
        %v756 = vpop.f32.mrf.mxu0
        %v757 = vadd.f32 0.0, %v756
        %758 = vmatprep.mubr.f32.mxu0 0.0
        %759 = vmatmul.mubr.f32.gmra.mxu0 %v620
        %v760 = vpop.f32.mrf.mxu0
        %v761 = vadd.f32 0.0, %v760
        %v762 = vpop.f32.mrf.mxu0
        %v763 = vadd.f32 0.0, %v762
        %764 = vmatprep.mubr.f32.mxu0 0.0
        %765 = vmatmul.mubr.f32.gmra.mxu0 %v623
        %v766 = vpop.f32.mrf.mxu0
        %v767 = vadd.f32 0.0, %v766
        %v768 = vpop.f32.mrf.mxu0
        %v769 = vadd.f32 0.0, %v768
        %770 = vmatprep.mubr.f32.mxu0 0.0
        %771 = vmatmul.mubr.f32.gmra.mxu0 %v626
        %v772 = vpop.f32.mrf.mxu0
        %v773 = vadd.f32 0.0, %v772
        %v774 = vpop.f32.mrf.mxu0
        %v775 = vadd.f32 0.0, %v774
        %776 = vmatprep.mubr.f32.mxu0 0.0
        %777 = vmatmul.mubr.f32.gmra.mxu0 %v629
        %v778 = vpop.f32.mrf.mxu0
        %v779 = vadd.f32 0.0, %v778
        %v780 = vpop.f32.mrf.mxu0
        %v781 = vadd.f32 0.0, %v780
        %782 = vmatprep.mubr.f32.mxu0 0.0
        %783 = vmatmul.mubr.f32.gmra.mxu0 %v632
        %v784 = vpop.f32.mrf.mxu0
        %v785 = vadd.f32 0.0, %v784
        %v786 = vpop.f32.mrf.mxu0
        %v787 = vadd.f32 0.0, %v786
        %788 = vmatprep.mubr.f32.mxu0 0.0
        %789 = vmatmul.mubr.f32.gmra.mxu0 %v635
        %v790 = vpop.f32.mrf.mxu0
        %v791 = vadd.f32 0.0, %v790
        %v792 = vpop.f32.mrf.mxu0
        %v793 = vadd.f32 0.0, %v792
        %794 = vmatprep.mubr.f32.mxu0 0.0
        %795 = vmatmul.mubr.f32.gmra.mxu0 %v638
        %v796 = vpop.f32.mrf.mxu0
        %v797 = vadd.f32 0.0, %v796
        %v798 = vpop.f32.mrf.mxu0
        %v799 = vadd.f32 0.0, %v798
        %800 = vdwg.mxu0
        %801 = vxpose.xlu0.b32.start [1/16] %v407, 128
        %802 = vxpose.xlu0.b32.cont [2/16] %v408, 128
        %803 = vxpose.xlu0.b32.cont [3/16] %v409, 128
        %804 = vxpose.xlu0.b32.cont [4/16] %v410, 128
        %805 = vxpose.xlu0.b32.cont [5/16] %v411, 128
        %806 = vxpose.xlu0.b32.cont [6/16] %v412, 128
        %807 = vxpose.xlu0.b32.cont [7/16] %v413, 128
        %808 = vxpose.xlu0.b32.cont [8/16] %v414, 128
        %809 = vxpose.xlu0.b32.cont [9/16] 0.0, 128
        %810 = vxpose.xlu0.b32.cont [10/16] 0.0, 128
        %811 = vxpose.xlu0.b32.cont [11/16] 0.0, 128
        %812 = vxpose.xlu0.b32.cont [12/16] 0.0, 128
        %813 = vxpose.xlu0.b32.cont [13/16] 0.0, 128
        %814 = vxpose.xlu0.b32.cont [14/16] 0.0, 128
        %815 = vxpose.xlu0.b32.cont [15/16] 0.0, 128
        %816 = vxpose.xlu0.b32.end [16/16] 0.0, 128
        %v817 = vpop.trf.xlu0
        %v818 = vpop.trf.xlu0
        %v819 = vpop.trf.xlu0
        %v820 = vpop.trf.xlu0
        %v821 = vpop.trf.xlu0
        %v822 = vpop.trf.xlu0
        %v823 = vpop.trf.xlu0
        %v824 = vpop.trf.xlu0
        %v825 = vpop.trf.xlu0
        %v826 = vpop.trf.xlu0
        %v827 = vpop.trf.xlu0
        %v828 = vpop.trf.xlu0
        %v829 = vpop.trf.xlu0
        %v830 = vpop.trf.xlu0
        %v831 = vpop.trf.xlu0
        %v832 = vpop.trf.xlu0
        %v834 = vsel %vm591, %v817, 0
        %v837 = vsel %vm591, %v818, 0
        %v840 = vsel %vm591, %v819, 0
        %v843 = vsel %vm591, %v820, 0
        %v846 = vsel %vm591, %v821, 0
        %v849 = vsel %vm591, %v822, 0
        %v852 = vsel %vm591, %v823, 0
        %v855 = vsel %vm591, %v824, 0
        %v858 = vsel %vm591, %v825, 0
        %v861 = vsel %vm591, %v826, 0
        %v864 = vsel %vm591, %v827, 0
        %v867 = vsel %vm591, %v828, 0
        %v870 = vsel %vm591, %v829, 0
        %v873 = vsel %vm591, %v830, 0
        %v876 = vsel %vm591, %v831, 0
        %v879 = vsel %vm591, %v832, 0
        %881 = vmatprep.subr.mxu0 0.0
        %882 = vmatpush1.msra.mxu0 0.0
        %883 = vmatprep.subr.mxu0 0.0
        %884 = vmatpush1.msra.mxu0 0.0
        %885 = vmatprep.subr.mxu0 0.0
        %886 = vmatpush1.msra.mxu0 0.0
        %887 = vmatprep.subr.mxu0 0.0
        %888 = vmatpush1.msra.mxu0 0.0
        %889 = vmatprep.subr.mxu0 0.0
        %890 = vmatpush1.msra.mxu0 0.0
        %891 = vmatprep.subr.mxu0 0.0
        %892 = vmatpush1.msra.mxu0 0.0
        %893 = vmatprep.subr.mxu0 0.0
        %894 = vmatpush1.msra.mxu0 0.0
        %895 = vmatprep.subr.mxu0 0.0
        %896 = vmatpush1.msra.mxu0 0.0
        %897 = vmatprep.subr.mxu0 %v462
        %898 = vmatpush1.msra.mxu0 %v461
        %899 = vmatprep.subr.mxu0 %v460
        %900 = vmatpush1.msra.mxu0 %v459
        %901 = vmatprep.subr.mxu0 %v458
        %902 = vmatpush1.msra.mxu0 %v457
        %903 = vmatprep.subr.mxu0 %v456
        %904 = vmatpush1.msra.mxu0 %v455
        %905 = vmatprep.subr.mxu0 %v454
        %906 = vmatpush1.msra.mxu0 %v453
        %907 = vmatprep.subr.mxu0 %v452
        %908 = vmatpush1.msra.mxu0 %v451
        %909 = vmatprep.subr.mxu0 %v450
        %910 = vmatpush1.msra.mxu0 %v449
        %911 = vmatprep.subr.mxu0 %v448
        %912 = vmatpush1.msra.mxu0 %v447
        %913 = vmatprep.subr.mxu0 0.0
        %914 = vmatpush2.msra.mxu0 0.0
        %915 = vmatprep.subr.mxu0 0.0
        %916 = vmatpush2.msra.mxu0 0.0
        %917 = vmatprep.subr.mxu0 0.0
        %918 = vmatpush2.msra.mxu0 0.0
        %919 = vmatprep.subr.mxu0 0.0
        %920 = vmatpush2.msra.mxu0 0.0
        %921 = vmatprep.subr.mxu0 0.0
        %922 = vmatpush2.msra.mxu0 0.0
        %923 = vmatprep.subr.mxu0 0.0
        %924 = vmatpush2.msra.mxu0 0.0
        %925 = vmatprep.subr.mxu0 0.0
        %926 = vmatpush2.msra.mxu0 0.0
        %927 = vmatprep.subr.mxu0 0.0
        %928 = vmatpush2.msra.mxu0 0.0
        %929 = vmatprep.subr.mxu0 0.0
        %930 = vmatpush2.msra.mxu0 0.0
        %931 = vmatprep.subr.mxu0 0.0
        %932 = vmatpush2.msra.mxu0 0.0
        %933 = vmatprep.subr.mxu0 0.0
        %934 = vmatpush2.msra.mxu0 0.0
        %935 = vmatprep.subr.mxu0 0.0
        %936 = vmatpush2.msra.mxu0 0.0
        %937 = vmatprep.subr.mxu0 0.0
        %938 = vmatpush2.msra.mxu0 0.0
        %939 = vmatprep.subr.mxu0 0.0
        %940 = vmatpush2.msra.mxu0 0.0
        %941 = vmatprep.subr.mxu0 0.0
        %942 = vmatpush2.msra.mxu0 0.0
        %943 = vmatprep.subr.mxu0 0.0
        %944 = vmatpush2.msra.mxu0 0.0
        %945 = vmatprep.mubr.f32.mxu0 0.0
        %946 = vmatmul.mubr.f32.gmra.mxu0 %v834
        %v947 = vpop.f32.mrf.mxu0
        %v948 = vadd.f32 0.0, %v947
        %v949 = vpop.f32.mrf.mxu0
        %v950 = vadd.f32 0.0, %v949
        %951 = vmatprep.mubr.f32.mxu0 0.0
        %952 = vmatmul.mubr.f32.gmra.mxu0 %v837
        %v953 = vpop.f32.mrf.mxu0
        %v954 = vadd.f32 0.0, %v953
        %v955 = vpop.f32.mrf.mxu0
        %v956 = vadd.f32 0.0, %v955
        %957 = vmatprep.mubr.f32.mxu0 0.0
        %958 = vmatmul.mubr.f32.gmra.mxu0 %v840
        %v959 = vpop.f32.mrf.mxu0
        %v960 = vadd.f32 0.0, %v959
        %v961 = vpop.f32.mrf.mxu0
        %v962 = vadd.f32 0.0, %v961
        %963 = vmatprep.mubr.f32.mxu0 0.0
        %964 = vmatmul.mubr.f32.gmra.mxu0 %v843
        %v965 = vpop.f32.mrf.mxu0
        %v966 = vadd.f32 0.0, %v965
        %v967 = vpop.f32.mrf.mxu0
        %v968 = vadd.f32 0.0, %v967
        %969 = vmatprep.mubr.f32.mxu0 0.0
        %970 = vmatmul.mubr.f32.gmra.mxu0 %v846
        %v971 = vpop.f32.mrf.mxu0
        %v972 = vadd.f32 0.0, %v971
        %v973 = vpop.f32.mrf.mxu0
        %v974 = vadd.f32 0.0, %v973
        %975 = vmatprep.mubr.f32.mxu0 0.0
        %976 = vmatmul.mubr.f32.gmra.mxu0 %v849
        %v977 = vpop.f32.mrf.mxu0
        %v978 = vadd.f32 0.0, %v977
        %v979 = vpop.f32.mrf.mxu0
        %v980 = vadd.f32 0.0, %v979
        %981 = vmatprep.mubr.f32.mxu0 0.0
        %982 = vmatmul.mubr.f32.gmra.mxu0 %v852
        %v983 = vpop.f32.mrf.mxu0
        %v984 = vadd.f32 0.0, %v983
        %v985 = vpop.f32.mrf.mxu0
        %v986 = vadd.f32 0.0, %v985
        %987 = vmatprep.mubr.f32.mxu0 0.0
        %988 = vmatmul.mubr.f32.gmra.mxu0 %v855
        %v989 = vpop.f32.mrf.mxu0
        %v990 = vadd.f32 0.0, %v989
        %v991 = vpop.f32.mrf.mxu0
        %v992 = vadd.f32 0.0, %v991
        %993 = vmatprep.mubr.f32.mxu0 0.0
        %994 = vmatmul.mubr.f32.gmra.mxu0 %v858
        %v995 = vpop.f32.mrf.mxu0
        %v996 = vadd.f32 0.0, %v995
        %v997 = vpop.f32.mrf.mxu0
        %v998 = vadd.f32 0.0, %v997
        %999 = vmatprep.mubr.f32.mxu0 0.0
        %1000 = vmatmul.mubr.f32.gmra.mxu0 %v861
        %v1001 = vpop.f32.mrf.mxu0
        %v1002 = vadd.f32 0.0, %v1001
        %v1003 = vpop.f32.mrf.mxu0
        %v1004 = vadd.f32 0.0, %v1003
        %1005 = vmatprep.mubr.f32.mxu0 0.0
        %1006 = vmatmul.mubr.f32.gmra.mxu0 %v864
        %v1007 = vpop.f32.mrf.mxu0
        %v1008 = vadd.f32 0.0, %v1007
        %v1009 = vpop.f32.mrf.mxu0
        %v1010 = vadd.f32 0.0, %v1009
        %1011 = vmatprep.mubr.f32.mxu0 0.0
        %1012 = vmatmul.mubr.f32.gmra.mxu0 %v867
        %v1013 = vpop.f32.mrf.mxu0
        %v1014 = vadd.f32 0.0, %v1013
        %v1015 = vpop.f32.mrf.mxu0
        %v1016 = vadd.f32 0.0, %v1015
        %1017 = vmatprep.mubr.f32.mxu0 0.0
        %1018 = vmatmul.mubr.f32.gmra.mxu0 %v870
        %v1019 = vpop.f32.mrf.mxu0
        %v1020 = vadd.f32 0.0, %v1019
        %v1021 = vpop.f32.mrf.mxu0
        %v1022 = vadd.f32 0.0, %v1021
        %1023 = vmatprep.mubr.f32.mxu0 0.0
        %1024 = vmatmul.mubr.f32.gmra.mxu0 %v873
        %v1025 = vpop.f32.mrf.mxu0
        %v1026 = vadd.f32 0.0, %v1025
        %v1027 = vpop.f32.mrf.mxu0
        %v1028 = vadd.f32 0.0, %v1027
        %1029 = vmatprep.mubr.f32.mxu0 0.0
        %1030 = vmatmul.mubr.f32.gmra.mxu0 %v876
        %v1031 = vpop.f32.mrf.mxu0
        %v1032 = vadd.f32 0.0, %v1031
        %v1033 = vpop.f32.mrf.mxu0
        %v1034 = vadd.f32 0.0, %v1033
        %1035 = vmatprep.mubr.f32.mxu0 0.0
        %1036 = vmatmul.mubr.f32.gmra.mxu0 %v879
        %v1037 = vpop.f32.mrf.mxu0
        %v1038 = vadd.f32 0.0, %v1037
        %v1039 = vpop.f32.mrf.mxu0
        %v1040 = vadd.f32 0.0, %v1039
        %1041 = vdwg.mxu0
        %1042 = vxpose.xlu0.b32.start [1/16] %v415, 128
        %1043 = vxpose.xlu0.b32.cont [2/16] %v416, 128
        %1044 = vxpose.xlu0.b32.cont [3/16] %v417, 128
        %1045 = vxpose.xlu0.b32.cont [4/16] %v418, 128
        %1046 = vxpose.xlu0.b32.cont [5/16] %v419, 128
        %1047 = vxpose.xlu0.b32.cont [6/16] %v420, 128
        %1048 = vxpose.xlu0.b32.cont [7/16] %v421, 128
        %1049 = vxpose.xlu0.b32.cont [8/16] %v422, 128
        %1050 = vxpose.xlu0.b32.cont [9/16] 0.0, 128
        %1051 = vxpose.xlu0.b32.cont [10/16] 0.0, 128
        %1052 = vxpose.xlu0.b32.cont [11/16] 0.0, 128
        %1053 = vxpose.xlu0.b32.cont [12/16] 0.0, 128
        %1054 = vxpose.xlu0.b32.cont [13/16] 0.0, 128
        %1055 = vxpose.xlu0.b32.cont [14/16] 0.0, 128
        %1056 = vxpose.xlu0.b32.cont [15/16] 0.0, 128
        %1057 = vxpose.xlu0.b32.end [16/16] 0.0, 128
        %v1058 = vpop.trf.xlu0
        %v1059 = vpop.trf.xlu0
        %v1060 = vpop.trf.xlu0
        %v1061 = vpop.trf.xlu0
        %v1062 = vpop.trf.xlu0
        %v1063 = vpop.trf.xlu0
        %v1064 = vpop.trf.xlu0
        %v1065 = vpop.trf.xlu0
        %v1066 = vpop.trf.xlu0
        %v1067 = vpop.trf.xlu0
        %v1068 = vpop.trf.xlu0
        %v1069 = vpop.trf.xlu0
        %v1070 = vpop.trf.xlu0
        %v1071 = vpop.trf.xlu0
        %v1072 = vpop.trf.xlu0
        %v1073 = vpop.trf.xlu0
        %v1075 = vsel %vm591, %v1058, 0
        %v1078 = vsel %vm591, %v1059, 0
        %v1081 = vsel %vm591, %v1060, 0
        %v1084 = vsel %vm591, %v1061, 0
        %v1087 = vsel %vm591, %v1062, 0
        %v1090 = vsel %vm591, %v1063, 0
        %v1093 = vsel %vm591, %v1064, 0
        %v1096 = vsel %vm591, %v1065, 0
        %v1099 = vsel %vm591, %v1066, 0
        %v1102 = vsel %vm591, %v1067, 0
        %v1105 = vsel %vm591, %v1068, 0
        %v1108 = vsel %vm591, %v1069, 0
        %v1111 = vsel %vm591, %v1070, 0
        %v1114 = vsel %vm591, %v1071, 0
        %v1117 = vsel %vm591, %v1072, 0
        %v1120 = vsel %vm591, %v1073, 0
        %1122 = vmatprep.subr.mxu0 0.0
        %1123 = vmatpush1.msra.mxu0 0.0
        %1124 = vmatprep.subr.mxu0 0.0
        %1125 = vmatpush1.msra.mxu0 0.0
        %1126 = vmatprep.subr.mxu0 0.0
        %1127 = vmatpush1.msra.mxu0 0.0
        %1128 = vmatprep.subr.mxu0 0.0
        %1129 = vmatpush1.msra.mxu0 0.0
        %1130 = vmatprep.subr.mxu0 0.0
        %1131 = vmatpush1.msra.mxu0 0.0
        %1132 = vmatprep.subr.mxu0 0.0
        %1133 = vmatpush1.msra.mxu0 0.0
        %1134 = vmatprep.subr.mxu0 0.0
        %1135 = vmatpush1.msra.mxu0 0.0
        %1136 = vmatprep.subr.mxu0 0.0
        %1137 = vmatpush1.msra.mxu0 0.0
        %1138 = vmatprep.subr.mxu0 %v478
        %1139 = vmatpush1.msra.mxu0 %v477
        %1140 = vmatprep.subr.mxu0 %v476
        %1141 = vmatpush1.msra.mxu0 %v475
        %1142 = vmatprep.subr.mxu0 %v474
        %1143 = vmatpush1.msra.mxu0 %v473
        %1144 = vmatprep.subr.mxu0 %v472
        %1145 = vmatpush1.msra.mxu0 %v471
        %1146 = vmatprep.subr.mxu0 %v470
        %1147 = vmatpush1.msra.mxu0 %v469
        %1148 = vmatprep.subr.mxu0 %v468
        %1149 = vmatpush1.msra.mxu0 %v467
        %1150 = vmatprep.subr.mxu0 %v466
        %1151 = vmatpush1.msra.mxu0 %v465
        %1152 = vmatprep.subr.mxu0 %v464
        %1153 = vmatpush1.msra.mxu0 %v463
        %1154 = vmatprep.subr.mxu0 0.0
        %1155 = vmatpush2.msra.mxu0 0.0
        %1156 = vmatprep.subr.mxu0 0.0
        %1157 = vmatpush2.msra.mxu0 0.0
        %1158 = vmatprep.subr.mxu0 0.0
        %1159 = vmatpush2.msra.mxu0 0.0
        %1160 = vmatprep.subr.mxu0 0.0
        %1161 = vmatpush2.msra.mxu0 0.0
        %1162 = vmatprep.subr.mxu0 0.0
        %1163 = vmatpush2.msra.mxu0 0.0
        %1164 = vmatprep.subr.mxu0 0.0
        %1165 = vmatpush2.msra.mxu0 0.0
        %1166 = vmatprep.subr.mxu0 0.0
        %1167 = vmatpush2.msra.mxu0 0.0
        %1168 = vmatprep.subr.mxu0 0.0
        %1169 = vmatpush2.msra.mxu0 0.0
        %1170 = vmatprep.subr.mxu0 0.0
        %1171 = vmatpush2.msra.mxu0 0.0
        %1172 = vmatprep.subr.mxu0 0.0
        %1173 = vmatpush2.msra.mxu0 0.0
        %1174 = vmatprep.subr.mxu0 0.0
        %1175 = vmatpush2.msra.mxu0 0.0
        %1176 = vmatprep.subr.mxu0 0.0
        %1177 = vmatpush2.msra.mxu0 0.0
        %1178 = vmatprep.subr.mxu0 0.0
        %1179 = vmatpush2.msra.mxu0 0.0
        %1180 = vmatprep.subr.mxu0 0.0
        %1181 = vmatpush2.msra.mxu0 0.0
        %1182 = vmatprep.subr.mxu0 0.0
        %1183 = vmatpush2.msra.mxu0 0.0
        %1184 = vmatprep.subr.mxu0 0.0
        %1185 = vmatpush2.msra.mxu0 0.0
        %1186 = vmatprep.mubr.f32.mxu0 0.0
        %1187 = vmatmul.mubr.f32.gmra.mxu0 %v1075
        %v1188 = vpop.f32.mrf.mxu0
        %v1189 = vadd.f32 0.0, %v1188
        %v1190 = vpop.f32.mrf.mxu0
        %v1191 = vadd.f32 0.0, %v1190
        %1192 = vmatprep.mubr.f32.mxu0 0.0
        %1193 = vmatmul.mubr.f32.gmra.mxu0 %v1078
        %v1194 = vpop.f32.mrf.mxu0
        %v1195 = vadd.f32 0.0, %v1194
        %v1196 = vpop.f32.mrf.mxu0
        %v1197 = vadd.f32 0.0, %v1196
        %1198 = vmatprep.mubr.f32.mxu0 0.0
        %1199 = vmatmul.mubr.f32.gmra.mxu0 %v1081
        %v1200 = vpop.f32.mrf.mxu0
        %v1201 = vadd.f32 0.0, %v1200
        %v1202 = vpop.f32.mrf.mxu0
        %v1203 = vadd.f32 0.0, %v1202
        %1204 = vmatprep.mubr.f32.mxu0 0.0
        %1205 = vmatmul.mubr.f32.gmra.mxu0 %v1084
        %v1206 = vpop.f32.mrf.mxu0
        %v1207 = vadd.f32 0.0, %v1206
        %v1208 = vpop.f32.mrf.mxu0
        %v1209 = vadd.f32 0.0, %v1208
        %1210 = vmatprep.mubr.f32.mxu0 0.0
        %1211 = vmatmul.mubr.f32.gmra.mxu0 %v1087
        %v1212 = vpop.f32.mrf.mxu0
        %v1213 = vadd.f32 0.0, %v1212
        %v1214 = vpop.f32.mrf.mxu0
        %v1215 = vadd.f32 0.0, %v1214
        %1216 = vmatprep.mubr.f32.mxu0 0.0
        %1217 = vmatmul.mubr.f32.gmra.mxu0 %v1090
        %v1218 = vpop.f32.mrf.mxu0
        %v1219 = vadd.f32 0.0, %v1218
        %v1220 = vpop.f32.mrf.mxu0
        %v1221 = vadd.f32 0.0, %v1220
        %1222 = vmatprep.mubr.f32.mxu0 0.0
        %1223 = vmatmul.mubr.f32.gmra.mxu0 %v1093
        %v1224 = vpop.f32.mrf.mxu0
        %v1225 = vadd.f32 0.0, %v1224
        %v1226 = vpop.f32.mrf.mxu0
        %v1227 = vadd.f32 0.0, %v1226
        %1228 = vmatprep.mubr.f32.mxu0 0.0
        %1229 = vmatmul.mubr.f32.gmra.mxu0 %v1096
        %v1230 = vpop.f32.mrf.mxu0
        %v1231 = vadd.f32 0.0, %v1230
        %v1232 = vpop.f32.mrf.mxu0
        %v1233 = vadd.f32 0.0, %v1232
        %1234 = vmatprep.mubr.f32.mxu0 0.0
        %1235 = vmatmul.mubr.f32.gmra.mxu0 %v1099
        %v1236 = vpop.f32.mrf.mxu0
        %v1237 = vadd.f32 0.0, %v1236
        %v1238 = vpop.f32.mrf.mxu0
        %v1239 = vadd.f32 0.0, %v1238
        %1240 = vmatprep.mubr.f32.mxu0 0.0
        %1241 = vmatmul.mubr.f32.gmra.mxu0 %v1102
        %v1242 = vpop.f32.mrf.mxu0
        %v1243 = vadd.f32 0.0, %v1242
        %v1244 = vpop.f32.mrf.mxu0
        %v1245 = vadd.f32 0.0, %v1244
        %1246 = vmatprep.mubr.f32.mxu0 0.0
        %1247 = vmatmul.mubr.f32.gmra.mxu0 %v1105
        %v1248 = vpop.f32.mrf.mxu0
        %v1249 = vadd.f32 0.0, %v1248
        %v1250 = vpop.f32.mrf.mxu0
        %v1251 = vadd.f32 0.0, %v1250
        %1252 = vmatprep.mubr.f32.mxu0 0.0
        %1253 = vmatmul.mubr.f32.gmra.mxu0 %v1108
        %v1254 = vpop.f32.mrf.mxu0
        %v1255 = vadd.f32 0.0, %v1254
        %v1256 = vpop.f32.mrf.mxu0
        %v1257 = vadd.f32 0.0, %v1256
        %1258 = vmatprep.mubr.f32.mxu0 0.0
        %1259 = vmatmul.mubr.f32.gmra.mxu0 %v1111
        %v1260 = vpop.f32.mrf.mxu0
        %v1261 = vadd.f32 0.0, %v1260
        %v1262 = vpop.f32.mrf.mxu0
        %v1263 = vadd.f32 0.0, %v1262
        %1264 = vmatprep.mubr.f32.mxu0 0.0
        %1265 = vmatmul.mubr.f32.gmra.mxu0 %v1114
        %v1266 = vpop.f32.mrf.mxu0
        %v1267 = vadd.f32 0.0, %v1266
        %v1268 = vpop.f32.mrf.mxu0
        %v1269 = vadd.f32 0.0, %v1268
        %1270 = vmatprep.mubr.f32.mxu0 0.0
        %1271 = vmatmul.mubr.f32.gmra.mxu0 %v1117
        %v1272 = vpop.f32.mrf.mxu0
        %v1273 = vadd.f32 0.0, %v1272
        %v1274 = vpop.f32.mrf.mxu0
        %v1275 = vadd.f32 0.0, %v1274
        %1276 = vmatprep.mubr.f32.mxu0 0.0
        %1277 = vmatmul.mubr.f32.gmra.mxu0 %v1120
        %v1278 = vpop.f32.mrf.mxu0
        %v1279 = vadd.f32 0.0, %v1278
        %v1280 = vpop.f32.mrf.mxu0
        %v1281 = vadd.f32 0.0, %v1280
        %1282 = vdwg.mxu0
        %1283 = vxpose.xlu0.b32.start [1/16] %v423, 128
        %1284 = vxpose.xlu0.b32.cont [2/16] %v424, 128
        %1285 = vxpose.xlu0.b32.cont [3/16] %v425, 128
        %1286 = vxpose.xlu0.b32.cont [4/16] %v426, 128
        %1287 = vxpose.xlu0.b32.cont [5/16] %v427, 128
        %1288 = vxpose.xlu0.b32.cont [6/16] %v428, 128
        %1289 = vxpose.xlu0.b32.cont [7/16] %v429, 128
        %1290 = vxpose.xlu0.b32.cont [8/16] %v430, 128
        %1291 = vxpose.xlu0.b32.cont [9/16] 0.0, 128
        %1292 = vxpose.xlu0.b32.cont [10/16] 0.0, 128
        %1293 = vxpose.xlu0.b32.cont [11/16] 0.0, 128
        %1294 = vxpose.xlu0.b32.cont [12/16] 0.0, 128
        %1295 = vxpose.xlu0.b32.cont [13/16] 0.0, 128
        %1296 = vxpose.xlu0.b32.cont [14/16] 0.0, 128
        %1297 = vxpose.xlu0.b32.cont [15/16] 0.0, 128
        %1298 = vxpose.xlu0.b32.end [16/16] 0.0, 128
        %v1299 = vpop.trf.xlu0
        %v1300 = vpop.trf.xlu0
        %v1301 = vpop.trf.xlu0
        %v1302 = vpop.trf.xlu0
        %v1303 = vpop.trf.xlu0
        %v1304 = vpop.trf.xlu0
        %v1305 = vpop.trf.xlu0
        %v1306 = vpop.trf.xlu0
        %v1307 = vpop.trf.xlu0
        %v1308 = vpop.trf.xlu0
        %v1309 = vpop.trf.xlu0
        %v1310 = vpop.trf.xlu0
        %v1311 = vpop.trf.xlu0
        %v1312 = vpop.trf.xlu0
        %v1313 = vpop.trf.xlu0
        %v1314 = vpop.trf.xlu0
        %v1316 = vsel %vm591, %v1299, 0
        %v1319 = vsel %vm591, %v1300, 0
        %v1322 = vsel %vm591, %v1301, 0
        %v1325 = vsel %vm591, %v1302, 0
        %v1328 = vsel %vm591, %v1303, 0
        %v1331 = vsel %vm591, %v1304, 0
        %v1334 = vsel %vm591, %v1305, 0
        %v1337 = vsel %vm591, %v1306, 0
        %v1340 = vsel %vm591, %v1307, 0
        %v1343 = vsel %vm591, %v1308, 0
        %v1346 = vsel %vm591, %v1309, 0
        %v1349 = vsel %vm591, %v1310, 0
        %v1352 = vsel %vm591, %v1311, 0
        %v1355 = vsel %vm591, %v1312, 0
        %v1358 = vsel %vm591, %v1313, 0
        %v1361 = vsel %vm591, %v1314, 0
        %1363 = vmatprep.subr.mxu0 0.0
        %1364 = vmatpush1.msra.mxu0 0.0
        %1365 = vmatprep.subr.mxu0 0.0
        %1366 = vmatpush1.msra.mxu0 0.0
        %1367 = vmatprep.subr.mxu0 0.0
        %1368 = vmatpush1.msra.mxu0 0.0
        %1369 = vmatprep.subr.mxu0 0.0
        %1370 = vmatpush1.msra.mxu0 0.0
        %1371 = vmatprep.subr.mxu0 0.0
        %1372 = vmatpush1.msra.mxu0 0.0
        %1373 = vmatprep.subr.mxu0 0.0
        %1374 = vmatpush1.msra.mxu0 0.0
        %1375 = vmatprep.subr.mxu0 0.0
        %1376 = vmatpush1.msra.mxu0 0.0
        %1377 = vmatprep.subr.mxu0 0.0
        %1378 = vmatpush1.msra.mxu0 0.0
        %1379 = vmatprep.subr.mxu0 %v494
        %1380 = vmatpush1.msra.mxu0 %v493
        %1381 = vmatprep.subr.mxu0 %v492
        %1382 = vmatpush1.msra.mxu0 %v491
        %1383 = vmatprep.subr.mxu0 %v490
        %1384 = vmatpush1.msra.mxu0 %v489
        %1385 = vmatprep.subr.mxu0 %v488
        %1386 = vmatpush1.msra.mxu0 %v487
        %1387 = vmatprep.subr.mxu0 %v486
        %1388 = vmatpush1.msra.mxu0 %v485
        %1389 = vmatprep.subr.mxu0 %v484
        %1390 = vmatpush1.msra.mxu0 %v483
        %1391 = vmatprep.subr.mxu0 %v482
        %1392 = vmatpush1.msra.mxu0 %v481
        %1393 = vmatprep.subr.mxu0 %v480
        %1394 = vmatpush1.msra.mxu0 %v479
        %1395 = vmatprep.subr.mxu0 0.0
        %1396 = vmatpush2.msra.mxu0 0.0
        %1397 = vmatprep.subr.mxu0 0.0
        %1398 = vmatpush2.msra.mxu0 0.0
        %1399 = vmatprep.subr.mxu0 0.0
        %1400 = vmatpush2.msra.mxu0 0.0
        %1401 = vmatprep.subr.mxu0 0.0
        %1402 = vmatpush2.msra.mxu0 0.0
        %1403 = vmatprep.subr.mxu0 0.0
        %1404 = vmatpush2.msra.mxu0 0.0
        %1405 = vmatprep.subr.mxu0 0.0
        %1406 = vmatpush2.msra.mxu0 0.0
        %1407 = vmatprep.subr.mxu0 0.0
        %1408 = vmatpush2.msra.mxu0 0.0
        %1409 = vmatprep.subr.mxu0 0.0
        %1410 = vmatpush2.msra.mxu0 0.0
        %1411 = vmatprep.subr.mxu0 0.0
        %1412 = vmatpush2.msra.mxu0 0.0
        %1413 = vmatprep.subr.mxu0 0.0
        %1414 = vmatpush2.msra.mxu0 0.0
        %1415 = vmatprep.subr.mxu0 0.0
        %1416 = vmatpush2.msra.mxu0 0.0
        %1417 = vmatprep.subr.mxu0 0.0
        %1418 = vmatpush2.msra.mxu0 0.0
        %1419 = vmatprep.subr.mxu0 0.0
        %1420 = vmatpush2.msra.mxu0 0.0
        %1421 = vmatprep.subr.mxu0 0.0
        %1422 = vmatpush2.msra.mxu0 0.0
        %1423 = vmatprep.subr.mxu0 0.0
        %1424 = vmatpush2.msra.mxu0 0.0
        %1425 = vmatprep.subr.mxu0 0.0
        %1426 = vmatpush2.msra.mxu0 0.0
        %1427 = vmatprep.mubr.f32.mxu0 0.0
        %1428 = vmatmul.mubr.f32.gmra.mxu0 %v1316
        %v1429 = vpop.f32.mrf.mxu0
        %v1430 = vadd.f32 0.0, %v1429
        %v1431 = vpop.f32.mrf.mxu0
        %v1432 = vadd.f32 0.0, %v1431
        %1433 = vmatprep.mubr.f32.mxu0 0.0
        %1434 = vmatmul.mubr.f32.gmra.mxu0 %v1319
        %v1435 = vpop.f32.mrf.mxu0
        %v1436 = vadd.f32 0.0, %v1435
        %v1437 = vpop.f32.mrf.mxu0
        %v1438 = vadd.f32 0.0, %v1437
        %1439 = vmatprep.mubr.f32.mxu0 0.0
        %1440 = vmatmul.mubr.f32.gmra.mxu0 %v1322
        %v1441 = vpop.f32.mrf.mxu0
        %v1442 = vadd.f32 0.0, %v1441
        %v1443 = vpop.f32.mrf.mxu0
        %v1444 = vadd.f32 0.0, %v1443
        %1445 = vmatprep.mubr.f32.mxu0 0.0
        %1446 = vmatmul.mubr.f32.gmra.mxu0 %v1325
        %v1447 = vpop.f32.mrf.mxu0
        %v1448 = vadd.f32 0.0, %v1447
        %v1449 = vpop.f32.mrf.mxu0
        %v1450 = vadd.f32 0.0, %v1449
        %1451 = vmatprep.mubr.f32.mxu0 0.0
        %1452 = vmatmul.mubr.f32.gmra.mxu0 %v1328
        %v1453 = vpop.f32.mrf.mxu0
        %v1454 = vadd.f32 0.0, %v1453
        %v1455 = vpop.f32.mrf.mxu0
        %v1456 = vadd.f32 0.0, %v1455
        %1457 = vmatprep.mubr.f32.mxu0 0.0
        %1458 = vmatmul.mubr.f32.gmra.mxu0 %v1331
        %v1459 = vpop.f32.mrf.mxu0
        %v1460 = vadd.f32 0.0, %v1459
        %v1461 = vpop.f32.mrf.mxu0
        %v1462 = vadd.f32 0.0, %v1461
        %1463 = vmatprep.mubr.f32.mxu0 0.0
        %1464 = vmatmul.mubr.f32.gmra.mxu0 %v1334
        %v1465 = vpop.f32.mrf.mxu0
        %v1466 = vadd.f32 0.0, %v1465
        %v1467 = vpop.f32.mrf.mxu0
        %v1468 = vadd.f32 0.0, %v1467
        %1469 = vmatprep.mubr.f32.mxu0 0.0
        %1470 = vmatmul.mubr.f32.gmra.mxu0 %v1337
        %v1471 = vpop.f32.mrf.mxu0
        %v1472 = vadd.f32 0.0, %v1471
        %v1473 = vpop.f32.mrf.mxu0
        %v1474 = vadd.f32 0.0, %v1473
        %1475 = vmatprep.mubr.f32.mxu0 0.0
        %1476 = vmatmul.mubr.f32.gmra.mxu0 %v1340
        %v1477 = vpop.f32.mrf.mxu0
        %v1478 = vadd.f32 0.0, %v1477
        %v1479 = vpop.f32.mrf.mxu0
        %v1480 = vadd.f32 0.0, %v1479
        %1481 = vmatprep.mubr.f32.mxu0 0.0
        %1482 = vmatmul.mubr.f32.gmra.mxu0 %v1343
        %v1483 = vpop.f32.mrf.mxu0
        %v1484 = vadd.f32 0.0, %v1483
        %v1485 = vpop.f32.mrf.mxu0
        %v1486 = vadd.f32 0.0, %v1485
        %1487 = vmatprep.mubr.f32.mxu0 0.0
        %1488 = vmatmul.mubr.f32.gmra.mxu0 %v1346
        %v1489 = vpop.f32.mrf.mxu0
        %v1490 = vadd.f32 0.0, %v1489
        %v1491 = vpop.f32.mrf.mxu0
        %v1492 = vadd.f32 0.0, %v1491
        %1493 = vmatprep.mubr.f32.mxu0 0.0
        %1494 = vmatmul.mubr.f32.gmra.mxu0 %v1349
        %v1495 = vpop.f32.mrf.mxu0
        %v1496 = vadd.f32 0.0, %v1495
        %v1497 = vpop.f32.mrf.mxu0
        %v1498 = vadd.f32 0.0, %v1497
        %1499 = vmatprep.mubr.f32.mxu0 0.0
        %1500 = vmatmul.mubr.f32.gmra.mxu0 %v1352
        %v1501 = vpop.f32.mrf.mxu0
        %v1502 = vadd.f32 0.0, %v1501
        %v1503 = vpop.f32.mrf.mxu0
        %v1504 = vadd.f32 0.0, %v1503
        %1505 = vmatprep.mubr.f32.mxu0 0.0
        %1506 = vmatmul.mubr.f32.gmra.mxu0 %v1355
        %v1507 = vpop.f32.mrf.mxu0
        %v1508 = vadd.f32 0.0, %v1507
        %v1509 = vpop.f32.mrf.mxu0
        %v1510 = vadd.f32 0.0, %v1509
        %1511 = vmatprep.mubr.f32.mxu0 0.0
        %1512 = vmatmul.mubr.f32.gmra.mxu0 %v1358
        %v1513 = vpop.f32.mrf.mxu0
        %v1514 = vadd.f32 0.0, %v1513
        %v1515 = vpop.f32.mrf.mxu0
        %v1516 = vadd.f32 0.0, %v1515
        %1517 = vmatprep.mubr.f32.mxu0 0.0
        %1518 = vmatmul.mubr.f32.gmra.mxu0 %v1361
        %v1519 = vpop.f32.mrf.mxu0
        %v1520 = vadd.f32 0.0, %v1519
        %v1521 = vpop.f32.mrf.mxu0
        %v1522 = vadd.f32 0.0, %v1521
        %1523 = vdwg.mxu0
        %v1524 = vmax.f32 %v707, %v709
        %1525 = vmax.xlane.f32.xlu0 %v1524
        %v1526 = vpop.xlane.xlu0 %1525
        %v1527 = vmax.f32 %v713, %v715
        %1528 = vmax.xlane.f32.xlu0 %v1527
        %v1529 = vpop.xlane.xlu0 %1528
        %v1530 = vmax.f32 %v719, %v721
        %1531 = vmax.xlane.f32.xlu0 %v1530
        %v1532 = vpop.xlane.xlu0 %1531
        %v1533 = vmax.f32 %v725, %v727
        %1534 = vmax.xlane.f32.xlu0 %v1533
        %v1535 = vpop.xlane.xlu0 %1534
        %v1536 = vmax.f32 %v731, %v733
        %1537 = vmax.xlane.f32.xlu0 %v1536
        %v1538 = vpop.xlane.xlu0 %1537
        %v1539 = vmax.f32 %v737, %v739
        %1540 = vmax.xlane.f32.xlu0 %v1539
        %v1541 = vpop.xlane.xlu0 %1540
        %v1542 = vmax.f32 %v743, %v745
        %1543 = vmax.xlane.f32.xlu0 %v1542
        %v1544 = vpop.xlane.xlu0 %1543
        %v1545 = vmax.f32 %v749, %v751
        %1546 = vmax.xlane.f32.xlu0 %v1545
        %v1547 = vpop.xlane.xlu0 %1546
        %v1548 = vmax.f32 %v755, %v757
        %1549 = vmax.xlane.f32.xlu0 %v1548
        %v1550 = vpop.xlane.xlu0 %1549
        %v1551 = vmax.f32 %v761, %v763
        %1552 = vmax.xlane.f32.xlu0 %v1551
        %v1553 = vpop.xlane.xlu0 %1552
        %v1554 = vmax.f32 %v767, %v769
        %1555 = vmax.xlane.f32.xlu0 %v1554
        %v1556 = vpop.xlane.xlu0 %1555
        %v1557 = vmax.f32 %v773, %v775
        %1558 = vmax.xlane.f32.xlu0 %v1557
        %v1559 = vpop.xlane.xlu0 %1558
        %v1560 = vmax.f32 %v779, %v781
        %1561 = vmax.xlane.f32.xlu0 %v1560
        %v1562 = vpop.xlane.xlu0 %1561
        %v1563 = vmax.f32 %v785, %v787
        %1564 = vmax.xlane.f32.xlu0 %v1563
        %v1565 = vpop.xlane.xlu0 %1564
        %v1566 = vmax.f32 %v791, %v793
        %1567 = vmax.xlane.f32.xlu0 %v1566
        %v1568 = vpop.xlane.xlu0 %1567
        %v1569 = vmax.f32 %v797, %v799
        %1570 = vmax.xlane.f32.xlu0 %v1569
        %v1571 = vpop.xlane.xlu0 %1570
        %v1572 = vmax.f32 %v948, %v950
        %1573 = vmax.xlane.f32.xlu0 %v1572
        %v1574 = vpop.xlane.xlu0 %1573
        %v1575 = vmax.f32 %v954, %v956
        %1576 = vmax.xlane.f32.xlu0 %v1575
        %v1577 = vpop.xlane.xlu0 %1576
        %v1578 = vmax.f32 %v960, %v962
        %1579 = vmax.xlane.f32.xlu0 %v1578
        %v1580 = vpop.xlane.xlu0 %1579
        %v1581 = vmax.f32 %v966, %v968
        %1582 = vmax.xlane.f32.xlu0 %v1581
        %v1583 = vpop.xlane.xlu0 %1582
        %v1584 = vmax.f32 %v972, %v974
        %1585 = vmax.xlane.f32.xlu0 %v1584
        %v1586 = vpop.xlane.xlu0 %1585
        %v1587 = vmax.f32 %v978, %v980
        %1588 = vmax.xlane.f32.xlu0 %v1587
        %v1589 = vpop.xlane.xlu0 %1588
        %v1590 = vmax.f32 %v984, %v986
        %1591 = vmax.xlane.f32.xlu0 %v1590
        %v1592 = vpop.xlane.xlu0 %1591
        %v1593 = vmax.f32 %v990, %v992
        %1594 = vmax.xlane.f32.xlu0 %v1593
        %v1595 = vpop.xlane.xlu0 %1594
        %v1596 = vmax.f32 %v996, %v998
        %1597 = vmax.xlane.f32.xlu0 %v1596
        %v1598 = vpop.xlane.xlu0 %1597
        %v1599 = vmax.f32 %v1002, %v1004
        %1600 = vmax.xlane.f32.xlu0 %v1599
        %v1601 = vpop.xlane.xlu0 %1600
        %v1602 = vmax.f32 %v1008, %v1010
        %1603 = vmax.xlane.f32.xlu0 %v1602
        %v1604 = vpop.xlane.xlu0 %1603
        %v1605 = vmax.f32 %v1014, %v1016
        %1606 = vmax.xlane.f32.xlu0 %v1605
        %v1607 = vpop.xlane.xlu0 %1606
        %v1608 = vmax.f32 %v1020, %v1022
        %1609 = vmax.xlane.f32.xlu0 %v1608
        %v1610 = vpop.xlane.xlu0 %1609
        %v1611 = vmax.f32 %v1026, %v1028
        %1612 = vmax.xlane.f32.xlu0 %v1611
        %v1613 = vpop.xlane.xlu0 %1612
        %v1614 = vmax.f32 %v1032, %v1034
        %1615 = vmax.xlane.f32.xlu0 %v1614
        %v1616 = vpop.xlane.xlu0 %1615
        %v1617 = vmax.f32 %v1038, %v1040
        %1618 = vmax.xlane.f32.xlu0 %v1617
        %v1619 = vpop.xlane.xlu0 %1618
        %v1620 = vmax.f32 %v1189, %v1191
        %1621 = vmax.xlane.f32.xlu0 %v1620
        %v1622 = vpop.xlane.xlu0 %1621
        %v1623 = vmax.f32 %v1195, %v1197
        %1624 = vmax.xlane.f32.xlu0 %v1623
        %v1625 = vpop.xlane.xlu0 %1624
        %v1626 = vmax.f32 %v1201, %v1203
        %1627 = vmax.xlane.f32.xlu0 %v1626
        %v1628 = vpop.xlane.xlu0 %1627
        %v1629 = vmax.f32 %v1207, %v1209
        %1630 = vmax.xlane.f32.xlu0 %v1629
        %v1631 = vpop.xlane.xlu0 %1630
        %v1632 = vmax.f32 %v1213, %v1215
        %1633 = vmax.xlane.f32.xlu0 %v1632
        %v1634 = vpop.xlane.xlu0 %1633
        %v1635 = vmax.f32 %v1219, %v1221
        %1636 = vmax.xlane.f32.xlu0 %v1635
        %v1637 = vpop.xlane.xlu0 %1636
        %v1638 = vmax.f32 %v1225, %v1227
        %1639 = vmax.xlane.f32.xlu0 %v1638
        %v1640 = vpop.xlane.xlu0 %1639
        %v1641 = vmax.f32 %v1231, %v1233
        %1642 = vmax.xlane.f32.xlu0 %v1641
        %v1643 = vpop.xlane.xlu0 %1642
        %v1644 = vmax.f32 %v1237, %v1239
        %1645 = vmax.xlane.f32.xlu0 %v1644
        %v1646 = vpop.xlane.xlu0 %1645
        %v1647 = vmax.f32 %v1243, %v1245
        %1648 = vmax.xlane.f32.xlu0 %v1647
        %v1649 = vpop.xlane.xlu0 %1648
        %v1650 = vmax.f32 %v1249, %v1251
        %1651 = vmax.xlane.f32.xlu0 %v1650
        %v1652 = vpop.xlane.xlu0 %1651
        %v1653 = vmax.f32 %v1255, %v1257
        %1654 = vmax.xlane.f32.xlu0 %v1653
        %v1655 = vpop.xlane.xlu0 %1654
        %v1656 = vmax.f32 %v1261, %v1263
        %1657 = vmax.xlane.f32.xlu0 %v1656
        %v1658 = vpop.xlane.xlu0 %1657
        %v1659 = vmax.f32 %v1267, %v1269
        %1660 = vmax.xlane.f32.xlu0 %v1659
        %v1661 = vpop.xlane.xlu0 %1660
        %v1662 = vmax.f32 %v1273, %v1275
        %1663 = vmax.xlane.f32.xlu0 %v1662
        %v1664 = vpop.xlane.xlu0 %1663
        %v1665 = vmax.f32 %v1279, %v1281
        %1666 = vmax.xlane.f32.xlu0 %v1665
        %v1667 = vpop.xlane.xlu0 %1666
        %v1668 = vmax.f32 %v1430, %v1432
        %1669 = vmax.xlane.f32.xlu0 %v1668
        %v1670 = vpop.xlane.xlu0 %1669
        %v1671 = vmax.f32 %v1436, %v1438
        %1672 = vmax.xlane.f32.xlu0 %v1671
        %v1673 = vpop.xlane.xlu0 %1672
        %v1674 = vmax.f32 %v1442, %v1444
        %1675 = vmax.xlane.f32.xlu0 %v1674
        %v1676 = vpop.xlane.xlu0 %1675
        %v1677 = vmax.f32 %v1448, %v1450
        %1678 = vmax.xlane.f32.xlu0 %v1677
        %v1679 = vpop.xlane.xlu0 %1678
        %v1680 = vmax.f32 %v1454, %v1456
        %1681 = vmax.xlane.f32.xlu0 %v1680
        %v1682 = vpop.xlane.xlu0 %1681
        %v1683 = vmax.f32 %v1460, %v1462
        %1684 = vmax.xlane.f32.xlu0 %v1683
        %v1685 = vpop.xlane.xlu0 %1684
        %v1686 = vmax.f32 %v1466, %v1468
        %1687 = vmax.xlane.f32.xlu0 %v1686
        %v1688 = vpop.xlane.xlu0 %1687
        %v1689 = vmax.f32 %v1472, %v1474
        %1690 = vmax.xlane.f32.xlu0 %v1689
        %v1691 = vpop.xlane.xlu0 %1690
        %v1692 = vmax.f32 %v1478, %v1480
        %1693 = vmax.xlane.f32.xlu0 %v1692
        %v1694 = vpop.xlane.xlu0 %1693
        %v1695 = vmax.f32 %v1484, %v1486
        %1696 = vmax.xlane.f32.xlu0 %v1695
        %v1697 = vpop.xlane.xlu0 %1696
        %v1698 = vmax.f32 %v1490, %v1492
        %1699 = vmax.xlane.f32.xlu0 %v1698
        %v1700 = vpop.xlane.xlu0 %1699
        %v1701 = vmax.f32 %v1496, %v1498
        %1702 = vmax.xlane.f32.xlu0 %v1701
        %v1703 = vpop.xlane.xlu0 %1702
        %v1704 = vmax.f32 %v1502, %v1504
        %1705 = vmax.xlane.f32.xlu0 %v1704
        %v1706 = vpop.xlane.xlu0 %1705
        %v1707 = vmax.f32 %v1508, %v1510
        %1708 = vmax.xlane.f32.xlu0 %v1707
        %v1709 = vpop.xlane.xlu0 %1708
        %v1710 = vmax.f32 %v1514, %v1516
        %1711 = vmax.xlane.f32.xlu0 %v1710
        %v1712 = vpop.xlane.xlu0 %1711
        %v1713 = vmax.f32 %v1520, %v1522
        %1714 = vmax.xlane.f32.xlu0 %v1713
        %v1715 = vpop.xlane.xlu0 %1714
        %v1716 = vsub.f32 %v707, %v1526
        %v1717 = vsub.f32 %v709, %v1526
        %v1718 = vsub.f32 %v713, %v1529
        %v1719 = vsub.f32 %v715, %v1529
        %v1720 = vsub.f32 %v719, %v1532
        %v1721 = vsub.f32 %v721, %v1532
        %v1722 = vsub.f32 %v725, %v1535
        %v1723 = vsub.f32 %v727, %v1535
        %v1724 = vsub.f32 %v731, %v1538
        %v1725 = vsub.f32 %v733, %v1538
        %v1726 = vsub.f32 %v737, %v1541
        %v1727 = vsub.f32 %v739, %v1541
        %v1728 = vsub.f32 %v743, %v1544
        %v1729 = vsub.f32 %v745, %v1544
        %v1730 = vsub.f32 %v749, %v1547
        %v1731 = vsub.f32 %v751, %v1547
        %v1732 = vsub.f32 %v755, %v1550
        %v1733 = vsub.f32 %v757, %v1550
        %v1734 = vsub.f32 %v761, %v1553
        %v1735 = vsub.f32 %v763, %v1553
        %v1736 = vsub.f32 %v767, %v1556
        %v1737 = vsub.f32 %v769, %v1556
        %v1738 = vsub.f32 %v773, %v1559
        %v1739 = vsub.f32 %v775, %v1559
        %v1740 = vsub.f32 %v779, %v1562
        %v1741 = vsub.f32 %v781, %v1562
        %v1742 = vsub.f32 %v785, %v1565
        %v1743 = vsub.f32 %v787, %v1565
        %v1744 = vsub.f32 %v791, %v1568
        %v1745 = vsub.f32 %v793, %v1568
        %v1746 = vsub.f32 %v797, %v1571
        %v1747 = vsub.f32 %v799, %v1571
        %v1748 = vsub.f32 %v948, %v1574
        %v1749 = vsub.f32 %v950, %v1574
        %v1750 = vsub.f32 %v954, %v1577
        %v1751 = vsub.f32 %v956, %v1577
        %v1752 = vsub.f32 %v960, %v1580
        %v1753 = vsub.f32 %v962, %v1580
        %v1754 = vsub.f32 %v966, %v1583
        %v1755 = vsub.f32 %v968, %v1583
        %v1756 = vsub.f32 %v972, %v1586
        %v1757 = vsub.f32 %v974, %v1586
        %v1758 = vsub.f32 %v978, %v1589
        %v1759 = vsub.f32 %v980, %v1589
        %v1760 = vsub.f32 %v984, %v1592
        %v1761 = vsub.f32 %v986, %v1592
        %v1762 = vsub.f32 %v990, %v1595
        %v1763 = vsub.f32 %v992, %v1595
        %v1764 = vsub.f32 %v996, %v1598
        %v1765 = vsub.f32 %v998, %v1598
        %v1766 = vsub.f32 %v1002, %v1601
        %v1767 = vsub.f32 %v1004, %v1601
        %v1768 = vsub.f32 %v1008, %v1604
        %v1769 = vsub.f32 %v1010, %v1604
        %v1770 = vsub.f32 %v1014, %v1607
        %v1771 = vsub.f32 %v1016, %v1607
        %v1772 = vsub.f32 %v1020, %v1610
        %v1773 = vsub.f32 %v1022, %v1610
        %v1774 = vsub.f32 %v1026, %v1613
        %v1775 = vsub.f32 %v1028, %v1613
        %v1776 = vsub.f32 %v1032, %v1616
        %v1777 = vsub.f32 %v1034, %v1616
        %v1778 = vsub.f32 %v1038, %v1619
        %v1779 = vsub.f32 %v1040, %v1619
        %v1780 = vsub.f32 %v1189, %v1622
        %v1781 = vsub.f32 %v1191, %v1622
        %v1782 = vsub.f32 %v1195, %v1625
        %v1783 = vsub.f32 %v1197, %v1625
        %v1784 = vsub.f32 %v1201, %v1628
        %v1785 = vsub.f32 %v1203, %v1628
        %v1786 = vsub.f32 %v1207, %v1631
        %v1787 = vsub.f32 %v1209, %v1631
        %v1788 = vsub.f32 %v1213, %v1634
        %v1789 = vsub.f32 %v1215, %v1634
        %v1790 = vsub.f32 %v1219, %v1637
        %v1791 = vsub.f32 %v1221, %v1637
        %v1792 = vsub.f32 %v1225, %v1640
        %v1793 = vsub.f32 %v1227, %v1640
        %v1794 = vsub.f32 %v1231, %v1643
        %v1795 = vsub.f32 %v1233, %v1643
        %v1796 = vsub.f32 %v1237, %v1646
        %v1797 = vsub.f32 %v1239, %v1646
        %v1798 = vsub.f32 %v1243, %v1649
        %v1799 = vsub.f32 %v1245, %v1649
        %v1800 = vsub.f32 %v1249, %v1652
        %v1801 = vsub.f32 %v1251, %v1652
        %v1802 = vsub.f32 %v1255, %v1655
        %v1803 = vsub.f32 %v1257, %v1655
        %v1804 = vsub.f32 %v1261, %v1658
        %v1805 = vsub.f32 %v1263, %v1658
        %v1806 = vsub.f32 %v1267, %v1661
        %v1807 = vsub.f32 %v1269, %v1661
        %v1808 = vsub.f32 %v1273, %v1664
        %v1809 = vsub.f32 %v1275, %v1664
        %v1810 = vsub.f32 %v1279, %v1667
        %v1811 = vsub.f32 %v1281, %v1667
        %v1812 = vsub.f32 %v1430, %v1670
        %v1813 = vsub.f32 %v1432, %v1670
        %v1814 = vsub.f32 %v1436, %v1673
        %v1815 = vsub.f32 %v1438, %v1673
        %v1816 = vsub.f32 %v1442, %v1676
        %v1817 = vsub.f32 %v1444, %v1676
        %v1818 = vsub.f32 %v1448, %v1679
        %v1819 = vsub.f32 %v1450, %v1679
        %v1820 = vsub.f32 %v1454, %v1682
        %v1821 = vsub.f32 %v1456, %v1682
        %v1822 = vsub.f32 %v1460, %v1685
        %v1823 = vsub.f32 %v1462, %v1685
        %v1824 = vsub.f32 %v1466, %v1688
        %v1825 = vsub.f32 %v1468, %v1688
        %v1826 = vsub.f32 %v1472, %v1691
        %v1827 = vsub.f32 %v1474, %v1691
        %v1828 = vsub.f32 %v1478, %v1694
        %v1829 = vsub.f32 %v1480, %v1694
        %v1830 = vsub.f32 %v1484, %v1697
        %v1831 = vsub.f32 %v1486, %v1697
        %v1832 = vsub.f32 %v1490, %v1700
        %v1833 = vsub.f32 %v1492, %v1700
        %v1834 = vsub.f32 %v1496, %v1703
        %v1835 = vsub.f32 %v1498, %v1703
        %v1836 = vsub.f32 %v1502, %v1706
        %v1837 = vsub.f32 %v1504, %v1706
        %v1838 = vsub.f32 %v1508, %v1709
        %v1839 = vsub.f32 %v1510, %v1709
        %v1840 = vsub.f32 %v1514, %v1712
        %v1841 = vsub.f32 %v1516, %v1712
        %v1842 = vsub.f32 %v1520, %v1715
        %v1843 = vsub.f32 %v1522, %v1715
        %v1844 = vpow.pop %v1716
        %v1845 = vpow.pop %v1717
        %v1846 = vpow.pop %v1718
        %v1847 = vpow.pop %v1719
        %v1848 = vpow.pop %v1720
        %v1849 = vpow.pop %v1721
        %v1850 = vpow.pop %v1722
        %v1851 = vpow.pop %v1723
        %v1852 = vpow.pop %v1724
        %v1853 = vpow.pop %v1725
        %v1854 = vpow.pop %v1726
        %v1855 = vpow.pop %v1727
        %v1856 = vpow.pop %v1728
        %v1857 = vpow.pop %v1729
        %v1858 = vpow.pop %v1730
        %v1859 = vpow.pop %v1731
        %v1860 = vpow.pop %v1732
        %v1861 = vpow.pop %v1733
        %v1862 = vpow.pop %v1734
        %v1863 = vpow.pop %v1735
        %v1864 = vpow.pop %v1736
        %v1865 = vpow.pop %v1737
        %v1866 = vpow.pop %v1738
        %v1867 = vpow.pop %v1739
        %v1868 = vpow.pop %v1740
        %v1869 = vpow.pop %v1741
        %v1870 = vpow.pop %v1742
        %v1871 = vpow.pop %v1743
        %v1872 = vpow.pop %v1744
        %v1873 = vpow.pop %v1745
        %v1874 = vpow.pop %v1746
        %v1875 = vpow.pop %v1747
        %v1876 = vpow.pop %v1748
        %v1877 = vpow.pop %v1749
        %v1878 = vpow.pop %v1750
        %v1879 = vpow.pop %v1751
        %v1880 = vpow.pop %v1752
        %v1881 = vpow.pop %v1753
        %v1882 = vpow.pop %v1754
        %v1883 = vpow.pop %v1755
        %v1884 = vpow.pop %v1756
        %v1885 = vpow.pop %v1757
        %v1886 = vpow.pop %v1758
        %v1887 = vpow.pop %v1759
        %v1888 = vpow.pop %v1760
        %v1889 = vpow.pop %v1761
        %v1890 = vpow.pop %v1762
        %v1891 = vpow.pop %v1763
        %v1892 = vpow.pop %v1764
        %v1893 = vpow.pop %v1765
        %v1894 = vpow.pop %v1766
        %v1895 = vpow.pop %v1767
        %v1896 = vpow.pop %v1768
        %v1897 = vpow.pop %v1769
        %v1898 = vpow.pop %v1770
        %v1899 = vpow.pop %v1771
        %v1900 = vpow.pop %v1772
        %v1901 = vpow.pop %v1773
        %v1902 = vpow.pop %v1774
        %v1903 = vpow.pop %v1775
        %v1904 = vpow.pop %v1776
        %v1905 = vpow.pop %v1777
        %v1906 = vpow.pop %v1778
        %v1907 = vpow.pop %v1779
        %v1908 = vpow.pop %v1780
        %v1909 = vpow.pop %v1781
        %v1910 = vpow.pop %v1782
        %v1911 = vpow.pop %v1783
        %v1912 = vpow.pop %v1784
        %v1913 = vpow.pop %v1785
        %v1914 = vpow.pop %v1786
        %v1915 = vpow.pop %v1787
        %v1916 = vpow.pop %v1788
        %v1917 = vpow.pop %v1789
        %v1918 = vpow.pop %v1790
        %v1919 = vpow.pop %v1791
        %v1920 = vpow.pop %v1792
        %v1921 = vpow.pop %v1793
        %v1922 = vpow.pop %v1794
        %v1923 = vpow.pop %v1795
        %v1924 = vpow.pop %v1796
        %v1925 = vpow.pop %v1797
        %v1926 = vpow.pop %v1798
        %v1927 = vpow.pop %v1799
        %v1928 = vpow.pop %v1800
        %v1929 = vpow.pop %v1801
        %v1930 = vpow.pop %v1802
        %v1931 = vpow.pop %v1803
        %v1932 = vpow.pop %v1804
        %v1933 = vpow.pop %v1805
        %v1934 = vpow.pop %v1806
        %v1935 = vpow.pop %v1807
        %v1936 = vpow.pop %v1808
        %v1937 = vpow.pop %v1809
        %v1938 = vpow.pop %v1810
        %v1939 = vpow.pop %v1811
        %v1940 = vpow.pop %v1812
        %v1941 = vpow.pop %v1813
        %v1942 = vpow.pop %v1814
        %v1943 = vpow.pop %v1815
        %v1944 = vpow.pop %v1816
        %v1945 = vpow.pop %v1817
        %v1946 = vpow.pop %v1818
        %v1947 = vpow.pop %v1819
        %v1948 = vpow.pop %v1820
        %v1949 = vpow.pop %v1821
        %v1950 = vpow.pop %v1822
        %v1951 = vpow.pop %v1823
        %v1952 = vpow.pop %v1824
        %v1953 = vpow.pop %v1825
        %v1954 = vpow.pop %v1826
        %v1955 = vpow.pop %v1827
        %v1956 = vpow.pop %v1828
        %v1957 = vpow.pop %v1829
        %v1958 = vpow.pop %v1830
        %v1959 = vpow.pop %v1831
        %v1960 = vpow.pop %v1832
        %v1961 = vpow.pop %v1833
        %v1962 = vpow.pop %v1834
        %v1963 = vpow.pop %v1835
        %v1964 = vpow.pop %v1836
        %v1965 = vpow.pop %v1837
        %v1966 = vpow.pop %v1838
        %v1967 = vpow.pop %v1839
        %v1968 = vpow.pop %v1840
        %v1969 = vpow.pop %v1841
        %v1970 = vpow.pop %v1842
        %v1971 = vpow.pop %v1843
        %v1972 = vadd.f32 %v1844, %v1845
        %1973 = vadd.xlane.f32.xlu0 %v1972
        %v1974 = vpop.xlane.xlu0 %1973
        %v1975 = vadd.f32 %v1846, %v1847
        %1976 = vadd.xlane.f32.xlu0 %v1975
        %v1977 = vpop.xlane.xlu0 %1976
        %v1978 = vadd.f32 %v1848, %v1849
        %1979 = vadd.xlane.f32.xlu0 %v1978
        %v1980 = vpop.xlane.xlu0 %1979
        %v1981 = vadd.f32 %v1850, %v1851
        %1982 = vadd.xlane.f32.xlu0 %v1981
        %v1983 = vpop.xlane.xlu0 %1982
        %v1984 = vadd.f32 %v1852, %v1853
        %1985 = vadd.xlane.f32.xlu0 %v1984
        %v1986 = vpop.xlane.xlu0 %1985
        %v1987 = vadd.f32 %v1854, %v1855
        %1988 = vadd.xlane.f32.xlu0 %v1987
        %v1989 = vpop.xlane.xlu0 %1988
        %v1990 = vadd.f32 %v1856, %v1857
        %1991 = vadd.xlane.f32.xlu0 %v1990
        %v1992 = vpop.xlane.xlu0 %1991
        %v1993 = vadd.f32 %v1858, %v1859
        %1994 = vadd.xlane.f32.xlu0 %v1993
        %v1995 = vpop.xlane.xlu0 %1994
        %v1996 = vadd.f32 %v1860, %v1861
        %1997 = vadd.xlane.f32.xlu0 %v1996
        %v1998 = vpop.xlane.xlu0 %1997
        %v1999 = vadd.f32 %v1862, %v1863
        %2000 = vadd.xlane.f32.xlu0 %v1999
        %v2001 = vpop.xlane.xlu0 %2000
        %v2002 = vadd.f32 %v1864, %v1865
        %2003 = vadd.xlane.f32.xlu0 %v2002
        %v2004 = vpop.xlane.xlu0 %2003
        %v2005 = vadd.f32 %v1866, %v1867
        %2006 = vadd.xlane.f32.xlu0 %v2005
        %v2007 = vpop.xlane.xlu0 %2006
        %v2008 = vadd.f32 %v1868, %v1869
        %2009 = vadd.xlane.f32.xlu0 %v2008
        %v2010 = vpop.xlane.xlu0 %2009
        %v2011 = vadd.f32 %v1870, %v1871
        %2012 = vadd.xlane.f32.xlu0 %v2011
        %v2013 = vpop.xlane.xlu0 %2012
        %v2014 = vadd.f32 %v1872, %v1873
        %2015 = vadd.xlane.f32.xlu0 %v2014
        %v2016 = vpop.xlane.xlu0 %2015
        %v2017 = vadd.f32 %v1874, %v1875
        %2018 = vadd.xlane.f32.xlu0 %v2017
        %v2019 = vpop.xlane.xlu0 %2018
        %v2020 = vadd.f32 %v1876, %v1877
        %2021 = vadd.xlane.f32.xlu0 %v2020
        %v2022 = vpop.xlane.xlu0 %2021
        %v2023 = vadd.f32 %v1878, %v1879
        %2024 = vadd.xlane.f32.xlu0 %v2023
        %v2025 = vpop.xlane.xlu0 %2024
        %v2026 = vadd.f32 %v1880, %v1881
        %2027 = vadd.xlane.f32.xlu0 %v2026
        %v2028 = vpop.xlane.xlu0 %2027
        %v2029 = vadd.f32 %v1882, %v1883
        %2030 = vadd.xlane.f32.xlu0 %v2029
        %v2031 = vpop.xlane.xlu0 %2030
        %v2032 = vadd.f32 %v1884, %v1885
        %2033 = vadd.xlane.f32.xlu0 %v2032
        %v2034 = vpop.xlane.xlu0 %2033
        %v2035 = vadd.f32 %v1886, %v1887
        %2036 = vadd.xlane.f32.xlu0 %v2035
        %v2037 = vpop.xlane.xlu0 %2036
        %v2038 = vadd.f32 %v1888, %v1889
        %2039 = vadd.xlane.f32.xlu0 %v2038
        %v2040 = vpop.xlane.xlu0 %2039
        %v2041 = vadd.f32 %v1890, %v1891
        %2042 = vadd.xlane.f32.xlu0 %v2041
        %v2043 = vpop.xlane.xlu0 %2042
        %v2044 = vadd.f32 %v1892, %v1893
        %2045 = vadd.xlane.f32.xlu0 %v2044
        %v2046 = vpop.xlane.xlu0 %2045
        %v2047 = vadd.f32 %v1894, %v1895
        %2048 = vadd.xlane.f32.xlu0 %v2047
        %v2049 = vpop.xlane.xlu0 %2048
        %v2050 = vadd.f32 %v1896, %v1897
        %2051 = vadd.xlane.f32.xlu0 %v2050
        %v2052 = vpop.xlane.xlu0 %2051
        %v2053 = vadd.f32 %v1898, %v1899
        %2054 = vadd.xlane.f32.xlu0 %v2053
        %v2055 = vpop.xlane.xlu0 %2054
        %v2056 = vadd.f32 %v1900, %v1901
        %2057 = vadd.xlane.f32.xlu0 %v2056
        %v2058 = vpop.xlane.xlu0 %2057
        %v2059 = vadd.f32 %v1902, %v1903
        %2060 = vadd.xlane.f32.xlu0 %v2059
        %v2061 = vpop.xlane.xlu0 %2060
        %v2062 = vadd.f32 %v1904, %v1905
        %2063 = vadd.xlane.f32.xlu0 %v2062
        %v2064 = vpop.xlane.xlu0 %2063
        %v2065 = vadd.f32 %v1906, %v1907
        %2066 = vadd.xlane.f32.xlu0 %v2065
        %v2067 = vpop.xlane.xlu0 %2066
        %v2068 = vadd.f32 %v1908, %v1909
        %2069 = vadd.xlane.f32.xlu0 %v2068
        %v2070 = vpop.xlane.xlu0 %2069
        %v2071 = vadd.f32 %v1910, %v1911
        %2072 = vadd.xlane.f32.xlu0 %v2071
        %v2073 = vpop.xlane.xlu0 %2072
        %v2074 = vadd.f32 %v1912, %v1913
        %2075 = vadd.xlane.f32.xlu0 %v2074
        %v2076 = vpop.xlane.xlu0 %2075
        %v2077 = vadd.f32 %v1914, %v1915
        %2078 = vadd.xlane.f32.xlu0 %v2077
        %v2079 = vpop.xlane.xlu0 %2078
        %v2080 = vadd.f32 %v1916, %v1917
        %2081 = vadd.xlane.f32.xlu0 %v2080
        %v2082 = vpop.xlane.xlu0 %2081
        %v2083 = vadd.f32 %v1918, %v1919
        %2084 = vadd.xlane.f32.xlu0 %v2083
        %v2085 = vpop.xlane.xlu0 %2084
        %v2086 = vadd.f32 %v1920, %v1921
        %2087 = vadd.xlane.f32.xlu0 %v2086
        %v2088 = vpop.xlane.xlu0 %2087
        %v2089 = vadd.f32 %v1922, %v1923
        %2090 = vadd.xlane.f32.xlu0 %v2089
        %v2091 = vpop.xlane.xlu0 %2090
        %v2092 = vadd.f32 %v1924, %v1925
        %2093 = vadd.xlane.f32.xlu0 %v2092
        %v2094 = vpop.xlane.xlu0 %2093
        %v2095 = vadd.f32 %v1926, %v1927
        %2096 = vadd.xlane.f32.xlu0 %v2095
        %v2097 = vpop.xlane.xlu0 %2096
        %v2098 = vadd.f32 %v1928, %v1929
        %2099 = vadd.xlane.f32.xlu0 %v2098
        %v2100 = vpop.xlane.xlu0 %2099
        %v2101 = vadd.f32 %v1930, %v1931
        %2102 = vadd.xlane.f32.xlu0 %v2101
        %v2103 = vpop.xlane.xlu0 %2102
        %v2104 = vadd.f32 %v1932, %v1933
        %2105 = vadd.xlane.f32.xlu0 %v2104
        %v2106 = vpop.xlane.xlu0 %2105
        %v2107 = vadd.f32 %v1934, %v1935
        %2108 = vadd.xlane.f32.xlu0 %v2107
        %v2109 = vpop.xlane.xlu0 %2108
        %v2110 = vadd.f32 %v1936, %v1937
        %2111 = vadd.xlane.f32.xlu0 %v2110
        %v2112 = vpop.xlane.xlu0 %2111
        %v2113 = vadd.f32 %v1938, %v1939
        %2114 = vadd.xlane.f32.xlu0 %v2113
        %v2115 = vpop.xlane.xlu0 %2114
        %v2116 = vadd.f32 %v1940, %v1941
        %2117 = vadd.xlane.f32.xlu0 %v2116
        %v2118 = vpop.xlane.xlu0 %2117
        %v2119 = vadd.f32 %v1942, %v1943
        %2120 = vadd.xlane.f32.xlu0 %v2119
        %v2121 = vpop.xlane.xlu0 %2120
        %v2122 = vadd.f32 %v1944, %v1945
        %2123 = vadd.xlane.f32.xlu0 %v2122
        %v2124 = vpop.xlane.xlu0 %2123
        %v2125 = vadd.f32 %v1946, %v1947
        %2126 = vadd.xlane.f32.xlu0 %v2125
        %v2127 = vpop.xlane.xlu0 %2126
        %v2128 = vadd.f32 %v1948, %v1949
        %2129 = vadd.xlane.f32.xlu0 %v2128
        %v2130 = vpop.xlane.xlu0 %2129
        %v2131 = vadd.f32 %v1950, %v1951
        %2132 = vadd.xlane.f32.xlu0 %v2131
        %v2133 = vpop.xlane.xlu0 %2132
        %v2134 = vadd.f32 %v1952, %v1953
        %2135 = vadd.xlane.f32.xlu0 %v2134
        %v2136 = vpop.xlane.xlu0 %2135
        %v2137 = vadd.f32 %v1954, %v1955
        %2138 = vadd.xlane.f32.xlu0 %v2137
        %v2139 = vpop.xlane.xlu0 %2138
        %v2140 = vadd.f32 %v1956, %v1957
        %2141 = vadd.xlane.f32.xlu0 %v2140
        %v2142 = vpop.xlane.xlu0 %2141
        %v2143 = vadd.f32 %v1958, %v1959
        %2144 = vadd.xlane.f32.xlu0 %v2143
        %v2145 = vpop.xlane.xlu0 %2144
        %v2146 = vadd.f32 %v1960, %v1961
        %2147 = vadd.xlane.f32.xlu0 %v2146
        %v2148 = vpop.xlane.xlu0 %2147
        %v2149 = vadd.f32 %v1962, %v1963
        %2150 = vadd.xlane.f32.xlu0 %v2149
        %v2151 = vpop.xlane.xlu0 %2150
        %v2152 = vadd.f32 %v1964, %v1965
        %2153 = vadd.xlane.f32.xlu0 %v2152
        %v2154 = vpop.xlane.xlu0 %2153
        %v2155 = vadd.f32 %v1966, %v1967
        %2156 = vadd.xlane.f32.xlu0 %v2155
        %v2157 = vpop.xlane.xlu0 %2156
        %v2158 = vadd.f32 %v1968, %v1969
        %2159 = vadd.xlane.f32.xlu0 %v2158
        %v2160 = vpop.xlane.xlu0 %2159
        %v2161 = vadd.f32 %v1970, %v1971
        %2162 = vadd.xlane.f32.xlu0 %v2161
        %v2163 = vpop.xlane.xlu0 %2162
        %2164 = vmatprep.subr.mxu0 %v1875
        %2165 = vmatpush1.xpose.msra.mxu0 %v1874
        %2166 = vmatprep.subr.mxu0 %v1873
        %2167 = vmatpush1.xpose.msra.mxu0 %v1872
        %2168 = vmatprep.subr.mxu0 %v1871
        %2169 = vmatpush1.xpose.msra.mxu0 %v1870
        %2170 = vmatprep.subr.mxu0 %v1869
        %2171 = vmatpush1.xpose.msra.mxu0 %v1868
        %2172 = vmatprep.subr.mxu0 %v1867
        %2173 = vmatpush1.xpose.msra.mxu0 %v1866
        %2174 = vmatprep.subr.mxu0 %v1865
        %2175 = vmatpush1.xpose.msra.mxu0 %v1864
        %2176 = vmatprep.subr.mxu0 %v1863
        %2177 = vmatpush1.xpose.msra.mxu0 %v1862
        %2178 = vmatprep.subr.mxu0 %v1861
        %2179 = vmatpush1.xpose.msra.mxu0 %v1860
        %2180 = vmatprep.subr.mxu0 %v1859
        %2181 = vmatpush1.xpose.msra.mxu0 %v1858
        %2182 = vmatprep.subr.mxu0 %v1857
        %2183 = vmatpush1.xpose.msra.mxu0 %v1856
        %2184 = vmatprep.subr.mxu0 %v1855
        %2185 = vmatpush1.xpose.msra.mxu0 %v1854
        %2186 = vmatprep.subr.mxu0 %v1853
        %2187 = vmatpush1.xpose.msra.mxu0 %v1852
        %2188 = vmatprep.subr.mxu0 %v1851
        %2189 = vmatpush1.xpose.msra.mxu0 %v1850
        %2190 = vmatprep.subr.mxu0 %v1849
        %2191 = vmatpush1.xpose.msra.mxu0 %v1848
        %2192 = vmatprep.subr.mxu0 %v1847
        %2193 = vmatpush1.xpose.msra.mxu0 %v1846
        %2194 = vmatprep.subr.mxu0 %v1845
        %2195 = vmatpush1.xpose.msra.mxu0 %v1844
        %2196 = vmatprep.subr.mxu0 0.0
        %2197 = vmatpush2.xpose.msra.mxu0 0.0
        %2198 = vmatprep.subr.mxu0 0.0
        %2199 = vmatpush2.xpose.msra.mxu0 0.0
        %2200 = vmatprep.subr.mxu0 0.0
        %2201 = vmatpush2.xpose.msra.mxu0 0.0
        %2202 = vmatprep.subr.mxu0 0.0
        %2203 = vmatpush2.xpose.msra.mxu0 0.0
        %2204 = vmatprep.subr.mxu0 0.0
        %2205 = vmatpush2.xpose.msra.mxu0 0.0
        %2206 = vmatprep.subr.mxu0 0.0
        %2207 = vmatpush2.xpose.msra.mxu0 0.0
        %2208 = vmatprep.subr.mxu0 0.0
        %2209 = vmatpush2.xpose.msra.mxu0 0.0
        %2210 = vmatprep.subr.mxu0 0.0
        %2211 = vmatpush2.xpose.msra.mxu0 0.0
        %2212 = vmatprep.subr.mxu0 0.0
        %2213 = vmatpush2.xpose.msra.mxu0 0.0
        %2214 = vmatprep.subr.mxu0 0.0
        %2215 = vmatpush2.xpose.msra.mxu0 0.0
        %2216 = vmatprep.subr.mxu0 0.0
        %2217 = vmatpush2.xpose.msra.mxu0 0.0
        %2218 = vmatprep.subr.mxu0 0.0
        %2219 = vmatpush2.xpose.msra.mxu0 0.0
        %2220 = vmatprep.subr.mxu0 0.0
        %2221 = vmatpush2.xpose.msra.mxu0 0.0
        %2222 = vmatprep.subr.mxu0 0.0
        %2223 = vmatpush2.xpose.msra.mxu0 0.0
        %2224 = vmatprep.subr.mxu0 0.0
        %2225 = vmatpush2.xpose.msra.mxu0 0.0
        %2226 = vmatprep.subr.mxu0 0.0
        %2227 = vmatpush2.xpose.msra.mxu0 0.0
        %2228 = vmatprep.mubr.f32.mxu0 %v496
        %2229 = vmatmul.mubr.f32.gmra.mxu0 %v495
        %v2230 = vpop.f32.mrf.mxu0
        %v2231 = vadd.f32 0.0, %v2230
        %v2232 = vpop.f32.mrf.mxu0
        %2233 = vmatprep.mubr.f32.mxu0 %v498
        %2234 = vmatmul.mubr.f32.gmra.mxu0 %v497
        %v2235 = vpop.f32.mrf.mxu0
        %v2236 = vadd.f32 0.0, %v2235
        %v2237 = vpop.f32.mrf.mxu0
        %2238 = vmatprep.mubr.f32.mxu0 %v500
        %2239 = vmatmul.mubr.f32.gmra.mxu0 %v499
        %v2240 = vpop.f32.mrf.mxu0
        %v2241 = vadd.f32 0.0, %v2240
        %v2242 = vpop.f32.mrf.mxu0
        %2243 = vmatprep.mubr.f32.mxu0 %v502
        %2244 = vmatmul.mubr.f32.gmra.mxu0 %v501
        %v2245 = vpop.f32.mrf.mxu0
        %v2246 = vadd.f32 0.0, %v2245
        %v2247 = vpop.f32.mrf.mxu0
        %2248 = vmatprep.mubr.f32.mxu0 %v504
        %2249 = vmatmul.mubr.f32.gmra.mxu0 %v503
        %v2250 = vpop.f32.mrf.mxu0
        %v2251 = vadd.f32 0.0, %v2250
        %v2252 = vpop.f32.mrf.mxu0
        %2253 = vmatprep.mubr.f32.mxu0 %v506
        %2254 = vmatmul.mubr.f32.gmra.mxu0 %v505
        %v2255 = vpop.f32.mrf.mxu0
        %v2256 = vadd.f32 0.0, %v2255
        %v2257 = vpop.f32.mrf.mxu0
        %2258 = vmatprep.mubr.f32.mxu0 %v508
        %2259 = vmatmul.mubr.f32.gmra.mxu0 %v507
        %v2260 = vpop.f32.mrf.mxu0
        %v2261 = vadd.f32 0.0, %v2260
        %v2262 = vpop.f32.mrf.mxu0
        %2263 = vmatprep.mubr.f32.mxu0 %v510
        %2264 = vmatmul.mubr.f32.gmra.mxu0 %v509
        %v2265 = vpop.f32.mrf.mxu0
        %v2266 = vadd.f32 0.0, %v2265
        %v2267 = vpop.f32.mrf.mxu0
        %2268 = vdwg.mxu0
        %2269 = vmatprep.subr.mxu0 %v1907
        %2270 = vmatpush1.xpose.msra.mxu0 %v1906
        %2271 = vmatprep.subr.mxu0 %v1905
        %2272 = vmatpush1.xpose.msra.mxu0 %v1904
        %2273 = vmatprep.subr.mxu0 %v1903
        %2274 = vmatpush1.xpose.msra.mxu0 %v1902
        %2275 = vmatprep.subr.mxu0 %v1901
        %2276 = vmatpush1.xpose.msra.mxu0 %v1900
        %2277 = vmatprep.subr.mxu0 %v1899
        %2278 = vmatpush1.xpose.msra.mxu0 %v1898
        %2279 = vmatprep.subr.mxu0 %v1897
        %2280 = vmatpush1.xpose.msra.mxu0 %v1896
        %2281 = vmatprep.subr.mxu0 %v1895
        %2282 = vmatpush1.xpose.msra.mxu0 %v1894
        %2283 = vmatprep.subr.mxu0 %v1893
        %2284 = vmatpush1.xpose.msra.mxu0 %v1892
        %2285 = vmatprep.subr.mxu0 %v1891
        %2286 = vmatpush1.xpose.msra.mxu0 %v1890
        %2287 = vmatprep.subr.mxu0 %v1889
        %2288 = vmatpush1.xpose.msra.mxu0 %v1888
        %2289 = vmatprep.subr.mxu0 %v1887
        %2290 = vmatpush1.xpose.msra.mxu0 %v1886
        %2291 = vmatprep.subr.mxu0 %v1885
        %2292 = vmatpush1.xpose.msra.mxu0 %v1884
        %2293 = vmatprep.subr.mxu0 %v1883
        %2294 = vmatpush1.xpose.msra.mxu0 %v1882
        %2295 = vmatprep.subr.mxu0 %v1881
        %2296 = vmatpush1.xpose.msra.mxu0 %v1880
        %2297 = vmatprep.subr.mxu0 %v1879
        %2298 = vmatpush1.xpose.msra.mxu0 %v1878
        %2299 = vmatprep.subr.mxu0 %v1877
        %2300 = vmatpush1.xpose.msra.mxu0 %v1876
        %2301 = vmatprep.subr.mxu0 0.0
        %2302 = vmatpush2.xpose.msra.mxu0 0.0
        %2303 = vmatprep.subr.mxu0 0.0
        %2304 = vmatpush2.xpose.msra.mxu0 0.0
        %2305 = vmatprep.subr.mxu0 0.0
        %2306 = vmatpush2.xpose.msra.mxu0 0.0
        %2307 = vmatprep.subr.mxu0 0.0
        %2308 = vmatpush2.xpose.msra.mxu0 0.0
        %2309 = vmatprep.subr.mxu0 0.0
        %2310 = vmatpush2.xpose.msra.mxu0 0.0
        %2311 = vmatprep.subr.mxu0 0.0
        %2312 = vmatpush2.xpose.msra.mxu0 0.0
        %2313 = vmatprep.subr.mxu0 0.0
        %2314 = vmatpush2.xpose.msra.mxu0 0.0
        %2315 = vmatprep.subr.mxu0 0.0
        %2316 = vmatpush2.xpose.msra.mxu0 0.0
        %2317 = vmatprep.subr.mxu0 0.0
        %2318 = vmatpush2.xpose.msra.mxu0 0.0
        %2319 = vmatprep.subr.mxu0 0.0
        %2320 = vmatpush2.xpose.msra.mxu0 0.0
        %2321 = vmatprep.subr.mxu0 0.0
        %2322 = vmatpush2.xpose.msra.mxu0 0.0
        %2323 = vmatprep.subr.mxu0 0.0
        %2324 = vmatpush2.xpose.msra.mxu0 0.0
        %2325 = vmatprep.subr.mxu0 0.0
        %2326 = vmatpush2.xpose.msra.mxu0 0.0
        %2327 = vmatprep.subr.mxu0 0.0
        %2328 = vmatpush2.xpose.msra.mxu0 0.0
        %2329 = vmatprep.subr.mxu0 0.0
        %2330 = vmatpush2.xpose.msra.mxu0 0.0
        %2331 = vmatprep.subr.mxu0 0.0
        %2332 = vmatpush2.xpose.msra.mxu0 0.0
        %2333 = vmatprep.mubr.f32.mxu0 %v512
        %2334 = vmatmul.mubr.f32.gmra.mxu0 %v511
        %v2335 = vpop.f32.mrf.mxu0
        %v2336 = vadd.f32 0.0, %v2335
        %v2337 = vpop.f32.mrf.mxu0
        %2338 = vmatprep.mubr.f32.mxu0 %v514
        %2339 = vmatmul.mubr.f32.gmra.mxu0 %v513
        %v2340 = vpop.f32.mrf.mxu0
        %v2341 = vadd.f32 0.0, %v2340
        %v2342 = vpop.f32.mrf.mxu0
        %2343 = vmatprep.mubr.f32.mxu0 %v516
        %2344 = vmatmul.mubr.f32.gmra.mxu0 %v515
        %v2345 = vpop.f32.mrf.mxu0
        %v2346 = vadd.f32 0.0, %v2345
        %v2347 = vpop.f32.mrf.mxu0
        %2348 = vmatprep.mubr.f32.mxu0 %v518
        %2349 = vmatmul.mubr.f32.gmra.mxu0 %v517
        %v2350 = vpop.f32.mrf.mxu0
        %v2351 = vadd.f32 0.0, %v2350
        %v2352 = vpop.f32.mrf.mxu0
        %2353 = vmatprep.mubr.f32.mxu0 %v520
        %2354 = vmatmul.mubr.f32.gmra.mxu0 %v519
        %v2355 = vpop.f32.mrf.mxu0
        %v2356 = vadd.f32 0.0, %v2355
        %v2357 = vpop.f32.mrf.mxu0
        %2358 = vmatprep.mubr.f32.mxu0 %v522
        %2359 = vmatmul.mubr.f32.gmra.mxu0 %v521
        %v2360 = vpop.f32.mrf.mxu0
        %v2361 = vadd.f32 0.0, %v2360
        %v2362 = vpop.f32.mrf.mxu0
        %2363 = vmatprep.mubr.f32.mxu0 %v524
        %2364 = vmatmul.mubr.f32.gmra.mxu0 %v523
        %v2365 = vpop.f32.mrf.mxu0
        %v2366 = vadd.f32 0.0, %v2365
        %v2367 = vpop.f32.mrf.mxu0
        %2368 = vmatprep.mubr.f32.mxu0 %v526
        %2369 = vmatmul.mubr.f32.gmra.mxu0 %v525
        %v2370 = vpop.f32.mrf.mxu0
        %v2371 = vadd.f32 0.0, %v2370
        %v2372 = vpop.f32.mrf.mxu0
        %2373 = vdwg.mxu0
        %2374 = vmatprep.subr.mxu0 %v1939
        %2375 = vmatpush1.xpose.msra.mxu0 %v1938
        %2376 = vmatprep.subr.mxu0 %v1937
        %2377 = vmatpush1.xpose.msra.mxu0 %v1936
        %2378 = vmatprep.subr.mxu0 %v1935
        %2379 = vmatpush1.xpose.msra.mxu0 %v1934
        %2380 = vmatprep.subr.mxu0 %v1933
        %2381 = vmatpush1.xpose.msra.mxu0 %v1932
        %2382 = vmatprep.subr.mxu0 %v1931
        %2383 = vmatpush1.xpose.msra.mxu0 %v1930
        %2384 = vmatprep.subr.mxu0 %v1929
        %2385 = vmatpush1.xpose.msra.mxu0 %v1928
        %2386 = vmatprep.subr.mxu0 %v1927
        %2387 = vmatpush1.xpose.msra.mxu0 %v1926
        %2388 = vmatprep.subr.mxu0 %v1925
        %2389 = vmatpush1.xpose.msra.mxu0 %v1924
        %2390 = vmatprep.subr.mxu0 %v1923
        %2391 = vmatpush1.xpose.msra.mxu0 %v1922
        %2392 = vmatprep.subr.mxu0 %v1921
        %2393 = vmatpush1.xpose.msra.mxu0 %v1920
        %2394 = vmatprep.subr.mxu0 %v1919
        %2395 = vmatpush1.xpose.msra.mxu0 %v1918
        %2396 = vmatprep.subr.mxu0 %v1917
        %2397 = vmatpush1.xpose.msra.mxu0 %v1916
        %2398 = vmatprep.subr.mxu0 %v1915
        %2399 = vmatpush1.xpose.msra.mxu0 %v1914
        %2400 = vmatprep.subr.mxu0 %v1913
        %2401 = vmatpush1.xpose.msra.mxu0 %v1912
        %2402 = vmatprep.subr.mxu0 %v1911
        %2403 = vmatpush1.xpose.msra.mxu0 %v1910
        %2404 = vmatprep.subr.mxu0 %v1909
        %2405 = vmatpush1.xpose.msra.mxu0 %v1908
        %2406 = vmatprep.subr.mxu0 0.0
        %2407 = vmatpush2.xpose.msra.mxu0 0.0
        %2408 = vmatprep.subr.mxu0 0.0
        %2409 = vmatpush2.xpose.msra.mxu0 0.0
        %2410 = vmatprep.subr.mxu0 0.0
        %2411 = vmatpush2.xpose.msra.mxu0 0.0
        %2412 = vmatprep.subr.mxu0 0.0
        %2413 = vmatpush2.xpose.msra.mxu0 0.0
        %2414 = vmatprep.subr.mxu0 0.0
        %2415 = vmatpush2.xpose.msra.mxu0 0.0
        %2416 = vmatprep.subr.mxu0 0.0
        %2417 = vmatpush2.xpose.msra.mxu0 0.0
        %2418 = vmatprep.subr.mxu0 0.0
        %2419 = vmatpush2.xpose.msra.mxu0 0.0
        %2420 = vmatprep.subr.mxu0 0.0
        %2421 = vmatpush2.xpose.msra.mxu0 0.0
        %2422 = vmatprep.subr.mxu0 0.0
        %2423 = vmatpush2.xpose.msra.mxu0 0.0
        %2424 = vmatprep.subr.mxu0 0.0
        %2425 = vmatpush2.xpose.msra.mxu0 0.0
        %2426 = vmatprep.subr.mxu0 0.0
        %2427 = vmatpush2.xpose.msra.mxu0 0.0
        %2428 = vmatprep.subr.mxu0 0.0
        %2429 = vmatpush2.xpose.msra.mxu0 0.0
        %2430 = vmatprep.subr.mxu0 0.0
        %2431 = vmatpush2.xpose.msra.mxu0 0.0
        %2432 = vmatprep.subr.mxu0 0.0
        %2433 = vmatpush2.xpose.msra.mxu0 0.0
        %2434 = vmatprep.subr.mxu0 0.0
        %2435 = vmatpush2.xpose.msra.mxu0 0.0
        %2436 = vmatprep.subr.mxu0 0.0
        %2437 = vmatpush2.xpose.msra.mxu0 0.0
        %2438 = vmatprep.mubr.f32.mxu0 %v528
        %2439 = vmatmul.mubr.f32.gmra.mxu0 %v527
        %v2440 = vpop.f32.mrf.mxu0
        %v2441 = vadd.f32 0.0, %v2440
        %v2442 = vpop.f32.mrf.mxu0
        %2443 = vmatprep.mubr.f32.mxu0 %v530
        %2444 = vmatmul.mubr.f32.gmra.mxu0 %v529
        %v2445 = vpop.f32.mrf.mxu0
        %v2446 = vadd.f32 0.0, %v2445
        %v2447 = vpop.f32.mrf.mxu0
        %2448 = vmatprep.mubr.f32.mxu0 %v532
        %2449 = vmatmul.mubr.f32.gmra.mxu0 %v531
        %v2450 = vpop.f32.mrf.mxu0
        %v2451 = vadd.f32 0.0, %v2450
        %v2452 = vpop.f32.mrf.mxu0
        %2453 = vmatprep.mubr.f32.mxu0 %v534
        %2454 = vmatmul.mubr.f32.gmra.mxu0 %v533
        %v2455 = vpop.f32.mrf.mxu0
        %v2456 = vadd.f32 0.0, %v2455
        %v2457 = vpop.f32.mrf.mxu0
        %2458 = vmatprep.mubr.f32.mxu0 %v536
        %2459 = vmatmul.mubr.f32.gmra.mxu0 %v535
        %v2460 = vpop.f32.mrf.mxu0
        %v2461 = vadd.f32 0.0, %v2460
        %v2462 = vpop.f32.mrf.mxu0
        %2463 = vmatprep.mubr.f32.mxu0 %v538
        %2464 = vmatmul.mubr.f32.gmra.mxu0 %v537
        %v2465 = vpop.f32.mrf.mxu0
        %v2466 = vadd.f32 0.0, %v2465
        %v2467 = vpop.f32.mrf.mxu0
        %2468 = vmatprep.mubr.f32.mxu0 %v540
        %2469 = vmatmul.mubr.f32.gmra.mxu0 %v539
        %v2470 = vpop.f32.mrf.mxu0
        %v2471 = vadd.f32 0.0, %v2470
        %v2472 = vpop.f32.mrf.mxu0
        %2473 = vmatprep.mubr.f32.mxu0 %v542
        %2474 = vmatmul.mubr.f32.gmra.mxu0 %v541
        %v2475 = vpop.f32.mrf.mxu0
        %v2476 = vadd.f32 0.0, %v2475
        %v2477 = vpop.f32.mrf.mxu0
        %2478 = vdwg.mxu0
        %2479 = vmatprep.subr.mxu0 %v1971
        %2480 = vmatpush1.xpose.msra.mxu0 %v1970
        %2481 = vmatprep.subr.mxu0 %v1969
        %2482 = vmatpush1.xpose.msra.mxu0 %v1968
        %2483 = vmatprep.subr.mxu0 %v1967
        %2484 = vmatpush1.xpose.msra.mxu0 %v1966
        %2485 = vmatprep.subr.mxu0 %v1965
        %2486 = vmatpush1.xpose.msra.mxu0 %v1964
        %2487 = vmatprep.subr.mxu0 %v1963
        %2488 = vmatpush1.xpose.msra.mxu0 %v1962
        %2489 = vmatprep.subr.mxu0 %v1961
        %2490 = vmatpush1.xpose.msra.mxu0 %v1960
        %2491 = vmatprep.subr.mxu0 %v1959
        %2492 = vmatpush1.xpose.msra.mxu0 %v1958
        %2493 = vmatprep.subr.mxu0 %v1957
        %2494 = vmatpush1.xpose.msra.mxu0 %v1956
        %2495 = vmatprep.subr.mxu0 %v1955
        %2496 = vmatpush1.xpose.msra.mxu0 %v1954
        %2497 = vmatprep.subr.mxu0 %v1953
        %2498 = vmatpush1.xpose.msra.mxu0 %v1952
        %2499 = vmatprep.subr.mxu0 %v1951
        %2500 = vmatpush1.xpose.msra.mxu0 %v1950
        %2501 = vmatprep.subr.mxu0 %v1949
        %2502 = vmatpush1.xpose.msra.mxu0 %v1948
        %2503 = vmatprep.subr.mxu0 %v1947
        %2504 = vmatpush1.xpose.msra.mxu0 %v1946
        %2505 = vmatprep.subr.mxu0 %v1945
        %2506 = vmatpush1.xpose.msra.mxu0 %v1944
        %2507 = vmatprep.subr.mxu0 %v1943
        %2508 = vmatpush1.xpose.msra.mxu0 %v1942
        %2509 = vmatprep.subr.mxu0 %v1941
        %2510 = vmatpush1.xpose.msra.mxu0 %v1940
        %2511 = vmatprep.subr.mxu0 0.0
        %2512 = vmatpush2.xpose.msra.mxu0 0.0
        %2513 = vmatprep.subr.mxu0 0.0
        %2514 = vmatpush2.xpose.msra.mxu0 0.0
        %2515 = vmatprep.subr.mxu0 0.0
        %2516 = vmatpush2.xpose.msra.mxu0 0.0
        %2517 = vmatprep.subr.mxu0 0.0
        %2518 = vmatpush2.xpose.msra.mxu0 0.0
        %2519 = vmatprep.subr.mxu0 0.0
        %2520 = vmatpush2.xpose.msra.mxu0 0.0
        %2521 = vmatprep.subr.mxu0 0.0
        %2522 = vmatpush2.xpose.msra.mxu0 0.0
        %2523 = vmatprep.subr.mxu0 0.0
        %2524 = vmatpush2.xpose.msra.mxu0 0.0
        %2525 = vmatprep.subr.mxu0 0.0
        %2526 = vmatpush2.xpose.msra.mxu0 0.0
        %2527 = vmatprep.subr.mxu0 0.0
        %2528 = vmatpush2.xpose.msra.mxu0 0.0
        %2529 = vmatprep.subr.mxu0 0.0
        %2530 = vmatpush2.xpose.msra.mxu0 0.0
        %2531 = vmatprep.subr.mxu0 0.0
        %2532 = vmatpush2.xpose.msra.mxu0 0.0
        %2533 = vmatprep.subr.mxu0 0.0
        %2534 = vmatpush2.xpose.msra.mxu0 0.0
        %2535 = vmatprep.subr.mxu0 0.0
        %2536 = vmatpush2.xpose.msra.mxu0 0.0
        %2537 = vmatprep.subr.mxu0 0.0
        %2538 = vmatpush2.xpose.msra.mxu0 0.0
        %2539 = vmatprep.subr.mxu0 0.0
        %2540 = vmatpush2.xpose.msra.mxu0 0.0
        %2541 = vmatprep.subr.mxu0 0.0
        %2542 = vmatpush2.xpose.msra.mxu0 0.0
        %2543 = vmatprep.mubr.f32.mxu0 %v544
        %2544 = vmatmul.mubr.f32.gmra.mxu0 %v543
        %v2545 = vpop.f32.mrf.mxu0
        %v2546 = vadd.f32 0.0, %v2545
        %v2547 = vpop.f32.mrf.mxu0
        %2548 = vmatprep.mubr.f32.mxu0 %v546
        %2549 = vmatmul.mubr.f32.gmra.mxu0 %v545
        %v2550 = vpop.f32.mrf.mxu0
        %v2551 = vadd.f32 0.0, %v2550
        %v2552 = vpop.f32.mrf.mxu0
        %2553 = vmatprep.mubr.f32.mxu0 %v548
        %2554 = vmatmul.mubr.f32.gmra.mxu0 %v547
        %v2555 = vpop.f32.mrf.mxu0
        %v2556 = vadd.f32 0.0, %v2555
        %v2557 = vpop.f32.mrf.mxu0
        %2558 = vmatprep.mubr.f32.mxu0 %v550
        %2559 = vmatmul.mubr.f32.gmra.mxu0 %v549
        %v2560 = vpop.f32.mrf.mxu0
        %v2561 = vadd.f32 0.0, %v2560
        %v2562 = vpop.f32.mrf.mxu0
        %2563 = vmatprep.mubr.f32.mxu0 %v552
        %2564 = vmatmul.mubr.f32.gmra.mxu0 %v551
        %v2565 = vpop.f32.mrf.mxu0
        %v2566 = vadd.f32 0.0, %v2565
        %v2567 = vpop.f32.mrf.mxu0
        %2568 = vmatprep.mubr.f32.mxu0 %v554
        %2569 = vmatmul.mubr.f32.gmra.mxu0 %v553
        %v2570 = vpop.f32.mrf.mxu0
        %v2571 = vadd.f32 0.0, %v2570
        %v2572 = vpop.f32.mrf.mxu0
        %2573 = vmatprep.mubr.f32.mxu0 %v556
        %2574 = vmatmul.mubr.f32.gmra.mxu0 %v555
        %v2575 = vpop.f32.mrf.mxu0
        %v2576 = vadd.f32 0.0, %v2575
        %v2577 = vpop.f32.mrf.mxu0
        %2578 = vmatprep.mubr.f32.mxu0 %v558
        %2579 = vmatmul.mubr.f32.gmra.mxu0 %v557
        %v2580 = vpop.f32.mrf.mxu0
        %v2581 = vadd.f32 0.0, %v2580
        %v2582 = vpop.f32.mrf.mxu0
        %2583 = vdwg.mxu0
        %v2584 = vrcp.pop %v1974
        %v2585 = vrcp.pop %v1977
        %v2586 = vrcp.pop %v1980
        %v2587 = vrcp.pop %v1983
        %v2588 = vrcp.pop %v1986
        %v2589 = vrcp.pop %v1989
        %v2590 = vrcp.pop %v1992
        %v2591 = vrcp.pop %v1995
        %v2592 = vrcp.pop %v1998
        %v2593 = vrcp.pop %v2001
        %v2594 = vrcp.pop %v2004
        %v2595 = vrcp.pop %v2007
        %v2596 = vrcp.pop %v2010
        %v2597 = vrcp.pop %v2013
        %v2598 = vrcp.pop %v2016
        %v2599 = vrcp.pop %v2019
        %v2600 = vrcp.pop %v2022
        %v2601 = vrcp.pop %v2025
        %v2602 = vrcp.pop %v2028
        %v2603 = vrcp.pop %v2031
        %v2604 = vrcp.pop %v2034
        %v2605 = vrcp.pop %v2037
        %v2606 = vrcp.pop %v2040
        %v2607 = vrcp.pop %v2043
        %v2608 = vrcp.pop %v2046
        %v2609 = vrcp.pop %v2049
        %v2610 = vrcp.pop %v2052
        %v2611 = vrcp.pop %v2055
        %v2612 = vrcp.pop %v2058
        %v2613 = vrcp.pop %v2061
        %v2614 = vrcp.pop %v2064
        %v2615 = vrcp.pop %v2067
        %v2616 = vrcp.pop %v2070
        %v2617 = vrcp.pop %v2073
        %v2618 = vrcp.pop %v2076
        %v2619 = vrcp.pop %v2079
        %v2620 = vrcp.pop %v2082
        %v2621 = vrcp.pop %v2085
        %v2622 = vrcp.pop %v2088
        %v2623 = vrcp.pop %v2091
        %v2624 = vrcp.pop %v2094
        %v2625 = vrcp.pop %v2097
        %v2626 = vrcp.pop %v2100
        %v2627 = vrcp.pop %v2103
        %v2628 = vrcp.pop %v2106
        %v2629 = vrcp.pop %v2109
        %v2630 = vrcp.pop %v2112
        %v2631 = vrcp.pop %v2115
        %v2632 = vrcp.pop %v2118
        %v2633 = vrcp.pop %v2121
        %v2634 = vrcp.pop %v2124
        %v2635 = vrcp.pop %v2127
        %v2636 = vrcp.pop %v2130
        %v2637 = vrcp.pop %v2133
        %v2638 = vrcp.pop %v2136
        %v2639 = vrcp.pop %v2139
        %v2640 = vrcp.pop %v2142
        %v2641 = vrcp.pop %v2145
        %v2642 = vrcp.pop %v2148
        %v2643 = vrcp.pop %v2151
        %v2644 = vrcp.pop %v2154
        %v2645 = vrcp.pop %v2157
        %v2646 = vrcp.pop %v2160
        %v2647 = vrcp.pop %v2163
        %v2648 = vmul.f32 %v1974, %v2584
        %v2649 = vmul.f32 %v1977, %v2585
        %v2650 = vmul.f32 %v1980, %v2586
        %v2651 = vmul.f32 %v1983, %v2587
        %v2652 = vmul.f32 %v1986, %v2588
        %v2653 = vmul.f32 %v1989, %v2589
        %v2654 = vmul.f32 %v1992, %v2590
        %v2655 = vmul.f32 %v1995, %v2591
        %v2656 = vmul.f32 %v1998, %v2592
        %v2657 = vmul.f32 %v2001, %v2593
        %v2658 = vmul.f32 %v2004, %v2594
        %v2659 = vmul.f32 %v2007, %v2595
        %v2660 = vmul.f32 %v2010, %v2596
        %v2661 = vmul.f32 %v2013, %v2597
        %v2662 = vmul.f32 %v2016, %v2598
        %v2663 = vmul.f32 %v2019, %v2599
        %v2664 = vmul.f32 %v2022, %v2600
        %v2665 = vmul.f32 %v2025, %v2601
        %v2666 = vmul.f32 %v2028, %v2602
        %v2667 = vmul.f32 %v2031, %v2603
        %v2668 = vmul.f32 %v2034, %v2604
        %v2669 = vmul.f32 %v2037, %v2605
        %v2670 = vmul.f32 %v2040, %v2606
        %v2671 = vmul.f32 %v2043, %v2607
        %v2672 = vmul.f32 %v2046, %v2608
        %v2673 = vmul.f32 %v2049, %v2609
        %v2674 = vmul.f32 %v2052, %v2610
        %v2675 = vmul.f32 %v2055, %v2611
        %v2676 = vmul.f32 %v2058, %v2612
        %v2677 = vmul.f32 %v2061, %v2613
        %v2678 = vmul.f32 %v2064, %v2614
        %v2679 = vmul.f32 %v2067, %v2615
        %v2680 = vmul.f32 %v2070, %v2616
        %v2681 = vmul.f32 %v2073, %v2617
        %v2682 = vmul.f32 %v2076, %v2618
        %v2683 = vmul.f32 %v2079, %v2619
        %v2684 = vmul.f32 %v2082, %v2620
        %v2685 = vmul.f32 %v2085, %v2621
        %v2686 = vmul.f32 %v2088, %v2622
        %v2687 = vmul.f32 %v2091, %v2623
        %v2688 = vmul.f32 %v2094, %v2624
        %v2689 = vmul.f32 %v2097, %v2625
        %v2690 = vmul.f32 %v2100, %v2626
        %v2691 = vmul.f32 %v2103, %v2627
        %v2692 = vmul.f32 %v2106, %v2628
        %v2693 = vmul.f32 %v2109, %v2629
        %v2694 = vmul.f32 %v2112, %v2630
        %v2695 = vmul.f32 %v2115, %v2631
        %v2696 = vmul.f32 %v2118, %v2632
        %v2697 = vmul.f32 %v2121, %v2633
        %v2698 = vmul.f32 %v2124, %v2634
        %v2699 = vmul.f32 %v2127, %v2635
        %v2700 = vmul.f32 %v2130, %v2636
        %v2701 = vmul.f32 %v2133, %v2637
        %v2702 = vmul.f32 %v2136, %v2638
        %v2703 = vmul.f32 %v2139, %v2639
        %v2704 = vmul.f32 %v2142, %v2640
        %v2705 = vmul.f32 %v2145, %v2641
        %v2706 = vmul.f32 %v2148, %v2642
        %v2707 = vmul.f32 %v2151, %v2643
        %v2708 = vmul.f32 %v2154, %v2644
        %v2709 = vmul.f32 %v2157, %v2645
        %v2710 = vmul.f32 %v2160, %v2646
        %v2711 = vmul.f32 %v2163, %v2647
        %v2712 = vsub.f32 2.0, %v2648
        %v2713 = vsub.f32 2.0, %v2649
        %v2714 = vsub.f32 2.0, %v2650
        %v2715 = vsub.f32 2.0, %v2651
        %v2716 = vsub.f32 2.0, %v2652
        %v2717 = vsub.f32 2.0, %v2653
        %v2718 = vsub.f32 2.0, %v2654
        %v2719 = vsub.f32 2.0, %v2655
        %v2720 = vsub.f32 2.0, %v2656
        %v2721 = vsub.f32 2.0, %v2657
        %v2722 = vsub.f32 2.0, %v2658
        %v2723 = vsub.f32 2.0, %v2659
        %v2724 = vsub.f32 2.0, %v2660
        %v2725 = vsub.f32 2.0, %v2661
        %v2726 = vsub.f32 2.0, %v2662
        %v2727 = vsub.f32 2.0, %v2663
        %v2728 = vsub.f32 2.0, %v2664
        %v2729 = vsub.f32 2.0, %v2665
        %v2730 = vsub.f32 2.0, %v2666
        %v2731 = vsub.f32 2.0, %v2667
        %v2732 = vsub.f32 2.0, %v2668
        %v2733 = vsub.f32 2.0, %v2669
        %v2734 = vsub.f32 2.0, %v2670
        %v2735 = vsub.f32 2.0, %v2671
        %v2736 = vsub.f32 2.0, %v2672
        %v2737 = vsub.f32 2.0, %v2673
        %v2738 = vsub.f32 2.0, %v2674
        %v2739 = vsub.f32 2.0, %v2675
        %v2740 = vsub.f32 2.0, %v2676
        %v2741 = vsub.f32 2.0, %v2677
        %v2742 = vsub.f32 2.0, %v2678
        %v2743 = vsub.f32 2.0, %v2679
        %v2744 = vsub.f32 2.0, %v2680
        %v2745 = vsub.f32 2.0, %v2681
        %v2746 = vsub.f32 2.0, %v2682
        %v2747 = vsub.f32 2.0, %v2683
        %v2748 = vsub.f32 2.0, %v2684
        %v2749 = vsub.f32 2.0, %v2685
        %v2750 = vsub.f32 2.0, %v2686
        %v2751 = vsub.f32 2.0, %v2687
        %v2752 = vsub.f32 2.0, %v2688
        %v2753 = vsub.f32 2.0, %v2689
        %v2754 = vsub.f32 2.0, %v2690
        %v2755 = vsub.f32 2.0, %v2691
        %v2756 = vsub.f32 2.0, %v2692
        %v2757 = vsub.f32 2.0, %v2693
        %v2758 = vsub.f32 2.0, %v2694
        %v2759 = vsub.f32 2.0, %v2695
        %v2760 = vsub.f32 2.0, %v2696
        %v2761 = vsub.f32 2.0, %v2697
        %v2762 = vsub.f32 2.0, %v2698
        %v2763 = vsub.f32 2.0, %v2699
        %v2764 = vsub.f32 2.0, %v2700
        %v2765 = vsub.f32 2.0, %v2701
        %v2766 = vsub.f32 2.0, %v2702
        %v2767 = vsub.f32 2.0, %v2703
        %v2768 = vsub.f32 2.0, %v2704
        %v2769 = vsub.f32 2.0, %v2705
        %v2770 = vsub.f32 2.0, %v2706
        %v2771 = vsub.f32 2.0, %v2707
        %v2772 = vsub.f32 2.0, %v2708
        %v2773 = vsub.f32 2.0, %v2709
        %v2774 = vsub.f32 2.0, %v2710
        %v2775 = vsub.f32 2.0, %v2711
        %v2776 = vmul.f32 %v2584, %v2712
        %v2777 = vmul.f32 %v2585, %v2713
        %v2778 = vmul.f32 %v2586, %v2714
        %v2779 = vmul.f32 %v2587, %v2715
        %v2780 = vmul.f32 %v2588, %v2716
        %v2781 = vmul.f32 %v2589, %v2717
        %v2782 = vmul.f32 %v2590, %v2718
        %v2783 = vmul.f32 %v2591, %v2719
        %v2784 = vmul.f32 %v2592, %v2720
        %v2785 = vmul.f32 %v2593, %v2721
        %v2786 = vmul.f32 %v2594, %v2722
        %v2787 = vmul.f32 %v2595, %v2723
        %v2788 = vmul.f32 %v2596, %v2724
        %v2789 = vmul.f32 %v2597, %v2725
        %v2790 = vmul.f32 %v2598, %v2726
        %v2791 = vmul.f32 %v2599, %v2727
        %v2792 = vmul.f32 %v2600, %v2728
        %v2793 = vmul.f32 %v2601, %v2729
        %v2794 = vmul.f32 %v2602, %v2730
        %v2795 = vmul.f32 %v2603, %v2731
        %v2796 = vmul.f32 %v2604, %v2732
        %v2797 = vmul.f32 %v2605, %v2733
        %v2798 = vmul.f32 %v2606, %v2734
        %v2799 = vmul.f32 %v2607, %v2735
        %v2800 = vmul.f32 %v2608, %v2736
        %v2801 = vmul.f32 %v2609, %v2737
        %v2802 = vmul.f32 %v2610, %v2738
        %v2803 = vmul.f32 %v2611, %v2739
        %v2804 = vmul.f32 %v2612, %v2740
        %v2805 = vmul.f32 %v2613, %v2741
        %v2806 = vmul.f32 %v2614, %v2742
        %v2807 = vmul.f32 %v2615, %v2743
        %v2808 = vmul.f32 %v2616, %v2744
        %v2809 = vmul.f32 %v2617, %v2745
        %v2810 = vmul.f32 %v2618, %v2746
        %v2811 = vmul.f32 %v2619, %v2747
        %v2812 = vmul.f32 %v2620, %v2748
        %v2813 = vmul.f32 %v2621, %v2749
        %v2814 = vmul.f32 %v2622, %v2750
        %v2815 = vmul.f32 %v2623, %v2751
        %v2816 = vmul.f32 %v2624, %v2752
        %v2817 = vmul.f32 %v2625, %v2753
        %v2818 = vmul.f32 %v2626, %v2754
        %v2819 = vmul.f32 %v2627, %v2755
        %v2820 = vmul.f32 %v2628, %v2756
        %v2821 = vmul.f32 %v2629, %v2757
        %v2822 = vmul.f32 %v2630, %v2758
        %v2823 = vmul.f32 %v2631, %v2759
        %v2824 = vmul.f32 %v2632, %v2760
        %v2825 = vmul.f32 %v2633, %v2761
        %v2826 = vmul.f32 %v2634, %v2762
        %v2827 = vmul.f32 %v2635, %v2763
        %v2828 = vmul.f32 %v2636, %v2764
        %v2829 = vmul.f32 %v2637, %v2765
        %v2830 = vmul.f32 %v2638, %v2766
        %v2831 = vmul.f32 %v2639, %v2767
        %v2832 = vmul.f32 %v2640, %v2768
        %v2833 = vmul.f32 %v2641, %v2769
        %v2834 = vmul.f32 %v2642, %v2770
        %v2835 = vmul.f32 %v2643, %v2771
        %v2836 = vmul.f32 %v2644, %v2772
        %v2837 = vmul.f32 %v2645, %v2773
        %v2838 = vmul.f32 %v2646, %v2774
        %v2839 = vmul.f32 %v2647, %v2775
        %v2904 = vlaneseq
        %v2905 = vand.u32 %v2904, 127
        %v2906 = vlaneseq
        %v2907 = vshrl.u32 %v2906, 7
        %v2908 = vsub.s32 %v2905, %v2907
        %v2909 = vrot.slane %v2776, %v2908
        %v2910 = vadd.s32 %v2905, 4294967288
        %v2911 = vlaneseq
        %v2912 = vshrl.u32 %v2911, 7
        %v2913 = vsub.s32 %v2910, %v2912
        %v2914 = vrot.slane %v2777, %v2913
        %vm2915 = vcmask 130112
        %v2916 = vsel %vm2915, %v2914, %v2909
        %v2917 = vadd.s32 %v2905, 4294967280
        %v2918 = vlaneseq
        %v2919 = vshrl.u32 %v2918, 7
        %v2920 = vsub.s32 %v2917, %v2919
        %v2921 = vrot.slane %v2778, %v2920
        %vm2922 = vcmask 195712
        %v2923 = vsel %vm2922, %v2921, %v2916
        %v2924 = vadd.s32 %v2905, 4294967272
        %v2925 = vlaneseq
        %v2926 = vshrl.u32 %v2925, 7
        %v2927 = vsub.s32 %v2924, %v2926
        %v2928 = vrot.slane %v2779, %v2927
        %vm2929 = vcmask 261312
        %v2930 = vsel %vm2929, %v2928, %v2923
        %v2931 = vadd.s32 %v2905, 4294967264
        %v2932 = vlaneseq
        %v2933 = vshrl.u32 %v2932, 7
        %v2934 = vsub.s32 %v2931, %v2933
        %v2935 = vrot.slane %v2780, %v2934
        %vm2936 = vcmask 326912
        %v2937 = vsel %vm2936, %v2935, %v2930
        %v2938 = vadd.s32 %v2905, 4294967256
        %v2939 = vlaneseq
        %v2940 = vshrl.u32 %v2939, 7
        %v2941 = vsub.s32 %v2938, %v2940
        %v2942 = vrot.slane %v2781, %v2941
        %vm2943 = vcmask 392512
        %v2944 = vsel %vm2943, %v2942, %v2937
        %v2945 = vadd.s32 %v2905, 4294967248
        %v2946 = vlaneseq
        %v2947 = vshrl.u32 %v2946, 7
        %v2948 = vsub.s32 %v2945, %v2947
        %v2949 = vrot.slane %v2782, %v2948
        %vm2950 = vcmask 458112
        %v2951 = vsel %vm2950, %v2949, %v2944
        %v2952 = vadd.s32 %v2905, 4294967240
        %v2953 = vlaneseq
        %v2954 = vshrl.u32 %v2953, 7
        %v2955 = vsub.s32 %v2952, %v2954
        %v2956 = vrot.slane %v2783, %v2955
        %vm2957 = vcmask 523712
        %v2958 = vsel %vm2957, %v2956, %v2951
        %v2959 = vadd.s32 %v2905, 4294967232
        %v2960 = vlaneseq
        %v2961 = vshrl.u32 %v2960, 7
        %v2962 = vsub.s32 %v2959, %v2961
        %v2963 = vrot.slane %v2784, %v2962
        %vm2964 = vcmask 589312
        %v2965 = vsel %vm2964, %v2963, %v2958
        %v2966 = vadd.s32 %v2905, 4294967224
        %v2967 = vlaneseq
        %v2968 = vshrl.u32 %v2967, 7
        %v2969 = vsub.s32 %v2966, %v2968
        %v2970 = vrot.slane %v2785, %v2969
        %vm2971 = vcmask 654912
        %v2972 = vsel %vm2971, %v2970, %v2965
        %v2973 = vadd.s32 %v2905, 4294967216
        %v2974 = vlaneseq
        %v2975 = vshrl.u32 %v2974, 7
        %v2976 = vsub.s32 %v2973, %v2975
        %v2977 = vrot.slane %v2786, %v2976
        %vm2978 = vcmask 720512
        %v2979 = vsel %vm2978, %v2977, %v2972
        %v2980 = vadd.s32 %v2905, 4294967208
        %v2981 = vlaneseq
        %v2982 = vshrl.u32 %v2981, 7
        %v2983 = vsub.s32 %v2980, %v2982
        %v2984 = vrot.slane %v2787, %v2983
        %vm2985 = vcmask 786112
        %v2986 = vsel %vm2985, %v2984, %v2979
        %v2987 = vadd.s32 %v2905, 4294967200
        %v2988 = vlaneseq
        %v2989 = vshrl.u32 %v2988, 7
        %v2990 = vsub.s32 %v2987, %v2989
        %v2991 = vrot.slane %v2788, %v2990
        %vm2992 = vcmask 851712
        %v2993 = vsel %vm2992, %v2991, %v2986
        %v2994 = vadd.s32 %v2905, 4294967192
        %v2995 = vlaneseq
        %v2996 = vshrl.u32 %v2995, 7
        %v2997 = vsub.s32 %v2994, %v2996
        %v2998 = vrot.slane %v2789, %v2997
        %vm2999 = vcmask 917312
        %v3000 = vsel %vm2999, %v2998, %v2993
        %v3001 = vadd.s32 %v2905, 4294967184
        %v3002 = vlaneseq
        %v3003 = vshrl.u32 %v3002, 7
        %v3004 = vsub.s32 %v3001, %v3003
        %v3005 = vrot.slane %v2790, %v3004
        %vm3006 = vcmask 982912
        %v3007 = vsel %vm3006, %v3005, %v3000
        %v3008 = vadd.s32 %v2905, 4294967176
        %v3009 = vlaneseq
        %v3010 = vshrl.u32 %v3009, 7
        %v3011 = vsub.s32 %v3008, %v3010
        %v3012 = vrot.slane %v2791, %v3011
        %vm3013 = vcmask 1048512
        %v3014 = vsel %vm3013, %v3012, %v3007
        %v3015 = vlaneseq
        %v3016 = vshrl.u32 %v3015, 7
        %v3017 = vsub.s32 %v2905, %v3016
        %v3018 = vrot.slane %v2792, %v3017
        %v3019 = vlaneseq
        %v3020 = vshrl.u32 %v3019, 7
        %v3021 = vsub.s32 %v2910, %v3020
        %v3022 = vrot.slane %v2793, %v3021
        %v3023 = vsel %vm2915, %v3022, %v3018
        %v3024 = vlaneseq
        %v3025 = vshrl.u32 %v3024, 7
        %v3026 = vsub.s32 %v2917, %v3025
        %v3027 = vrot.slane %v2794, %v3026
        %v3028 = vsel %vm2922, %v3027, %v3023
        %v3029 = vlaneseq
        %v3030 = vshrl.u32 %v3029, 7
        %v3031 = vsub.s32 %v2924, %v3030
        %v3032 = vrot.slane %v2795, %v3031
        %v3033 = vsel %vm2929, %v3032, %v3028
        %v3034 = vlaneseq
        %v3035 = vshrl.u32 %v3034, 7
        %v3036 = vsub.s32 %v2931, %v3035
        %v3037 = vrot.slane %v2796, %v3036
        %v3038 = vsel %vm2936, %v3037, %v3033
        %v3039 = vlaneseq
        %v3040 = vshrl.u32 %v3039, 7
        %v3041 = vsub.s32 %v2938, %v3040
        %v3042 = vrot.slane %v2797, %v3041
        %v3043 = vsel %vm2943, %v3042, %v3038
        %v3044 = vlaneseq
        %v3045 = vshrl.u32 %v3044, 7
        %v3046 = vsub.s32 %v2945, %v3045
        %v3047 = vrot.slane %v2798, %v3046
        %v3048 = vsel %vm2950, %v3047, %v3043
        %v3049 = vlaneseq
        %v3050 = vshrl.u32 %v3049, 7
        %v3051 = vsub.s32 %v2952, %v3050
        %v3052 = vrot.slane %v2799, %v3051
        %v3053 = vsel %vm2957, %v3052, %v3048
        %v3054 = vlaneseq
        %v3055 = vshrl.u32 %v3054, 7
        %v3056 = vsub.s32 %v2959, %v3055
        %v3057 = vrot.slane %v2800, %v3056
        %v3058 = vsel %vm2964, %v3057, %v3053
        %v3059 = vlaneseq
        %v3060 = vshrl.u32 %v3059, 7
        %v3061 = vsub.s32 %v2966, %v3060
        %v3062 = vrot.slane %v2801, %v3061
        %v3063 = vsel %vm2971, %v3062, %v3058
        %v3064 = vlaneseq
        %v3065 = vshrl.u32 %v3064, 7
        %v3066 = vsub.s32 %v2973, %v3065
        %v3067 = vrot.slane %v2802, %v3066
        %v3068 = vsel %vm2978, %v3067, %v3063
        %v3069 = vlaneseq
        %v3070 = vshrl.u32 %v3069, 7
        %v3071 = vsub.s32 %v2980, %v3070
        %v3072 = vrot.slane %v2803, %v3071
        %v3073 = vsel %vm2985, %v3072, %v3068
        %v3074 = vlaneseq
        %v3075 = vshrl.u32 %v3074, 7
        %v3076 = vsub.s32 %v2987, %v3075
        %v3077 = vrot.slane %v2804, %v3076
        %v3078 = vsel %vm2992, %v3077, %v3073
        %v3079 = vlaneseq
        %v3080 = vshrl.u32 %v3079, 7
        %v3081 = vsub.s32 %v2994, %v3080
        %v3082 = vrot.slane %v2805, %v3081
        %v3083 = vsel %vm2999, %v3082, %v3078
        %v3084 = vlaneseq
        %v3085 = vshrl.u32 %v3084, 7
        %v3086 = vsub.s32 %v3001, %v3085
        %v3087 = vrot.slane %v2806, %v3086
        %v3088 = vsel %vm3006, %v3087, %v3083
        %v3089 = vlaneseq
        %v3090 = vshrl.u32 %v3089, 7
        %v3091 = vsub.s32 %v3008, %v3090
        %v3092 = vrot.slane %v2807, %v3091
        %v3093 = vsel %vm3013, %v3092, %v3088
        %v3094 = vlaneseq
        %v3095 = vshrl.u32 %v3094, 7
        %v3096 = vsub.s32 %v2905, %v3095
        %v3097 = vrot.slane %v2808, %v3096
        %v3098 = vlaneseq
        %v3099 = vshrl.u32 %v3098, 7
        %v3100 = vsub.s32 %v2910, %v3099
        %v3101 = vrot.slane %v2809, %v3100
        %v3102 = vsel %vm2915, %v3101, %v3097
        %v3103 = vlaneseq
        %v3104 = vshrl.u32 %v3103, 7
        %v3105 = vsub.s32 %v2917, %v3104
        %v3106 = vrot.slane %v2810, %v3105
        %v3107 = vsel %vm2922, %v3106, %v3102
        %v3108 = vlaneseq
        %v3109 = vshrl.u32 %v3108, 7
        %v3110 = vsub.s32 %v2924, %v3109
        %v3111 = vrot.slane %v2811, %v3110
        %v3112 = vsel %vm2929, %v3111, %v3107
        %v3113 = vlaneseq
        %v3114 = vshrl.u32 %v3113, 7
        %v3115 = vsub.s32 %v2931, %v3114
        %v3116 = vrot.slane %v2812, %v3115
        %v3117 = vsel %vm2936, %v3116, %v3112
        %v3118 = vlaneseq
        %v3119 = vshrl.u32 %v3118, 7
        %v3120 = vsub.s32 %v2938, %v3119
        %v3121 = vrot.slane %v2813, %v3120
        %v3122 = vsel %vm2943, %v3121, %v3117
        %v3123 = vlaneseq
        %v3124 = vshrl.u32 %v3123, 7
        %v3125 = vsub.s32 %v2945, %v3124
        %v3126 = vrot.slane %v2814, %v3125
        %v3127 = vsel %vm2950, %v3126, %v3122
        %v3128 = vlaneseq
        %v3129 = vshrl.u32 %v3128, 7
        %v3130 = vsub.s32 %v2952, %v3129
        %v3131 = vrot.slane %v2815, %v3130
        %v3132 = vsel %vm2957, %v3131, %v3127
        %v3133 = vlaneseq
        %v3134 = vshrl.u32 %v3133, 7
        %v3135 = vsub.s32 %v2959, %v3134
        %v3136 = vrot.slane %v2816, %v3135
        %v3137 = vsel %vm2964, %v3136, %v3132
        %v3138 = vlaneseq
        %v3139 = vshrl.u32 %v3138, 7
        %v3140 = vsub.s32 %v2966, %v3139
        %v3141 = vrot.slane %v2817, %v3140
        %v3142 = vsel %vm2971, %v3141, %v3137
        %v3143 = vlaneseq
        %v3144 = vshrl.u32 %v3143, 7
        %v3145 = vsub.s32 %v2973, %v3144
        %v3146 = vrot.slane %v2818, %v3145
        %v3147 = vsel %vm2978, %v3146, %v3142
        %v3148 = vlaneseq
        %v3149 = vshrl.u32 %v3148, 7
        %v3150 = vsub.s32 %v2980, %v3149
        %v3151 = vrot.slane %v2819, %v3150
        %v3152 = vsel %vm2985, %v3151, %v3147
        %v3153 = vlaneseq
        %v3154 = vshrl.u32 %v3153, 7
        %v3155 = vsub.s32 %v2987, %v3154
        %v3156 = vrot.slane %v2820, %v3155
        %v3157 = vsel %vm2992, %v3156, %v3152
        %v3158 = vlaneseq
        %v3159 = vshrl.u32 %v3158, 7
        %v3160 = vsub.s32 %v2994, %v3159
        %v3161 = vrot.slane %v2821, %v3160
        %v3162 = vsel %vm2999, %v3161, %v3157
        %v3163 = vlaneseq
        %v3164 = vshrl.u32 %v3163, 7
        %v3165 = vsub.s32 %v3001, %v3164
        %v3166 = vrot.slane %v2822, %v3165
        %v3167 = vsel %vm3006, %v3166, %v3162
        %v3168 = vlaneseq
        %v3169 = vshrl.u32 %v3168, 7
        %v3170 = vsub.s32 %v3008, %v3169
        %v3171 = vrot.slane %v2823, %v3170
        %v3172 = vsel %vm3013, %v3171, %v3167
        %v3173 = vlaneseq
        %v3174 = vshrl.u32 %v3173, 7
        %v3175 = vsub.s32 %v2905, %v3174
        %v3176 = vrot.slane %v2824, %v3175
        %v3177 = vlaneseq
        %v3178 = vshrl.u32 %v3177, 7
        %v3179 = vsub.s32 %v2910, %v3178
        %v3180 = vrot.slane %v2825, %v3179
        %v3181 = vsel %vm2915, %v3180, %v3176
        %v3182 = vlaneseq
        %v3183 = vshrl.u32 %v3182, 7
        %v3184 = vsub.s32 %v2917, %v3183
        %v3185 = vrot.slane %v2826, %v3184
        %v3186 = vsel %vm2922, %v3185, %v3181
        %v3187 = vlaneseq
        %v3188 = vshrl.u32 %v3187, 7
        %v3189 = vsub.s32 %v2924, %v3188
        %v3190 = vrot.slane %v2827, %v3189
        %v3191 = vsel %vm2929, %v3190, %v3186
        %v3192 = vlaneseq
        %v3193 = vshrl.u32 %v3192, 7
        %v3194 = vsub.s32 %v2931, %v3193
        %v3195 = vrot.slane %v2828, %v3194
        %v3196 = vsel %vm2936, %v3195, %v3191
        %v3197 = vlaneseq
        %v3198 = vshrl.u32 %v3197, 7
        %v3199 = vsub.s32 %v2938, %v3198
        %v3200 = vrot.slane %v2829, %v3199
        %v3201 = vsel %vm2943, %v3200, %v3196
        %v3202 = vlaneseq
        %v3203 = vshrl.u32 %v3202, 7
        %v3204 = vsub.s32 %v2945, %v3203
        %v3205 = vrot.slane %v2830, %v3204
        %v3206 = vsel %vm2950, %v3205, %v3201
        %v3207 = vlaneseq
        %v3208 = vshrl.u32 %v3207, 7
        %v3209 = vsub.s32 %v2952, %v3208
        %v3210 = vrot.slane %v2831, %v3209
        %v3211 = vsel %vm2957, %v3210, %v3206
        %v3212 = vlaneseq
        %v3213 = vshrl.u32 %v3212, 7
        %v3214 = vsub.s32 %v2959, %v3213
        %v3215 = vrot.slane %v2832, %v3214
        %v3216 = vsel %vm2964, %v3215, %v3211
        %v3217 = vlaneseq
        %v3218 = vshrl.u32 %v3217, 7
        %v3219 = vsub.s32 %v2966, %v3218
        %v3220 = vrot.slane %v2833, %v3219
        %v3221 = vsel %vm2971, %v3220, %v3216
        %v3222 = vlaneseq
        %v3223 = vshrl.u32 %v3222, 7
        %v3224 = vsub.s32 %v2973, %v3223
        %v3225 = vrot.slane %v2834, %v3224
        %v3226 = vsel %vm2978, %v3225, %v3221
        %v3227 = vlaneseq
        %v3228 = vshrl.u32 %v3227, 7
        %v3229 = vsub.s32 %v2980, %v3228
        %v3230 = vrot.slane %v2835, %v3229
        %v3231 = vsel %vm2985, %v3230, %v3226
        %v3232 = vlaneseq
        %v3233 = vshrl.u32 %v3232, 7
        %v3234 = vsub.s32 %v2987, %v3233
        %v3235 = vrot.slane %v2836, %v3234
        %v3236 = vsel %vm2992, %v3235, %v3231
        %v3237 = vlaneseq
        %v3238 = vshrl.u32 %v3237, 7
        %v3239 = vsub.s32 %v2994, %v3238
        %v3240 = vrot.slane %v2837, %v3239
        %v3241 = vsel %vm2999, %v3240, %v3236
        %v3242 = vlaneseq
        %v3243 = vshrl.u32 %v3242, 7
        %v3244 = vsub.s32 %v3001, %v3243
        %v3245 = vrot.slane %v2838, %v3244
        %v3246 = vsel %vm3006, %v3245, %v3241
        %v3247 = vlaneseq
        %v3248 = vshrl.u32 %v3247, 7
        %v3249 = vsub.s32 %v3008, %v3248
        %v3250 = vrot.slane %v2839, %v3249
        %v3251 = vsel %vm3013, %v3250, %v3246
        %vm3252 = vcmask 1042434
        %v3253 = vsel %vm3252, %v3014, %v3014
        %vm3254 = vcmask 1043459
        %v3255 = vsel %vm3254, %v3014, %v3253
        %vm3256 = vcmask 1044484
        %v3257 = vsel %vm3256, %v3014, %v3255
        %vm3258 = vcmask 1045509
        %v3259 = vsel %vm3258, %v3014, %v3257
        %vm3260 = vcmask 1046534
        %v3261 = vsel %vm3260, %v3014, %v3259
        %vm3262 = vcmask 1047559
        %v3263 = vsel %vm3262, %v3014, %v3261
        %v3264 = vsel %vm3252, %v3093, %v3093
        %v3265 = vsel %vm3254, %v3093, %v3264
        %v3266 = vsel %vm3256, %v3093, %v3265
        %v3267 = vsel %vm3258, %v3093, %v3266
        %v3268 = vsel %vm3260, %v3093, %v3267
        %v3269 = vsel %vm3262, %v3093, %v3268
        %v3270 = vsel %vm3252, %v3172, %v3172
        %v3271 = vsel %vm3254, %v3172, %v3270
        %v3272 = vsel %vm3256, %v3172, %v3271
        %v3273 = vsel %vm3258, %v3172, %v3272
        %v3274 = vsel %vm3260, %v3172, %v3273
        %v3275 = vsel %vm3262, %v3172, %v3274
        %v3276 = vsel %vm3252, %v3251, %v3251
        %v3277 = vsel %vm3254, %v3251, %v3276
        %v3278 = vsel %vm3256, %v3251, %v3277
        %v3279 = vsel %vm3258, %v3251, %v3278
        %v3280 = vsel %vm3260, %v3251, %v3279
        %v3281 = vsel %vm3262, %v3251, %v3280
        %v3286 = vmul.f32 %v2231, %v3263
        %v3287 = vmul.f32 %v2236, %v3263
        %v3288 = vmul.f32 %v2241, %v3263
        %v3289 = vmul.f32 %v2246, %v3263
        %v3290 = vmul.f32 %v2251, %v3263
        %v3291 = vmul.f32 %v2256, %v3263
        %v3292 = vmul.f32 %v2261, %v3263
        %v3293 = vmul.f32 %v2266, %v3263
        %v3294 = vmul.f32 %v2336, %v3269
        %v3295 = vmul.f32 %v2341, %v3269
        %v3296 = vmul.f32 %v2346, %v3269
        %v3297 = vmul.f32 %v2351, %v3269
        %v3298 = vmul.f32 %v2356, %v3269
        %v3299 = vmul.f32 %v2361, %v3269
        %v3300 = vmul.f32 %v2366, %v3269
        %v3301 = vmul.f32 %v2371, %v3269
        %v3302 = vmul.f32 %v2441, %v3275
        %v3303 = vmul.f32 %v2446, %v3275
        %v3304 = vmul.f32 %v2451, %v3275
        %v3305 = vmul.f32 %v2456, %v3275
        %v3306 = vmul.f32 %v2461, %v3275
        %v3307 = vmul.f32 %v2466, %v3275
        %v3308 = vmul.f32 %v2471, %v3275
        %v3309 = vmul.f32 %v2476, %v3275
        %v3310 = vmul.f32 %v2546, %v3281
        %v3311 = vmul.f32 %v2551, %v3281
        %v3312 = vmul.f32 %v2556, %v3281
        %v3313 = vmul.f32 %v2561, %v3281
        %v3314 = vmul.f32 %v2566, %v3281
        %v3315 = vmul.f32 %v2571, %v3281
        %v3316 = vmul.f32 %v2576, %v3281
        %v3317 = vmul.f32 %v2581, %v3281
        %3318 = vst [vmem:[%s362] sm:$0xff] %v3286
        %3319 = vst [vmem:[%s362 + $0x8] sm:$0xff] %v3287
        %3320 = vst [vmem:[%s362 + $0x10] sm:$0xff] %v3288
        %3321 = vst [vmem:[%s362 + $0x18] sm:$0xff] %v3289
        %3322 = vst [vmem:[%s362 + $0x20] sm:$0xff] %v3290
        %3323 = vst [vmem:[%s362 + $0x28] sm:$0xff] %v3291
        %3324 = vst [vmem:[%s362 + $0x30] sm:$0xff] %v3292
        %3325 = vst [vmem:[%s362 + $0x38] sm:$0xff] %v3293
        %3326 = vst [vmem:[%s362 + $0x40] sm:$0xff] %v3294
        %3327 = vst [vmem:[%s362 + $0x48] sm:$0xff] %v3295
        %3328 = vst [vmem:[%s362 + $0x50] sm:$0xff] %v3296
        %3329 = vst [vmem:[%s362 + $0x58] sm:$0xff] %v3297
        %3330 = vst [vmem:[%s362 + $0x60] sm:$0xff] %v3298
        %3331 = vst [vmem:[%s362 + $0x68] sm:$0xff] %v3299
        %3332 = vst [vmem:[%s362 + $0x70] sm:$0xff] %v3300
        %3333 = vst [vmem:[%s362 + $0x78] sm:$0xff] %v3301
        %3334 = vst [vmem:[%s362 + $0x80] sm:$0xff] %v3302
        %3335 = vst [vmem:[%s362 + $0x88] sm:$0xff] %v3303
        %3336 = vst [vmem:[%s362 + $0x90] sm:$0xff] %v3304
        %3337 = vst [vmem:[%s362 + $0x98] sm:$0xff] %v3305
        %3338 = vst [vmem:[%s362 + $0xa0] sm:$0xff] %v3306
        %3339 = vst [vmem:[%s362 + $0xa8] sm:$0xff] %v3307
        %3340 = vst [vmem:[%s362 + $0xb0] sm:$0xff] %v3308
        %3341 = vst [vmem:[%s362 + $0xb8] sm:$0xff] %v3309
        %3342 = vst [vmem:[%s362 + $0xc0] sm:$0xff] %v3310
        %3343 = vst [vmem:[%s362 + $0xc8] sm:$0xff] %v3311
        %3344 = vst [vmem:[%s362 + $0xd0] sm:$0xff] %v3312
        %3345 = vst [vmem:[%s362 + $0xd8] sm:$0xff] %v3313
        %3346 = vst [vmem:[%s362 + $0xe0] sm:$0xff] %v3314
        %3347 = vst [vmem:[%s362 + $0xe8] sm:$0xff] %v3315
        %3348 = vst [vmem:[%s362 + $0xf0] sm:$0xff] %v3316
        %3349 = vst [vmem:[%s362 + $0xf8] sm:$0xff] %v3317
        %s3350 = sand.u32 %s125, 1
        %s3351 = scalar_lea.sflag [#allocation4], %s3350
        %s3352 = sand.u32 %s125, 1
        %s3353 = smul.addr %s3352, 256
        %s3354 = scalar_lea.vmem [#allocation8], %s3353
        // Predicated region
        $region45: #{tpu_custom_call.1} parent=31 // pred_check
          %p3355 = pneg %p135
        $region46: #{tpu_custom_call.1} parent=31 // pred_check_branch
          %3357 = sbr.rel (%p3355) target = $region48
        $region47: #{tpu_custom_call.1} parent=31 // pred_region
          %s3358 = smul.u32 4, %s27
          %s3360 = ssub.s32 4096, 4096
          %3361 = vsyncadd %s3351, %s3360
          %s3362 = smul.addr %s3358, 16
          %s3363 = sadd.s32 %s28, %s3362
          %s3364 = smul.addr %s3363, 128
          %s3365 = scalar_lea.hbm %s3, %s3364
          %s3366 = sshll.u32 %s3354, 4
          %s3367 = int_to_ptr.vmem [resolvable:$true] %s3366
          %3372 = dma.vmem_to_hbm [thread:$0]  %s3367, 4096, %s3365, %s3351, 128, 256, 8
        $region48: #{tpu_custom_call.1} parent=31 // pred_fallthru
          _
      $region32: #{tpu_custom_call.1} parent=5 // pred_fallthru
        _
      %p3373 = scmp.le.s32.totalorder 2, %s18
      // Predicated region
      $region49: #{tpu_custom_call.1} parent=5 // pred_check
        %p3374 = pneg %p3373
      $region50: #{tpu_custom_call.1} parent=5 // pred_check_branch
        %3376 = sbr.rel (%p3374) target = $region52
      $region51: #{tpu_custom_call.1} parent=5 // pred_region
        %s3377 = ssub.s32 %s18, 2
        // Predicated region
        $region53: #{tpu_custom_call.1} parent=51 // pred_check
          %p3378 = pneg %p141
        $region54: #{tpu_custom_call.1} parent=51 // pred_check_branch
          %3380 = sbr.rel (%p3378) target = $region56
        $region55: #{tpu_custom_call.1} parent=51 // pred_region
          %s3381 = sand.u32 %s126, 1
          %s3382 = scalar_lea.sflag [#allocation4], %s3381
          %s3383 = sand.u32 %s126, 1
          %s3384 = smul.addr %s3383, 256
          %s3385 = scalar_lea.vmem [#allocation8], %s3384
          %3386 = dma.done %s3382, 4096
        $region56: #{tpu_custom_call.1} parent=51 // pred_fallthru
          _
      $region52: #{tpu_custom_call.1} parent=5 // pred_fallthru
        _
    $region6: #{tpu_custom_call.1} parent=1 // loop_footer
      %s22 = sadd.s32 1, %s18
    $region7: #{tpu_custom_call.1} parent=1 // loop_footer_branch
      %17 = sbr.rel target = $region3
    $region8: #{tpu_custom_call.1} parent=1 // loop_exit
      _
    %3387 = vsyncpa [#allocation3], 1
    %s3388 = scalar_lea.sflag [#allocation3], 1
    %3389 = vsyncpa %s3388, 1
    %3390 = vsyncpa [#allocation6], 1
    %s3391 = scalar_lea.sflag [#allocation6], 1
    %3392 = vsyncpa %s3391, 1
    %3393 = vsyncpa [#allocation4], 1
    %s3394 = scalar_lea.sflag [#allocation4], 1
    %3395 = vsyncpa %s3394, 1

</llo_original>
